<compile_context>
chip_gen: v7x
topology: tpu7x:2x2x1
jax: 0.10.0
libtpu: 0.0.40
codegen_flags: <defaults>
</compile_context>

<pallas_src>
import functools

import jax
import jax.numpy as jnp
from jax.experimental import pallas as pl
from jax.experimental.pallas import tpu as pltpu


# ----------------------------------------------------------------------------
# Config (small, hardware-tile-friendly stand-in shapes)
# ----------------------------------------------------------------------------
class Config:
    batch = 2
    img_c, img_h, img_w = 3, 16, 16   # CHW = 768 (lane-dense)
    features_dim = 128                # stand-in for 2054
    feature_num = 7                   # clip_num + feature_num = 8 -> sublane-aligned prefix
    clip_num = 1
    clip_dim = 128                    # stand-in CLIP embed dim
    embed_dim = 128                   # stand-in for 768
    n_head = 4                        # head_dim = 32
    seq_len = 8                       # max_len; total T = 16
    vocab_dim = 128                   # stand-in vocab
    layer_num = 2


# ----------------------------------------------------------------------------
# In-kernel helpers
# ----------------------------------------------------------------------------
def _ln(x, g, b, eps=1e-5):
    """LayerNorm over last dim, f32 math.  x:(M,E), g/b:(1,E)."""
    mu = jnp.mean(x, axis=-1, keepdims=True)
    var = jnp.mean(jnp.square(x - mu), axis=-1, keepdims=True)
    return (x - mu) * jax.lax.rsqrt(var + eps) * g + b


# ----------------------------------------------------------------------------
# BlockSpec helpers
# ----------------------------------------------------------------------------
def _full_spec(shape):
    """Whole array, constant block (index map accepts any grid arity)."""
    n = len(shape)
    return pl.BlockSpec(tuple(shape), lambda *_: (0,) * n)


def _batch_spec_bl(shape):
    """(B, ...) array blocked by the batch grid axis of a (b, l) grid."""
    rest = tuple(shape[1:])
    return pl.BlockSpec((1,) + rest, lambda b, l: (b,) + (0,) * len(rest))


def _layer_spec_bl(shape):
    """(L, ...) stacked-per-layer array blocked by the layer grid axis of a (b, l) grid."""
    rest = tuple(shape[1:])
    return pl.BlockSpec((1,) + rest, lambda b, l: (l,) + (0,) * len(rest))


# ----------------------------------------------------------------------------
# Kernel 1: fused embedding / prefix construction (batch folded, single block)
# ----------------------------------------------------------------------------
def _embed_kernel(img_ref, feat_ref, words_ref, wpe_ref,
                  cenc_w, cenc_b, cemb_w, cemb_b, i2e_w, i2e_b,
                  h_ref, prefix_ref, *, P):
    B, F, FD = feat_ref.shape

    # stand-in for clip.encode_image (no_grad in the original)
    clip_feat = jnp.dot(img_ref[...].astype(jnp.bfloat16), cenc_w[...],
                        preferred_element_type=jnp.float32) + cenc_b[...]     # (B, Cd)
    clip_emb = jnp.dot(clip_feat.astype(jnp.bfloat16), cemb_w[...],
                       preferred_element_type=jnp.float32) + cemb_b[...]      # (B, E)

    # batch folded into the matmul M dimension: (B*F, FD) @ (FD, E)
    imgs_emb = (jnp.dot(feat_ref[...].reshape(B * F, FD).astype(jnp.bfloat16),
                        i2e_w[...], preferred_element_type=jnp.float32)
                + i2e_b[...]).reshape(B, F, -1)                               # (B, F, E)

    pos = wpe_ref[...]                                                        # (T, E)

    clip_pe = clip_emb[:, None, :] + pos[0:1, :]                              # (B, 1, E)
    imgs_pe = imgs_emb + pos[1:P, :]                                          # (B, F, E)

    # direct slice stores (no in-kernel concatenate)
    prefix_ref[:, 0:1, :] = clip_pe
    prefix_ref[:, 1:, :] = imgs_pe
    h_ref[:, 0:1, :] = clip_pe
    h_ref[:, 1:P, :] = imgs_pe
    h_ref[:, P:, :] = words_ref[...] + pos[P:, :]


def embed_and_prefix(params, cfg, img_flat, features, words_embed, wpe):
    B = features.shape[0]
    E = cfg.embed_dim
    P = cfg.clip_num + cfg.feature_num
    T = P + cfg.seq_len
    CHW = img_flat.shape[-1]
    return pl.pallas_call(
        functools.partial(_embed_kernel, P=P),
        out_shape=(jax.ShapeDtypeStruct((B, T, E), jnp.float32),
                   jax.ShapeDtypeStruct((B, P, E), jnp.float32)),
        grid=(1,),
        in_specs=[
            _full_spec((B, CHW)),
            _full_spec((B, cfg.feature_num, cfg.features_dim)),
            _full_spec((B, cfg.seq_len, E)),
            _full_spec((T, E)),
            _full_spec(params["clip_enc_w"].shape),
            _full_spec((1, cfg.clip_dim)),
            _full_spec(params["clip_embed_w"].shape),
            _full_spec((1, E)),
            _full_spec(params["img2embed_w"].shape),
            _full_spec((1, E)),
        ],
        out_specs=(_full_spec((B, T, E)), _full_spec((B, P, E))),
        compiler_params=pltpu.CompilerParams(dimension_semantics=("arbitrary",)),
    )(img_flat, features, words_embed, wpe,
      params["clip_enc_w"], params["clip_enc_b"],
      params["clip_embed_w"], params["clip_embed_b"],
      params["img2embed_w"], params["img2embed_b"])


# ----------------------------------------------------------------------------
# Kernel 2: ALL GPT-2 blocks fused in one pallas_call, grid=(B, L)
# ----------------------------------------------------------------------------
# vp rows: 0 ln1_g, 1 ln1_b, 2 ln2_g, 3 ln2_b, 4 q_b, 5 k_b, 6 v_b, 7 proj_b, 8 mlp_proj_b
def _layers_kernel(h0_ref, prefix_ref, mask_ref, vp_ref,
                   attn_w_ref, proj_w_ref, mfc_w_ref, mfc_b_ref, mproj_w_ref,
                   h_ref, *, n_head, P):
    l = pl.program_id(1)

    # h stays resident in the output VMEM block across the layer axis.
    @pl.when(l == 0)
    def _():
        h_ref[...] = h0_ref[...]

    h = h_ref[0]                                   # (T, E) f32
    T, E = h.shape
    H = n_head
    Dh = E // H
    vp = vp_ref[0]                                 # (9, E) f32

    # --- attention (pre-LN) ---
    x = _ln(h, vp[0:1], vp[1:2])
    xb = x.astype(jnp.bfloat16)                    # single bf16 cast of the LN output
    q = jnp.dot(xb, attn_w_ref[0, 0], preferred_element_type=jnp.float32) + vp[4:5]
    k = jnp.dot(xb, attn_w_ref[0, 1], preferred_element_type=jnp.float32) + vp[5:6]
    v = jnp.dot(xb, attn_w_ref[0, 2], preferred_element_type=jnp.float32) + vp[6:7]
    q = q * (1.0 / (Dh ** 0.5))                    # scale folded into q once

    # head-batched attention on an (H, T, Dh) layout (no per-head lane slices / concat)
    qh = jnp.transpose(q.reshape(T, H, Dh), (1, 0, 2)).astype(jnp.bfloat16)
    kh = jnp.transpose(k.reshape(T, H, Dh), (1, 0, 2)).astype(jnp.bfloat16)
    vh = jnp.transpose(v.reshape(T, H, Dh), (1, 0, 2)).astype(jnp.bfloat16)
    s = jnp.einsum('hqd,hkd->hqk', qh, kh,
                   preferred_element_type=jnp.float32)            # (H, T, T)
    s = s + mask_ref[...]                                         # additive causal mask
    s = s - jnp.max(s, axis=-1, keepdims=True)
    p = jnp.exp(s)
    p = p * pl.reciprocal(jnp.sum(p, axis=-1, keepdims=True), approx=True)
    o = jnp.einsum('hqk,hkd->hqd', p.astype(jnp.bfloat16), vh,
                   preferred_element_type=jnp.float32)            # (H, T, Dh)
    a = jnp.transpose(o, (1, 0, 2)).reshape(T, E)
    h = h + jnp.dot(a.astype(jnp.bfloat16), proj_w_ref[0],
                    preferred_element_type=jnp.float32) + vp[7:8]

    # --- MLP (pre-LN, GELU-tanh like GPT-2) ---
    x2 = _ln(h, vp[2:3], vp[3:4])
    m = jnp.dot(x2.astype(jnp.bfloat16), mfc_w_ref[0],
                preferred_element_type=jnp.float32) + mfc_b_ref[0]
    m = jax.nn.gelu(m, approximate=True)
    h = h + jnp.dot(m.astype(jnp.bfloat16), mproj_w_ref[0],
                    preferred_element_type=jnp.float32) + vp[8:9]

    # write back; prefix rows overwritten in place (reference: h[:, :P, :] = prefix).
    # P == 8 -> aligned, unmasked slice stores.
    h_ref[0] = h
    h_ref[0, :P, :] = prefix_ref[0]


def fused_layers(h0, prefix, mask, params, cfg):
    B, T, E = h0.shape
    L = cfg.layer_num
    P = prefix.shape[1]
    return pl.pallas_call(
        functools.partial(_layers_kernel, n_head=cfg.n_head, P=P),
        out_shape=jax.ShapeDtypeStruct((B, T, E), jnp.float32),
        grid=(B, L),
        in_specs=[
            _batch_spec_bl((B, T, E)),                 # h0
            _batch_spec_bl((B, P, E)),                 # prefix (+ pos)
            pl.BlockSpec((T, T), lambda b, l: (0, 0)),  # causal mask (constant)
            _layer_spec_bl(params["vp"].shape),        # (L, 9, E) LN + biases
            _layer_spec_bl(params["attn_w"].shape),    # (L, 3, E, E)
            _layer_spec_bl(params["proj_w"].shape),    # (L, E, E)
            _layer_spec_bl(params["mlp_fc_w"].shape),  # (L, E, 4E)
            _layer_spec_bl(params["mlp_fc_b"].shape),  # (L, 1, 4E)
            _layer_spec_bl(params["mlp_proj_w"].shape),  # (L, 4E, E)
        ],
        out_specs=_batch_spec_bl((B, T, E)),
        compiler_params=pltpu.CompilerParams(
            dimension_semantics=("parallel", "arbitrary"),
            vmem_limit_bytes=32 * 1024 * 1024),        # explicit budget (v7x-safe)
    )(h0, prefix, mask,
      params["vp"], params["attn_w"], params["proj_w"],
      params["mlp_fc_w"], params["mlp_fc_b"], params["mlp_proj_w"])


# ----------------------------------------------------------------------------
# Kernel 3: fused final LayerNorm + vocab projection + cross-entropy, grid=(B,)
# ----------------------------------------------------------------------------
def _head_kernel(tgt_ref, h_ref, lnf_ref, fcw_ref, fcb_ref,
                 preds_ref, loss_ref, *, P):
    b = pl.program_id(0)
    tail = h_ref[0, P:, :]                          # (S, E), aligned slice (P == 8)
    S = tail.shape[0]
    V = fcb_ref.shape[-1]

    x = _ln(tail, lnf_ref[0:1], lnf_ref[1:2])
    logits = jnp.dot(x.astype(jnp.bfloat16), fcw_ref[...],
                     preferred_element_type=jnp.float32) + fcb_ref[...]   # (S, V)
    preds_ref[0] = logits

    m = jnp.max(logits, axis=-1, keepdims=True)
    lse = jnp.log(jnp.sum(jnp.exp(logits - m), axis=-1, keepdims=True)) + m   # (S, 1)

    # target logits via SMEM scalar ids + lane-iota compare (no one-hot HBM traffic)
    lane = jax.lax.broadcasted_iota(jnp.int32, (1, V), 1)
    tgt_logit = jnp.float32(0.0)
    for s in range(S):                              # static, small
        t = tgt_ref[b, s]
        tgt_logit = tgt_logit + jnp.sum(
            jnp.where(lane == t, logits[s:s + 1, :], 0.0))

    total = jnp.sum(lse) - tgt_logit                # sum of per-token NLL for this batch row
    loss_ref[...] = jnp.broadcast_to(total, loss_ref.shape)


def head_and_loss(h, target, params, cfg):
    B, T, E = h.shape
    P = cfg.clip_num + cfg.feature_num
    S, V = cfg.seq_len, cfg.vocab_dim
    preds, loss_part = pl.pallas_call(
        functools.partial(_head_kernel, P=P),
        out_shape=(jax.ShapeDtypeStruct((B, S, V), jnp.float32),
                   jax.ShapeDtypeStruct((B, 1, V), jnp.float32)),
        grid_spec=pltpu.PrefetchScalarGridSpec(
            num_scalar_prefetch=1,
            grid=(B,),
            in_specs=[
                pl.BlockSpec((1, T, E), lambda b, tgt: (b, 0, 0)),
                pl.BlockSpec((2, E), lambda b, tgt: (0, 0)),
                pl.BlockSpec((E, V), lambda b, tgt: (0, 0)),
                pl.BlockSpec((1, V), lambda b, tgt: (0, 0)),
            ],
            out_specs=(
                pl.BlockSpec((1, S, V), lambda b, tgt: (b, 0, 0)),
                pl.BlockSpec((1, 1, V), lambda b, tgt: (b, 0, 0)),
            ),
        ),
        compiler_params=pltpu.CompilerParams(dimension_semantics=("parallel",)),
    )(target, h, params["ln_f"], params["fc_w"], params["fc_b"])
    loss = jnp.sum(loss_part[:, 0, 0]) / (B * S)
    return loss, preds


# ----------------------------------------------------------------------------
# Parameters (bf16 matmul weights, f32 LN/bias; per-layer params stacked on L)
# ----------------------------------------------------------------------------
def init_params(cfg: Config):
    key = jax.random.PRNGKey(42)
    ks = iter(jax.random.split(key, 32))

    def w(shape, scale=0.02, dtype=jnp.bfloat16):
        return (jax.random.normal(next(ks), shape, jnp.float32) * scale).astype(dtype)

    E, L, V = cfg.embed_dim, cfg.layer_num, cfg.vocab_dim
    P = cfg.clip_num + cfg.feature_num
    T = P + cfg.seq_len
    CHW = cfg.img_c * cfg.img_h * cfg.img_w

    # consolidated per-layer vector params: ln1_g, ln1_b, ln2_g, ln2_b, q_b, k_b, v_b,
    # proj_b, mlp_proj_b  -> (L, 9, E)
    vp = jnp.zeros((L, 9, E), jnp.float32).at[:, 0, :].set(1.0).at[:, 2, :].set(1.0)
    ln_f = jnp.concatenate([jnp.ones((1, E), jnp.float32),
                            jnp.zeros((1, E), jnp.float32)], axis=0)

    return {
        # stand-in CLIP image encoder (TODO(synk): real CLIP not translatable)
        "clip_enc_w": w((CHW, cfg.clip_dim)),
        "clip_enc_b": jnp.zeros((1, cfg.clip_dim), jnp.float32),
        # __clip_embed__ / __img2embed__
        "clip_embed_w": w((cfg.clip_dim, E)),
        "clip_embed_b": jnp.zeros((1, E), jnp.float32),
        "img2embed_w": w((cfg.features_dim, E)),
        "img2embed_b": jnp.zeros((1, E), jnp.float32),
        # token / position embeddings (f32, used additively)
        "wte": w((V, E), dtype=jnp.float32),
        "wpe": w((T + 8, E), dtype=jnp.float32),
        # final layer norm + vocab projection
        "ln_f": ln_f,
        "fc_w": w((E, V)),
        "fc_b": jnp.zeros((1, V), jnp.float32),
        # stacked per-layer weights
        "vp": vp,
        "attn_w": w((L, 3, E, E)),
        "proj_w": w((L, E, E)),
        "mlp_fc_w": w((L, E, 4 * E)),
        "mlp_fc_b": jnp.zeros((L, 1, 4 * E), jnp.float32),
        "mlp_proj_w": w((L, 4 * E, E)),
    }


# ----------------------------------------------------------------------------
# Forward (CapBenchTrain.forward with self_crit_seq_train=None)
# ----------------------------------------------------------------------------
def cap_bench_train_forward(params, cfg: Config, images, features, tag_ids,
                            input_ids, target):
    del tag_ids  # unused by decoder.forward
    B = features.shape[0]
    P = cfg.clip_num + cfg.feature_num
    T = P + cfg.seq_len

    img_flat = images.reshape(B, -1).astype(jnp.float32)           # NCHW flattened
    words_embed = jnp.take(params["wte"], input_ids, axis=0)       # (B, S, E) gather
    wpe = params["wpe"][:T]                                        # (T, E)

    # additive causal mask, built once and reused by every (b, l) step
    qi = jax.lax.broadcasted_iota(jnp.int32, (T, T), 0)
    ki = jax.lax.broadcasted_iota(jnp.int32, (T, T), 1)
    mask = jnp.where(ki <= qi, 0.0, -1e9).astype(jnp.float32)

    h0, prefix = embed_and_prefix(params, cfg, img_flat, features, words_embed, wpe)
    h = fused_layers(h0, prefix, mask, params, cfg)                # all layers, one call
    loss, preds_out = head_and_loss(h, target, params, cfg)
    return loss, preds_out


# ----------------------------------------------------------------------------
# Main
# ----------------------------------------------------------------------------
if __name__ == "__main__":
    cfg = Config()
    params = init_params(cfg)

    key = jax.random.PRNGKey(0)
    k_img, k_feat, k_ids, k_tgt = jax.random.split(key, 4)

    images = jax.random.normal(k_img, (cfg.batch, cfg.img_c, cfg.img_h, cfg.img_w),
                               jnp.float32)                                   # NCHW
    features = jax.random.normal(k_feat, (cfg.batch, cfg.feature_num, cfg.features_dim),
                                 jnp.float32)
    input_ids = jax.random.randint(k_ids, (cfg.batch, cfg.seq_len), 0, cfg.vocab_dim,
                                   jnp.int32)
    target = jax.random.randint(k_tgt, (cfg.batch, cfg.seq_len), 0, cfg.vocab_dim,
                                jnp.int32)
    tag_ids = None  # unused by decoder.forward

    loss, preds = jax.jit(
        functools.partial(cap_bench_train_forward, params, cfg)
    )(images, features, tag_ids, input_ids, target)

    jax.block_until_ready((loss, preds))
    assert preds.shape == (cfg.batch, cfg.seq_len, cfg.vocab_dim)
    assert loss.shape == ()
    assert bool(jnp.isfinite(loss))
    print("KERNEL_OK")
</pallas_src>

<mosaic_0001>
module attributes {stable_mosaic.version = 11 : i64} {
  func.func @_embed_kernel(%arg0: i32, %arg1: memref<2x768xf32, #tpu.memory_space<vmem>>, %arg2: memref<2x7x128xf32, #tpu.memory_space<vmem>>, %arg3: memref<2x8x128xf32, #tpu.memory_space<vmem>>, %arg4: memref<16x128xf32, #tpu.memory_space<vmem>>, %arg5: memref<768x128xbf16, #tpu.memory_space<vmem>>, %arg6: memref<1x128xf32, #tpu.memory_space<vmem>>, %arg7: memref<128x128xbf16, #tpu.memory_space<vmem>>, %arg8: memref<1x128xf32, #tpu.memory_space<vmem>>, %arg9: memref<128x128xbf16, #tpu.memory_space<vmem>>, %arg10: memref<1x128xf32, #tpu.memory_space<vmem>>, %arg11: memref<2x16x128xf32, #tpu.memory_space<vmem>>, %arg12: memref<2x8x128xf32, #tpu.memory_space<vmem>>) attributes {dimension_semantics = [#tpu.dimension_semantics<arbitrary>], iteration_bounds = array<i64: 1>, scalar_prefetch = 0 : i64, scratch_operands = 0 : i64, tpu.core_type = #tpu.core_type<tc>, window_params = [{pipeline_mode = #tpu.pipeline_mode<synchronous>, transform_indices = @transform_0, window_bounds = array<i64: 2, 768>}, {pipeline_mode = #tpu.pipeline_mode<synchronous>, transform_indices = @transform_1, window_bounds = array<i64: 2, 7, 128>}, {pipeline_mode = #tpu.pipeline_mode<synchronous>, transform_indices = @transform_2, window_bounds = array<i64: 2, 8, 128>}, {pipeline_mode = #tpu.pipeline_mode<synchronous>, transform_indices = @transform_3, window_bounds = array<i64: 16, 128>}, {pipeline_mode = #tpu.pipeline_mode<synchronous>, transform_indices = @transform_4, window_bounds = array<i64: 768, 128>}, {pipeline_mode = #tpu.pipeline_mode<synchronous>, transform_indices = @transform_5, window_bounds = array<i64: 1, 128>}, {pipeline_mode = #tpu.pipeline_mode<synchronous>, transform_indices = @transform_6, window_bounds = array<i64: 128, 128>}, {pipeline_mode = #tpu.pipeline_mode<synchronous>, transform_indices = @transform_7, window_bounds = array<i64: 1, 128>}, {pipeline_mode = #tpu.pipeline_mode<synchronous>, transform_indices = @transform_8, window_bounds = array<i64: 128, 128>}, {pipeline_mode = #tpu.pipeline_mode<synchronous>, transform_indices = @transform_9, window_bounds = array<i64: 1, 128>}, {pipeline_mode = #tpu.pipeline_mode<synchronous>, transform_indices = @transform_10, window_bounds = array<i64: 2, 16, 128>}, {pipeline_mode = #tpu.pipeline_mode<synchronous>, transform_indices = @transform_11, window_bounds = array<i64: 2, 8, 128>}]} {
    %c0 = arith.constant 0 : index
    %c0_0 = arith.constant 0 : index
    %0 = vector.load %arg1[%c0, %c0_0] : memref<2x768xf32, #tpu.memory_space<vmem>>, vector<2x768xf32>
    %1 = arith.truncf %0 : vector<2x768xf32> to vector<2x768xbf16>
    %c0_1 = arith.constant 0 : index
    %c0_2 = arith.constant 0 : index
    %2 = vector.load %arg5[%c0_1, %c0_2] : memref<768x128xbf16, #tpu.memory_space<vmem>>, vector<768x128xbf16>
    %cst = arith.constant dense<0.000000e+00> : vector<2x128xf32>
    %3 = tpu.matmul %1, %2, %cst {dimension_numbers = #tpu.dot_dimension_numbers<[1], [0], [0], [1], [0, 0, 1, 1], [], []>} : vector<2x768xbf16>, vector<768x128xbf16>, vector<2x128xf32> -> vector<2x128xf32>
    %c0_3 = arith.constant 0 : index
    %c0_4 = arith.constant 0 : index
    %4 = vector.load %arg6[%c0_3, %c0_4] : memref<1x128xf32, #tpu.memory_space<vmem>>, vector<1x128xf32>
    %5 = vector.broadcast %4 : vector<1x128xf32> to vector<2x128xf32>
    %6 = arith.addf %3, %5 : vector<2x128xf32>
    %7 = arith.truncf %6 : vector<2x128xf32> to vector<2x128xbf16>
    %c0_5 = arith.constant 0 : index
    %c0_6 = arith.constant 0 : index
    %8 = vector.load %arg7[%c0_5, %c0_6] : memref<128x128xbf16, #tpu.memory_space<vmem>>, vector<128x128xbf16>
    %cst_7 = arith.constant dense<0.000000e+00> : vector<2x128xf32>
    %9 = tpu.matmul %7, %8, %cst_7 {dimension_numbers = #tpu.dot_dimension_numbers<[1], [0], [0], [1], [0, 0, 1, 1], [], []>} : vector<2x128xbf16>, vector<128x128xbf16>, vector<2x128xf32> -> vector<2x128xf32>
    %c0_8 = arith.constant 0 : index
    %c0_9 = arith.constant 0 : index
    %10 = vector.load %arg8[%c0_8, %c0_9] : memref<1x128xf32, #tpu.memory_space<vmem>>, vector<1x128xf32>
    %11 = vector.broadcast %10 : vector<1x128xf32> to vector<2x128xf32>
    %12 = arith.addf %9, %11 : vector<2x128xf32>
    %c0_10 = arith.constant 0 : index
    %c0_11 = arith.constant 0 : index
    %c0_12 = arith.constant 0 : index
    %13 = vector.load %arg2[%c0_10, %c0_11, %c0_12] : memref<2x7x128xf32, #tpu.memory_space<vmem>>, vector<2x7x128xf32>
    %14 = vector.shape_cast %13 : vector<2x7x128xf32> to vector<14x128xf32>
    %15 = arith.truncf %14 : vector<14x128xf32> to vector<14x128xbf16>
    %c0_13 = arith.constant 0 : index
    %c0_14 = arith.constant 0 : index
    %16 = vector.load %arg9[%c0_13, %c0_14] : memref<128x128xbf16, #tpu.memory_space<vmem>>, vector<128x128xbf16>
    %cst_15 = arith.constant dense<0.000000e+00> : vector<14x128xf32>
    %17 = tpu.matmul %15, %16, %cst_15 {dimension_numbers = #tpu.dot_dimension_numbers<[1], [0], [0], [1], [0, 0, 1, 1], [], []>} : vector<14x128xbf16>, vector<128x128xbf16>, vector<14x128xf32> -> vector<14x128xf32>
    %c0_16 = arith.constant 0 : index
    %c0_17 = arith.constant 0 : index
    %18 = vector.load %arg10[%c0_16, %c0_17] : memref<1x128xf32, #tpu.memory_space<vmem>>, vector<1x128xf32>
    %19 = vector.broadcast %18 : vector<1x128xf32> to vector<14x128xf32>
    %20 = arith.addf %17, %19 : vector<14x128xf32>
    %21 = vector.shape_cast %20 : vector<14x128xf32> to vector<2x7x128xf32>
    %c0_18 = arith.constant 0 : index
    %c0_19 = arith.constant 0 : index
    %22 = vector.load %arg4[%c0_18, %c0_19] : memref<16x128xf32, #tpu.memory_space<vmem>>, vector<16x128xf32>
    %23 = vector.shape_cast %12 : vector<2x128xf32> to vector<2x1x128xf32>
    %24 = vector.extract_strided_slice %22 {offsets = [0, 0], sizes = [1, 128], strides = [1, 1]} : vector<16x128xf32> to vector<1x128xf32>
    %25 = vector.shape_cast %24 : vector<1x128xf32> to vector<1x1x128xf32>
    %26 = vector.broadcast %25 : vector<1x1x128xf32> to vector<2x1x128xf32>
    %27 = arith.addf %23, %26 : vector<2x1x128xf32>
    %28 = vector.extract_strided_slice %22 {offsets = [1, 0], sizes = [7, 128], strides = [1, 1]} : vector<16x128xf32> to vector<7x128xf32>
    %29 = vector.shape_cast %28 : vector<7x128xf32> to vector<1x7x128xf32>
    %30 = vector.broadcast %29 : vector<1x7x128xf32> to vector<2x7x128xf32>
    %31 = arith.addf %21, %30 : vector<2x7x128xf32>
    %c0_20 = arith.constant 0 : index
    %c0_21 = arith.constant 0 : index
    %c0_22 = arith.constant 0 : index
    %32 = vector.load %arg12[%c0_20, %c0_21, %c0_22] : memref<2x8x128xf32, #tpu.memory_space<vmem>>, vector<2x1x128xf32>
    tpu.vector_store %arg12[%c0_20, %c0_21, %c0_22], %27 {strides = array<i32>} : memref<2x8x128xf32, #tpu.memory_space<vmem>>, vector<2x1x128xf32>,
    %c0_23 = arith.constant 0 : index
    %c1 = arith.constant 1 : index
    %c0_24 = arith.constant 0 : index
    %33 = vector.load %arg12[%c0_23, %c1, %c0_24] : memref<2x8x128xf32, #tpu.memory_space<vmem>>, vector<2x7x128xf32>
    tpu.vector_store %arg12[%c0_23, %c1, %c0_24], %31 {strides = array<i32>} : memref<2x8x128xf32, #tpu.memory_space<vmem>>, vector<2x7x128xf32>,
    %c0_25 = arith.constant 0 : index
    %c0_26 = arith.constant 0 : index
    %c0_27 = arith.constant 0 : index
    %34 = vector.load %arg11[%c0_25, %c0_26, %c0_27] : memref<2x16x128xf32, #tpu.memory_space<vmem>>, vector<2x1x128xf32>
    tpu.vector_store %arg11[%c0_25, %c0_26, %c0_27], %27 {strides = array<i32>} : memref<2x16x128xf32, #tpu.memory_space<vmem>>, vector<2x1x128xf32>,
    %c0_28 = arith.constant 0 : index
    %c1_29 = arith.constant 1 : index
    %c0_30 = arith.constant 0 : index
    %35 = vector.load %arg11[%c0_28, %c1_29, %c0_30] : memref<2x16x128xf32, #tpu.memory_space<vmem>>, vector<2x7x128xf32>
    tpu.vector_store %arg11[%c0_28, %c1_29, %c0_30], %31 {strides = array<i32>} : memref<2x16x128xf32, #tpu.memory_space<vmem>>, vector<2x7x128xf32>,
    %c0_31 = arith.constant 0 : index
    %c0_32 = arith.constant 0 : index
    %c0_33 = arith.constant 0 : index
    %36 = vector.load %arg3[%c0_31, %c0_32, %c0_33] : memref<2x8x128xf32, #tpu.memory_space<vmem>>, vector<2x8x128xf32>
    %37 = vector.extract_strided_slice %22 {offsets = [8, 0], sizes = [8, 128], strides = [1, 1]} : vector<16x128xf32> to vector<8x128xf32>
    %38 = vector.shape_cast %37 : vector<8x128xf32> to vector<1x8x128xf32>
    %39 = vector.broadcast %38 : vector<1x8x128xf32> to vector<2x8x128xf32>
    %40 = arith.addf %36, %39 : vector<2x8x128xf32>
    %c0_34 = arith.constant 0 : index
    %c8 = arith.constant 8 : index
    %c0_35 = arith.constant 0 : index
    %41 = vector.load %arg11[%c0_34, %c8, %c0_35] : memref<2x16x128xf32, #tpu.memory_space<vmem>>, vector<2x8x128xf32>
    tpu.vector_store %arg11[%c0_34, %c8, %c0_35], %40 {strides = array<i32>} : memref<2x16x128xf32, #tpu.memory_space<vmem>>, vector<2x8x128xf32>,
    return
  }
  func.func @transform_0(%arg0: i32) -> (i32, i32) {
    %c0_i32 = arith.constant 0 : i32
    %c0_i32_0 = arith.constant 0 : i32
    %c0_i32_1 = arith.constant 0 : i32
    return %c0_i32, %c0_i32_0 : i32, i32
  }
  func.func @transform_1(%arg0: i32) -> (i32, i32, i32) {
    %c0_i32 = arith.constant 0 : i32
    %c0_i32_0 = arith.constant 0 : i32
    %c0_i32_1 = arith.constant 0 : i32
    %c0_i32_2 = arith.constant 0 : i32
    return %c0_i32, %c0_i32_0, %c0_i32_1 : i32, i32, i32
  }
  func.func @transform_2(%arg0: i32) -> (i32, i32, i32) {
    %c0_i32 = arith.constant 0 : i32
    %c0_i32_0 = arith.constant 0 : i32
    %c0_i32_1 = arith.constant 0 : i32
    %c0_i32_2 = arith.constant 0 : i32
    return %c0_i32, %c0_i32_0, %c0_i32_1 : i32, i32, i32
  }
  func.func @transform_3(%arg0: i32) -> (i32, i32) {
    %c0_i32 = arith.constant 0 : i32
    %c0_i32_0 = arith.constant 0 : i32
    %c0_i32_1 = arith.constant 0 : i32
    return %c0_i32, %c0_i32_0 : i32, i32
  }
  func.func @transform_4(%arg0: i32) -> (i32, i32) {
    %c0_i32 = arith.constant 0 : i32
    %c0_i32_0 = arith.constant 0 : i32
    %c0_i32_1 = arith.constant 0 : i32
    return %c0_i32, %c0_i32_0 : i32, i32
  }
  func.func @transform_5(%arg0: i32) -> (i32, i32) {
    %c0_i32 = arith.constant 0 : i32
    %c0_i32_0 = arith.constant 0 : i32
    %c0_i32_1 = arith.constant 0 : i32
    return %c0_i32, %c0_i32_0 : i32, i32
  }
  func.func @transform_6(%arg0: i32) -> (i32, i32) {
    %c0_i32 = arith.constant 0 : i32
    %c0_i32_0 = arith.constant 0 : i32
    %c0_i32_1 = arith.constant 0 : i32
    return %c0_i32, %c0_i32_0 : i32, i32
  }
  func.func @transform_7(%arg0: i32) -> (i32, i32) {
    %c0_i32 = arith.constant 0 : i32
    %c0_i32_0 = arith.constant 0 : i32
    %c0_i32_1 = arith.constant 0 : i32
    return %c0_i32, %c0_i32_0 : i32, i32
  }
  func.func @transform_8(%arg0: i32) -> (i32, i32) {
    %c0_i32 = arith.constant 0 : i32
    %c0_i32_0 = arith.constant 0 : i32
    %c0_i32_1 = arith.constant 0 : i32
    return %c0_i32, %c0_i32_0 : i32, i32
  }
  func.func @transform_9(%arg0: i32) -> (i32, i32) {
    %c0_i32 = arith.constant 0 : i32
    %c0_i32_0 = arith.constant 0 : i32
    %c0_i32_1 = arith.constant 0 : i32
    return %c0_i32, %c0_i32_0 : i32, i32
  }
  func.func @transform_10(%arg0: i32) -> (i32, i32, i32) {
    %c0_i32 = arith.constant 0 : i32
    %c0_i32_0 = arith.constant 0 : i32
    %c0_i32_1 = arith.constant 0 : i32
    %c0_i32_2 = arith.constant 0 : i32
    return %c0_i32, %c0_i32_0, %c0_i32_1 : i32, i32, i32
  }
  func.func @transform_11(%arg0: i32) -> (i32, i32, i32) {
    %c0_i32 = arith.constant 0 : i32
    %c0_i32_0 = arith.constant 0 : i32
    %c0_i32_1 = arith.constant 0 : i32
    %c0_i32_2 = arith.constant 0 : i32
    return %c0_i32, %c0_i32_0, %c0_i32_1 : i32, i32, i32
  }
}

module attributes {stable_mosaic.version = 11 : i64} {
  func.func @_head_kernel(%arg0: i32, %arg1: memref<2x8xi32, #tpu.memory_space<smem>>, %arg2: memref<1x16x128xf32, #tpu.memory_space<vmem>>, %arg3: memref<2x128xf32, #tpu.memory_space<vmem>>, %arg4: memref<128x128xbf16, #tpu.memory_space<vmem>>, %arg5: memref<1x128xf32, #tpu.memory_space<vmem>>, %arg6: memref<1x8x128xf32, #tpu.memory_space<vmem>>, %arg7: memref<1x1x128xf32, #tpu.memory_space<vmem>>) attributes {dimension_semantics = [#tpu.dimension_semantics<parallel>], iteration_bounds = array<i64: 2>, scalar_prefetch = 1 : i64, scratch_operands = 0 : i64, tpu.core_type = #tpu.core_type<tc>, window_params = [{transform_indices = @transform_0, window_bounds = array<i64: 1, 16, 128>}, {pipeline_mode = #tpu.pipeline_mode<synchronous>, transform_indices = @transform_1, window_bounds = array<i64: 2, 128>}, {pipeline_mode = #tpu.pipeline_mode<synchronous>, transform_indices = @transform_2, window_bounds = array<i64: 128, 128>}, {pipeline_mode = #tpu.pipeline_mode<synchronous>, transform_indices = @transform_3, window_bounds = array<i64: 1, 128>}, {transform_indices = @transform_4, window_bounds = array<i64: 1, 8, 128>}, {transform_indices = @transform_5, window_bounds = array<i64: 1, 1, 128>}]} {
    %c0 = arith.constant 0 : index
    %c8 = arith.constant 8 : index
    %c0_0 = arith.constant 0 : index
    %0 = vector.load %arg2[%c0, %c8, %c0_0] : memref<1x16x128xf32, #tpu.memory_space<vmem>>, vector<1x8x128xf32>
    %1 = vector.shape_cast %0 : vector<1x8x128xf32> to vector<8x128xf32>
    %c0_1 = arith.constant 0 : index
    %c0_2 = arith.constant 0 : index
    %2 = vector.load %arg3[%c0_1, %c0_2] : memref<2x128xf32, #tpu.memory_space<vmem>>, vector<1x128xf32>
    %c1 = arith.constant 1 : index
    %c0_3 = arith.constant 0 : index
    %3 = vector.load %arg3[%c1, %c0_3] : memref<2x128xf32, #tpu.memory_space<vmem>>, vector<1x128xf32>
    %cst = arith.constant dense<0.000000e+00> : vector<8xf32>
    %4 = vector.multi_reduction <add>, %1, %cst [1] : vector<8x128xf32> to vector<8xf32>
    %5 = vector.shape_cast %4 : vector<8xf32> to vector<8x1xf32>
    %cst_4 = arith.constant 1.280000e+02 : f32
    %6 = vector.broadcast %cst_4 : f32 to vector<8x1xf32>
    %7 = arith.divf %5, %6 : vector<8x1xf32>
    %8 = vector.broadcast %7 : vector<8x1xf32> to vector<8x128xf32>
    %9 = arith.subf %1, %8 : vector<8x128xf32>
    %10 = arith.mulf %9, %9 : vector<8x128xf32>
    %cst_5 = arith.constant dense<0.000000e+00> : vector<8xf32>
    %11 = vector.multi_reduction <add>, %10, %cst_5 [1] : vector<8x128xf32> to vector<8xf32>
    %12 = vector.shape_cast %11 : vector<8xf32> to vector<8x1xf32>
    %cst_6 = arith.constant 1.280000e+02 : f32
    %13 = vector.broadcast %cst_6 : f32 to vector<8x1xf32>
    %14 = arith.divf %12, %13 : vector<8x1xf32>
    %15 = vector.broadcast %7 : vector<8x1xf32> to vector<8x128xf32>
    %16 = arith.subf %1, %15 : vector<8x128xf32>
    %cst_7 = arith.constant 9.99999974E-6 : f32
    %17 = vector.broadcast %cst_7 : f32 to vector<8x1xf32>
    %18 = arith.addf %14, %17 : vector<8x1xf32>
    %19 = math.rsqrt %18 : vector<8x1xf32>
    %20 = vector.broadcast %19 : vector<8x1xf32> to vector<8x128xf32>
    %21 = arith.mulf %16, %20 : vector<8x128xf32>
    %22 = vector.broadcast %2 : vector<1x128xf32> to vector<8x128xf32>
    %23 = arith.mulf %21, %22 : vector<8x128xf32>
    %24 = vector.broadcast %3 : vector<1x128xf32> to vector<8x128xf32>
    %25 = arith.addf %23, %24 : vector<8x128xf32>
    %26 = arith.truncf %25 : vector<8x128xf32> to vector<8x128xbf16>
    %c0_8 = arith.constant 0 : index
    %c0_9 = arith.constant 0 : index
    %27 = vector.load %arg4[%c0_8, %c0_9] : memref<128x128xbf16, #tpu.memory_space<vmem>>, vector<128x128xbf16>
    %cst_10 = arith.constant dense<0.000000e+00> : vector<8x128xf32>
    %28 = tpu.matmul %26, %27, %cst_10 {dimension_numbers = #tpu.dot_dimension_numbers<[1], [0], [0], [1], [0, 0, 1, 1], [], []>} : vector<8x128xbf16>, vector<128x128xbf16>, vector<8x128xf32> -> vector<8x128xf32>
    %c0_11 = arith.constant 0 : index
    %c0_12 = arith.constant 0 : index
    %29 = vector.load %arg5[%c0_11, %c0_12] : memref<1x128xf32, #tpu.memory_space<vmem>>, vector<1x128xf32>
    %30 = vector.broadcast %29 : vector<1x128xf32> to vector<8x128xf32>
    %31 = arith.addf %28, %30 : vector<8x128xf32>
    %c0_13 = arith.constant 0 : index
    %c0_14 = arith.constant 0 : index
    %c0_15 = arith.constant 0 : index
    %32 = vector.load %arg6[%c0_13, %c0_14, %c0_15] : memref<1x8x128xf32, #tpu.memory_space<vmem>>, vector<1x8x128xf32>
    %33 = vector.shape_cast %32 : vector<1x8x128xf32> to vector<8x128xf32>
    %34 = vector.shape_cast %31 : vector<8x128xf32> to vector<1x8x128xf32>
    tpu.vector_store %arg6[%c0_13, %c0_14, %c0_15], %34 {strides = array<i32>} : memref<1x8x128xf32, #tpu.memory_space<vmem>>, vector<1x8x128xf32>,
    %cst_16 = arith.constant dense<0xFF800000> : vector<8xf32>
    %35 = vector.multi_reduction <maximumf>, %31, %cst_16 [1] : vector<8x128xf32> to vector<8xf32>
    %36 = vector.shape_cast %35 : vector<8xf32> to vector<8x1xf32>
    %37 = vector.broadcast %36 : vector<8x1xf32> to vector<8x128xf32>
    %38 = arith.subf %31, %37 : vector<8x128xf32>
    %39 = math.exp %38 : vector<8x128xf32>
    %cst_17 = arith.constant dense<0.000000e+00> : vector<8xf32>
    %40 = vector.multi_reduction <add>, %39, %cst_17 [1] : vector<8x128xf32> to vector<8xf32>
    %41 = vector.shape_cast %40 : vector<8xf32> to vector<8x1xf32>
    %42 = math.log %41 : vector<8x1xf32>
    %43 = arith.addf %42, %36 : vector<8x1xf32>
    %44 = tpu.iota {dimensions = array<i32: 1>} : vector<1x128xi32>
    %45 = arith.index_cast %arg0 : i32 to index
    %c0_18 = arith.constant 0 : index
    %46 = memref.load %arg1[%45, %c0_18] : memref<2x8xi32, #tpu.memory_space<smem>>
    %47 = vector.broadcast %46 : i32 to vector<1x128xi32>
    %48 = arith.cmpi eq, %44, %47 : vector<1x128xi32>
    %49 = vector.extract_strided_slice %31 {offsets = [0, 0], sizes = [1, 128], strides = [1, 1]} : vector<8x128xf32> to vector<1x128xf32>
    %cst_19 = arith.constant 0.000000e+00 : f32
    %50 = vector.broadcast %cst_19 : f32 to vector<1x128xf32>
    %51 = arith.select %48, %49, %50 : vector<1x128xi1>, vector<1x128xf32>
    %52 = vector.shape_cast %51 : vector<1x128xf32> to vector<1x1x128xf32>
    %cst_20 = arith.constant dense<0.000000e+00> : vector<1xf32>
    %53 = vector.multi_reduction <add>, %52, %cst_20 [1, 2] : vector<1x1x128xf32> to vector<1xf32>
    %54 = vector.shape_cast %53 : vector<1xf32> to vector<1x1x1xf32>
    %55 = vector.extract %54[0, 0, 0] : f32 from vector<1x1x1xf32>
    %cst_21 = arith.constant 0.000000e+00 : f32
    %56 = arith.addf %cst_21, %55 : f32
    %57 = arith.index_cast %arg0 : i32 to index
    %c1_22 = arith.constant 1 : index
    %58 = memref.load %arg1[%57, %c1_22] : memref<2x8xi32, #tpu.memory_space<smem>>
    %59 = vector.broadcast %58 : i32 to vector<1x128xi32>
    %60 = arith.cmpi eq, %44, %59 : vector<1x128xi32>
    %61 = vector.extract_strided_slice %31 {offsets = [1, 0], sizes = [1, 128], strides = [1, 1]} : vector<8x128xf32> to vector<1x128xf32>
    %cst_23 = arith.constant 0.000000e+00 : f32
    %62 = vector.broadcast %cst_23 : f32 to vector<1x128xf32>
    %63 = arith.select %60, %61, %62 : vector<1x128xi1>, vector<1x128xf32>
    %64 = vector.shape_cast %63 : vector<1x128xf32> to vector<1x1x128xf32>
    %cst_24 = arith.constant dense<0.000000e+00> : vector<1xf32>
    %65 = vector.multi_reduction <add>, %64, %cst_24 [1, 2] : vector<1x1x128xf32> to vector<1xf32>
    %66 = vector.shape_cast %65 : vector<1xf32> to vector<1x1x1xf32>
    %67 = vector.extract %66[0, 0, 0] : f32 from vector<1x1x1xf32>
    %68 = arith.addf %56, %67 : f32
    %69 = arith.index_cast %arg0 : i32 to index
    %c2 = arith.constant 2 : index
    %70 = memref.load %arg1[%69, %c2] : memref<2x8xi32, #tpu.memory_space<smem>>
    %71 = vector.broadcast %70 : i32 to vector<1x128xi32>
    %72 = arith.cmpi eq, %44, %71 : vector<1x128xi32>
    %73 = vector.extract_strided_slice %31 {offsets = [2, 0], sizes = [1, 128], strides = [1, 1]} : vector<8x128xf32> to vector<1x128xf32>
    %cst_25 = arith.constant 0.000000e+00 : f32
    %74 = vector.broadcast %cst_25 : f32 to vector<1x128xf32>
    %75 = arith.select %72, %73, %74 : vector<1x128xi1>, vector<1x128xf32>
    %76 = vector.shape_cast %75 : vector<1x128xf32> to vector<1x1x128xf32>
    %cst_26 = arith.constant dense<0.000000e+00> : vector<1xf32>
    %77 = vector.multi_reduction <add>, %76, %cst_26 [1, 2] : vector<1x1x128xf32> to vector<1xf32>
    %78 = vector.shape_cast %77 : vector<1xf32> to vector<1x1x1xf32>
    %79 = vector.extract %78[0, 0, 0] : f32 from vector<1x1x1xf32>
    %80 = arith.addf %68, %79 : f32
    %81 = arith.index_cast %arg0 : i32 to index
    %c3 = arith.constant 3 : index
    %82 = memref.load %arg1[%81, %c3] : memref<2x8xi32, #tpu.memory_space<smem>>
    %83 = vector.broadcast %82 : i32 to vector<1x128xi32>
    %84 = arith.cmpi eq, %44, %83 : vector<1x128xi32>
    %85 = vector.extract_strided_slice %31 {offsets = [3, 0], sizes = [1, 128], strides = [1, 1]} : vector<8x128xf32> to vector<1x128xf32>
    %cst_27 = arith.constant 0.000000e+00 : f32
    %86 = vector.broadcast %cst_27 : f32 to vector<1x128xf32>
    %87 = arith.select %84, %85, %86 : vector<1x128xi1>, vector<1x128xf32>
    %88 = vector.shape_cast %87 : vector<1x128xf32> to vector<1x1x128xf32>
    %cst_28 = arith.constant dense<0.000000e+00> : vector<1xf32>
    %89 = vector.multi_reduction <add>, %88, %cst_28 [1, 2] : vector<1x1x128xf32> to vector<1xf32>
    %90 = vector.shape_cast %89 : vector<1xf32> to vector<1x1x1xf32>
    %91 = vector.extract %90[0, 0, 0] : f32 from vector<1x1x1xf32>
    %92 = arith.addf %80, %91 : f32
    %93 = arith.index_cast %arg0 : i32 to index
    %c4 = arith.constant 4 : index
    %94 = memref.load %arg1[%93, %c4] : memref<2x8xi32, #tpu.memory_space<smem>>
    %95 = vector.broadcast %94 : i32 to vector<1x128xi32>
    %96 = arith.cmpi eq, %44, %95 : vector<1x128xi32>
    %97 = vector.extract_strided_slice %31 {offsets = [4, 0], sizes = [1, 128], strides = [1, 1]} : vector<8x128xf32> to vector<1x128xf32>
    %cst_29 = arith.constant 0.000000e+00 : f32
    %98 = vector.broadcast %cst_29 : f32 to vector<1x128xf32>
    %99 = arith.select %96, %97, %98 : vector<1x128xi1>, vector<1x128xf32>
    %100 = vector.shape_cast %99 : vector<1x128xf32> to vector<1x1x128xf32>
    %cst_30 = arith.constant dense<0.000000e+00> : vector<1xf32>
    %101 = vector.multi_reduction <add>, %100, %cst_30 [1, 2] : vector<1x1x128xf32> to vector<1xf32>
    %102 = vector.shape_cast %101 : vector<1xf32> to vector<1x1x1xf32>
    %103 = vector.extract %102[0, 0, 0] : f32 from vector<1x1x1xf32>
    %104 = arith.addf %92, %103 : f32
    %105 = arith.index_cast %arg0 : i32 to index
    %c5 = arith.constant 5 : index
    %106 = memref.load %arg1[%105, %c5] : memref<2x8xi32, #tpu.memory_space<smem>>
    %107 = vector.broadcast %106 : i32 to vector<1x128xi32>
    %108 = arith.cmpi eq, %44, %107 : vector<1x128xi32>
    %109 = vector.extract_strided_slice %31 {offsets = [5, 0], sizes = [1, 128], strides = [1, 1]} : vector<8x128xf32> to vector<1x128xf32>
    %cst_31 = arith.constant 0.000000e+00 : f32
    %110 = vector.broadcast %cst_31 : f32 to vector<1x128xf32>
    %111 = arith.select %108, %109, %110 : vector<1x128xi1>, vector<1x128xf32>
    %112 = vector.shape_cast %111 : vector<1x128xf32> to vector<1x1x128xf32>
    %cst_32 = arith.constant dense<0.000000e+00> : vector<1xf32>
    %113 = vector.multi_reduction <add>, %112, %cst_32 [1, 2] : vector<1x1x128xf32> to vector<1xf32>
    %114 = vector.shape_cast %113 : vector<1xf32> to vector<1x1x1xf32>
    %115 = vector.extract %114[0, 0, 0] : f32 from vector<1x1x1xf32>
    %116 = arith.addf %104, %115 : f32
    %117 = arith.index_cast %arg0 : i32 to index
    %c6 = arith.constant 6 : index
    %118 = memref.load %arg1[%117, %c6] : memref<2x8xi32, #tpu.memory_space<smem>>
    %119 = vector.broadcast %118 : i32 to vector<1x128xi32>
    %120 = arith.cmpi eq, %44, %119 : vector<1x128xi32>
    %121 = vector.extract_strided_slice %31 {offsets = [6, 0], sizes = [1, 128], strides = [1, 1]} : vector<8x128xf32> to vector<1x128xf32>
    %cst_33 = arith.constant 0.000000e+00 : f32
    %122 = vector.broadcast %cst_33 : f32 to vector<1x128xf32>
    %123 = arith.select %120, %121, %122 : vector<1x128xi1>, vector<1x128xf32>
    %124 = vector.shape_cast %123 : vector<1x128xf32> to vector<1x1x128xf32>
    %cst_34 = arith.constant dense<0.000000e+00> : vector<1xf32>
    %125 = vector.multi_reduction <add>, %124, %cst_34 [1, 2] : vector<1x1x128xf32> to vector<1xf32>
    %126 = vector.shape_cast %125 : vector<1xf32> to vector<1x1x1xf32>
    %127 = vector.extract %126[0, 0, 0] : f32 from vector<1x1x1xf32>
    %128 = arith.addf %116, %127 : f32
    %129 = arith.index_cast %arg0 : i32 to index
    %c7 = arith.constant 7 : index
    %130 = memref.load %arg1[%129, %c7] : memref<2x8xi32, #tpu.memory_space<smem>>
    %131 = vector.broadcast %130 : i32 to vector<1x128xi32>
    %132 = arith.cmpi eq, %44, %131 : vector<1x128xi32>
    %133 = vector.extract_strided_slice %31 {offsets = [7, 0], sizes = [1, 128], strides = [1, 1]} : vector<8x128xf32> to vector<1x128xf32>
    %cst_35 = arith.constant 0.000000e+00 : f32
    %134 = vector.broadcast %cst_35 : f32 to vector<1x128xf32>
    %135 = arith.select %132, %133, %134 : vector<1x128xi1>, vector<1x128xf32>
    %136 = vector.shape_cast %135 : vector<1x128xf32> to vector<1x1x128xf32>
    %cst_36 = arith.constant dense<0.000000e+00> : vector<1xf32>
    %137 = vector.multi_reduction <add>, %136, %cst_36 [1, 2] : vector<1x1x128xf32> to vector<1xf32>
    %138 = vector.shape_cast %137 : vector<1xf32> to vector<1x1x1xf32>
    %139 = vector.extract %138[0, 0, 0] : f32 from vector<1x1x1xf32>
    %140 = arith.addf %128, %139 : f32
    %141 = vector.shape_cast %43 : vector<8x1xf32> to vector<1x8x1xf32>
    %cst_37 = arith.constant dense<0.000000e+00> : vector<1xf32>
    %142 = vector.multi_reduction <add>, %141, %cst_37 [1, 2] : vector<1x8x1xf32> to vector<1xf32>
    %143 = vector.shape_cast %142 : vector<1xf32> to vector<1x1x1xf32>
    %144 = vector.extract %143[0, 0, 0] : f32 from vector<1x1x1xf32>
    %145 = arith.subf %144, %140 : f32
    %146 = vector.broadcast %145 : f32 to vector<1x1x128xf32>
    %c0_38 = arith.constant 0 : index
    %c0_39 = arith.constant 0 : index
    %c0_40 = arith.constant 0 : index
    %147 = vector.load %arg7[%c0_38, %c0_39, %c0_40] : memref<1x1x128xf32, #tpu.memory_space<vmem>>, vector<1x1x128xf32>
    tpu.vector_store %arg7[%c0_38, %c0_39, %c0_40], %146 {strides = array<i32>} : memref<1x1x128xf32, #tpu.memory_space<vmem>>, vector<1x1x128xf32>,
    return
  }
  func.func @transform_0(%arg0: i32, %arg1: memref<2x8xi32, #tpu.memory_space<smem>>) -> (i32, i32, i32) {
    %c0_i32 = arith.constant 0 : i32
    %c0_i32_0 = arith.constant 0 : i32
    %c0_i32_1 = arith.constant 0 : i32
    return %arg0, %c0_i32, %c0_i32_0 : i32, i32, i32
  }
  func.func @transform_1(%arg0: i32, %arg1: memref<2x8xi32, #tpu.memory_space<smem>>) -> (i32, i32) {
    %c0_i32 = arith.constant 0 : i32
    %c0_i32_0 = arith.constant 0 : i32
    %c0_i32_1 = arith.constant 0 : i32
    return %c0_i32, %c0_i32_0 : i32, i32
  }
  func.func @transform_2(%arg0: i32, %arg1: memref<2x8xi32, #tpu.memory_space<smem>>) -> (i32, i32) {
    %c0_i32 = arith.constant 0 : i32
    %c0_i32_0 = arith.constant 0 : i32
    %c0_i32_1 = arith.constant 0 : i32
    return %c0_i32, %c0_i32_0 : i32, i32
  }
  func.func @transform_3(%arg0: i32, %arg1: memref<2x8xi32, #tpu.memory_space<smem>>) -> (i32, i32) {
    %c0_i32 = arith.constant 0 : i32
    %c0_i32_0 = arith.constant 0 : i32
    %c0_i32_1 = arith.constant 0 : i32
    return %c0_i32, %c0_i32_0 : i32, i32
  }
  func.func @transform_4(%arg0: i32, %arg1: memref<2x8xi32, #tpu.memory_space<smem>>) -> (i32, i32, i32) {
    %c0_i32 = arith.constant 0 : i32
    %c0_i32_0 = arith.constant 0 : i32
    %c0_i32_1 = arith.constant 0 : i32
    return %arg0, %c0_i32, %c0_i32_0 : i32, i32, i32
  }
  func.func @transform_5(%arg0: i32, %arg1: memref<2x8xi32, #tpu.memory_space<smem>>) -> (i32, i32, i32) {
    %c0_i32 = arith.constant 0 : i32
    %c0_i32_0 = arith.constant 0 : i32
    %c0_i32_1 = arith.constant 0 : i32
    return %arg0, %c0_i32, %c0_i32_0 : i32, i32, i32
  }
}

module attributes {stable_mosaic.version = 11 : i64} {
  func.func @_layers_kernel(%arg0: i32, %arg1: i32, %arg2: memref<1x16x128xf32, #tpu.memory_space<vmem>>, %arg3: memref<1x8x128xf32, #tpu.memory_space<vmem>>, %arg4: memref<16x16xf32, #tpu.memory_space<vmem>>, %arg5: memref<1x9x128xf32, #tpu.memory_space<vmem>>, %arg6: memref<1x3x128x128xbf16, #tpu.memory_space<vmem>>, %arg7: memref<1x128x128xbf16, #tpu.memory_space<vmem>>, %arg8: memref<1x128x512xbf16, #tpu.memory_space<vmem>>, %arg9: memref<1x1x512xf32, #tpu.memory_space<vmem>>, %arg10: memref<1x512x128xbf16, #tpu.memory_space<vmem>>, %arg11: memref<1x16x128xf32, #tpu.memory_space<vmem>>) attributes {dimension_semantics = [#tpu.dimension_semantics<parallel>, #tpu.dimension_semantics<arbitrary>], iteration_bounds = array<i64: 2, 2>, scalar_prefetch = 0 : i64, scratch_operands = 0 : i64, tpu.core_type = #tpu.core_type<tc>, window_params = [{transform_indices = @transform_0, window_bounds = array<i64: 1, 16, 128>}, {transform_indices = @transform_1, window_bounds = array<i64: 1, 8, 128>}, {pipeline_mode = #tpu.pipeline_mode<synchronous>, transform_indices = @transform_2, window_bounds = array<i64: 16, 16>}, {transform_indices = @transform_3, window_bounds = array<i64: 1, 9, 128>}, {transform_indices = @transform_4, window_bounds = array<i64: 1, 3, 128, 128>}, {transform_indices = @transform_5, window_bounds = array<i64: 1, 128, 128>}, {transform_indices = @transform_6, window_bounds = array<i64: 1, 128, 512>}, {transform_indices = @transform_7, window_bounds = array<i64: 1, 1, 512>}, {transform_indices = @transform_8, window_bounds = array<i64: 1, 512, 128>}, {transform_indices = @transform_9, window_bounds = array<i64: 1, 16, 128>}]} {
    %c0_i32 = arith.constant 0 : i32
    %0 = arith.cmpi eq, %arg1, %c0_i32 : i32
    %1 = arith.extui %0 : i1 to i32
    %c0_i32_0 = arith.constant 0 : i32
    %2 = arith.cmpi ne, %1, %c0_i32_0 : i32
    scf.if %2 {
      %c0_63 = arith.constant 0 : index
      %c0_64 = arith.constant 0 : index
      %c0_65 = arith.constant 0 : index
      %149 = vector.load %arg2[%c0_63, %c0_64, %c0_65] : memref<1x16x128xf32, #tpu.memory_space<vmem>>, vector<1x16x128xf32>
      %c0_66 = arith.constant 0 : index
      %c0_67 = arith.constant 0 : index
      %c0_68 = arith.constant 0 : index
      %150 = vector.load %arg11[%c0_66, %c0_67, %c0_68] : memref<1x16x128xf32, #tpu.memory_space<vmem>>, vector<1x16x128xf32>
      tpu.vector_store %arg11[%c0_66, %c0_67, %c0_68], %149 {strides = array<i32>} : memref<1x16x128xf32, #tpu.memory_space<vmem>>, vector<1x16x128xf32>,
    } else {
    }
    %c0 = arith.constant 0 : index
    %c0_1 = arith.constant 0 : index
    %c0_2 = arith.constant 0 : index
    %3 = vector.load %arg11[%c0, %c0_1, %c0_2] : memref<1x16x128xf32, #tpu.memory_space<vmem>>, vector<1x16x128xf32>
    %4 = vector.shape_cast %3 : vector<1x16x128xf32> to vector<16x128xf32>
    %c0_3 = arith.constant 0 : index
    %c0_4 = arith.constant 0 : index
    %c0_5 = arith.constant 0 : index
    %5 = vector.load %arg5[%c0_3, %c0_4, %c0_5] : memref<1x9x128xf32, #tpu.memory_space<vmem>>, vector<1x9x128xf32>
    %6 = vector.shape_cast %5 : vector<1x9x128xf32> to vector<9x128xf32>
    %7 = vector.extract_strided_slice %6 {offsets = [0, 0], sizes = [1, 128], strides = [1, 1]} : vector<9x128xf32> to vector<1x128xf32>
    %8 = vector.extract_strided_slice %6 {offsets = [1, 0], sizes = [1, 128], strides = [1, 1]} : vector<9x128xf32> to vector<1x128xf32>
    %cst = arith.constant dense<0.000000e+00> : vector<16xf32>
    %9 = vector.multi_reduction <add>, %4, %cst [1] : vector<16x128xf32> to vector<16xf32>
    %10 = vector.shape_cast %9 : vector<16xf32> to vector<16x1xf32>
    %cst_6 = arith.constant 1.280000e+02 : f32
    %11 = vector.broadcast %cst_6 : f32 to vector<16x1xf32>
    %12 = arith.divf %10, %11 : vector<16x1xf32>
    %13 = vector.broadcast %12 : vector<16x1xf32> to vector<16x128xf32>
    %14 = arith.subf %4, %13 : vector<16x128xf32>
    %15 = arith.mulf %14, %14 : vector<16x128xf32>
    %cst_7 = arith.constant dense<0.000000e+00> : vector<16xf32>
    %16 = vector.multi_reduction <add>, %15, %cst_7 [1] : vector<16x128xf32> to vector<16xf32>
    %17 = vector.shape_cast %16 : vector<16xf32> to vector<16x1xf32>
    %cst_8 = arith.constant 1.280000e+02 : f32
    %18 = vector.broadcast %cst_8 : f32 to vector<16x1xf32>
    %19 = arith.divf %17, %18 : vector<16x1xf32>
    %20 = vector.broadcast %12 : vector<16x1xf32> to vector<16x128xf32>
    %21 = arith.subf %4, %20 : vector<16x128xf32>
    %cst_9 = arith.constant 9.99999974E-6 : f32
    %22 = vector.broadcast %cst_9 : f32 to vector<16x1xf32>
    %23 = arith.addf %19, %22 : vector<16x1xf32>
    %24 = math.rsqrt %23 : vector<16x1xf32>
    %25 = vector.broadcast %24 : vector<16x1xf32> to vector<16x128xf32>
    %26 = arith.mulf %21, %25 : vector<16x128xf32>
    %27 = vector.broadcast %7 : vector<1x128xf32> to vector<16x128xf32>
    %28 = arith.mulf %26, %27 : vector<16x128xf32>
    %29 = vector.broadcast %8 : vector<1x128xf32> to vector<16x128xf32>
    %30 = arith.addf %28, %29 : vector<16x128xf32>
    %31 = arith.truncf %30 : vector<16x128xf32> to vector<16x128xbf16>
    %c0_10 = arith.constant 0 : index
    %c0_11 = arith.constant 0 : index
    %c0_12 = arith.constant 0 : index
    %c0_13 = arith.constant 0 : index
    %32 = vector.load %arg6[%c0_10, %c0_11, %c0_12, %c0_13] : memref<1x3x128x128xbf16, #tpu.memory_space<vmem>>, vector<1x1x128x128xbf16>
    %33 = vector.shape_cast %32 : vector<1x1x128x128xbf16> to vector<128x128xbf16>
    %cst_14 = arith.constant dense<0.000000e+00> : vector<16x128xf32>
    %34 = tpu.matmul %31, %33, %cst_14 {dimension_numbers = #tpu.dot_dimension_numbers<[1], [0], [0], [1], [0, 0, 1, 1], [], []>} : vector<16x128xbf16>, vector<128x128xbf16>, vector<16x128xf32> -> vector<16x128xf32>
    %35 = vector.extract_strided_slice %6 {offsets = [4, 0], sizes = [1, 128], strides = [1, 1]} : vector<9x128xf32> to vector<1x128xf32>
    %36 = vector.broadcast %35 : vector<1x128xf32> to vector<16x128xf32>
    %37 = arith.addf %34, %36 : vector<16x128xf32>
    %c0_15 = arith.constant 0 : index
    %c1 = arith.constant 1 : index
    %c0_16 = arith.constant 0 : index
    %c0_17 = arith.constant 0 : index
    %38 = vector.load %arg6[%c0_15, %c1, %c0_16, %c0_17] : memref<1x3x128x128xbf16, #tpu.memory_space<vmem>>, vector<1x1x128x128xbf16>
    %39 = vector.shape_cast %38 : vector<1x1x128x128xbf16> to vector<128x128xbf16>
    %cst_18 = arith.constant dense<0.000000e+00> : vector<16x128xf32>
    %40 = tpu.matmul %31, %39, %cst_18 {dimension_numbers = #tpu.dot_dimension_numbers<[1], [0], [0], [1], [0, 0, 1, 1], [], []>} : vector<16x128xbf16>, vector<128x128xbf16>, vector<16x128xf32> -> vector<16x128xf32>
    %41 = vector.extract_strided_slice %6 {offsets = [5, 0], sizes = [1, 128], strides = [1, 1]} : vector<9x128xf32> to vector<1x128xf32>
    %42 = vector.broadcast %41 : vector<1x128xf32> to vector<16x128xf32>
    %43 = arith.addf %40, %42 : vector<16x128xf32>
    %c0_19 = arith.constant 0 : index
    %c2 = arith.constant 2 : index
    %c0_20 = arith.constant 0 : index
    %c0_21 = arith.constant 0 : index
    %44 = vector.load %arg6[%c0_19, %c2, %c0_20, %c0_21] : memref<1x3x128x128xbf16, #tpu.memory_space<vmem>>, vector<1x1x128x128xbf16>
    %45 = vector.shape_cast %44 : vector<1x1x128x128xbf16> to vector<128x128xbf16>
    %cst_22 = arith.constant dense<0.000000e+00> : vector<16x128xf32>
    %46 = tpu.matmul %31, %45, %cst_22 {dimension_numbers = #tpu.dot_dimension_numbers<[1], [0], [0], [1], [0, 0, 1, 1], [], []>} : vector<16x128xbf16>, vector<128x128xbf16>, vector<16x128xf32> -> vector<16x128xf32>
    %47 = vector.extract_strided_slice %6 {offsets = [6, 0], sizes = [1, 128], strides = [1, 1]} : vector<9x128xf32> to vector<1x128xf32>
    %48 = vector.broadcast %47 : vector<1x128xf32> to vector<16x128xf32>
    %49 = arith.addf %46, %48 : vector<16x128xf32>
    %cst_23 = arith.constant 0.176776692 : f32
    %50 = vector.broadcast %cst_23 : f32 to vector<16x128xf32>
    %51 = arith.mulf %37, %50 : vector<16x128xf32>
    %52 = vector.shape_cast %51 : vector<16x128xf32> to vector<16x4x32xf32>
    %53 = tpu.transpose %52, [1, 0, 2] : vector<16x4x32xf32> -> vector<4x16x32xf32>
    %54 = arith.truncf %53 : vector<4x16x32xf32> to vector<4x16x32xbf16>
    %55 = vector.shape_cast %43 : vector<16x128xf32> to vector<16x4x32xf32>
    %56 = tpu.transpose %55, [1, 0, 2] : vector<16x4x32xf32> -> vector<4x16x32xf32>
    %57 = arith.truncf %56 : vector<4x16x32xf32> to vector<4x16x32xbf16>
    %58 = vector.shape_cast %49 : vector<16x128xf32> to vector<16x4x32xf32>
    %59 = tpu.transpose %58, [1, 0, 2] : vector<16x4x32xf32> -> vector<4x16x32xf32>
    %60 = arith.truncf %59 : vector<4x16x32xf32> to vector<4x16x32xbf16>
    "tpu.trace_start"() <{level = 10 : i32, message = "hqd,hkd->hqk"}> : () -> ()
    %cst_24 = arith.constant dense<0.000000e+00> : vector<4x16x16xf32>
    %61 = tpu.matmul %54, %57, %cst_24 {dimension_numbers = #tpu.dot_dimension_numbers<[2], [2], [1], [1], [0, 0, 0, 1, 1, 1], [0], [0]>} : vector<4x16x32xbf16>, vector<4x16x32xbf16>, vector<4x16x16xf32> -> vector<4x16x16xf32>
    "tpu.trace_stop"() : () -> ()
    %c0_25 = arith.constant 0 : index
    %c0_26 = arith.constant 0 : index
    %62 = vector.load %arg4[%c0_25, %c0_26] : memref<16x16xf32, #tpu.memory_space<vmem>>, vector<16x16xf32>
    %63 = vector.shape_cast %62 : vector<16x16xf32> to vector<1x16x16xf32>
    %64 = vector.broadcast %63 : vector<1x16x16xf32> to vector<4x16x16xf32>
    %65 = arith.addf %61, %64 : vector<4x16x16xf32>
    %cst_27 = arith.constant dense<0xFF800000> : vector<4x16xf32>
    %66 = vector.multi_reduction <maximumf>, %65, %cst_27 [2] : vector<4x16x16xf32> to vector<4x16xf32>
    %67 = vector.shape_cast %66 : vector<4x16xf32> to vector<4x16x1xf32>
    %68 = vector.broadcast %67 : vector<4x16x1xf32> to vector<4x16x16xf32>
    %69 = arith.subf %65, %68 : vector<4x16x16xf32>
    %70 = math.exp %69 : vector<4x16x16xf32>
    %cst_28 = arith.constant dense<0.000000e+00> : vector<4x16xf32>
    %71 = vector.multi_reduction <add>, %70, %cst_28 [2] : vector<4x16x16xf32> to vector<4x16xf32>
    %72 = vector.shape_cast %71 : vector<4x16xf32> to vector<4x16x1xf32>
    %73 = tpu.reciprocal %72 {approx = true} : vector<4x16x1xf32> -> vector<4x16x1xf32>
    %74 = vector.broadcast %73 : vector<4x16x1xf32> to vector<4x16x16xf32>
    %75 = arith.mulf %70, %74 : vector<4x16x16xf32>
    %76 = arith.truncf %75 : vector<4x16x16xf32> to vector<4x16x16xbf16>
    "tpu.trace_start"() <{level = 10 : i32, message = "hqk,hkd->hqd"}> : () -> ()
    %cst_29 = arith.constant dense<0.000000e+00> : vector<4x16x32xf32>
    %77 = tpu.matmul %76, %60, %cst_29 {dimension_numbers = #tpu.dot_dimension_numbers<[2], [1], [1], [2], [0, 0, 0, 1, 1, 2], [0], [0]>} : vector<4x16x16xbf16>, vector<4x16x32xbf16>, vector<4x16x32xf32> -> vector<4x16x32xf32>
    "tpu.trace_stop"() : () -> ()
    %78 = tpu.transpose %77, [1, 0, 2] : vector<4x16x32xf32> -> vector<16x4x32xf32>
    %79 = vector.shape_cast %78 : vector<16x4x32xf32> to vector<16x128xf32>
    %80 = arith.truncf %79 : vector<16x128xf32> to vector<16x128xbf16>
    %c0_30 = arith.constant 0 : index
    %c0_31 = arith.constant 0 : index
    %c0_32 = arith.constant 0 : index
    %81 = vector.load %arg7[%c0_30, %c0_31, %c0_32] : memref<1x128x128xbf16, #tpu.memory_space<vmem>>, vector<1x128x128xbf16>
    %82 = vector.shape_cast %81 : vector<1x128x128xbf16> to vector<128x128xbf16>
    %cst_33 = arith.constant dense<0.000000e+00> : vector<16x128xf32>
    %83 = tpu.matmul %80, %82, %cst_33 {dimension_numbers = #tpu.dot_dimension_numbers<[1], [0], [0], [1], [0, 0, 1, 1], [], []>} : vector<16x128xbf16>, vector<128x128xbf16>, vector<16x128xf32> -> vector<16x128xf32>
    %84 = arith.addf %4, %83 : vector<16x128xf32>
    %85 = vector.extract_strided_slice %6 {offsets = [7, 0], sizes = [1, 128], strides = [1, 1]} : vector<9x128xf32> to vector<1x128xf32>
    %86 = vector.broadcast %85 : vector<1x128xf32> to vector<16x128xf32>
    %87 = arith.addf %84, %86 : vector<16x128xf32>
    %88 = vector.extract_strided_slice %6 {offsets = [2, 0], sizes = [1, 128], strides = [1, 1]} : vector<9x128xf32> to vector<1x128xf32>
    %89 = vector.extract_strided_slice %6 {offsets = [3, 0], sizes = [1, 128], strides = [1, 1]} : vector<9x128xf32> to vector<1x128xf32>
    %cst_34 = arith.constant dense<0.000000e+00> : vector<16xf32>
    %90 = vector.multi_reduction <add>, %87, %cst_34 [1] : vector<16x128xf32> to vector<16xf32>
    %91 = vector.shape_cast %90 : vector<16xf32> to vector<16x1xf32>
    %cst_35 = arith.constant 1.280000e+02 : f32
    %92 = vector.broadcast %cst_35 : f32 to vector<16x1xf32>
    %93 = arith.divf %91, %92 : vector<16x1xf32>
    %94 = vector.broadcast %93 : vector<16x1xf32> to vector<16x128xf32>
    %95 = arith.subf %87, %94 : vector<16x128xf32>
    %96 = arith.mulf %95, %95 : vector<16x128xf32>
    %cst_36 = arith.constant dense<0.000000e+00> : vector<16xf32>
    %97 = vector.multi_reduction <add>, %96, %cst_36 [1] : vector<16x128xf32> to vector<16xf32>
    %98 = vector.shape_cast %97 : vector<16xf32> to vector<16x1xf32>
    %cst_37 = arith.constant 1.280000e+02 : f32
    %99 = vector.broadcast %cst_37 : f32 to vector<16x1xf32>
    %100 = arith.divf %98, %99 : vector<16x1xf32>
    %101 = vector.broadcast %93 : vector<16x1xf32> to vector<16x128xf32>
    %102 = arith.subf %87, %101 : vector<16x128xf32>
    %cst_38 = arith.constant 9.99999974E-6 : f32
    %103 = vector.broadcast %cst_38 : f32 to vector<16x1xf32>
    %104 = arith.addf %100, %103 : vector<16x1xf32>
    %105 = math.rsqrt %104 : vector<16x1xf32>
    %106 = vector.broadcast %105 : vector<16x1xf32> to vector<16x128xf32>
    %107 = arith.mulf %102, %106 : vector<16x128xf32>
    %108 = vector.broadcast %88 : vector<1x128xf32> to vector<16x128xf32>
    %109 = arith.mulf %107, %108 : vector<16x128xf32>
    %110 = vector.broadcast %89 : vector<1x128xf32> to vector<16x128xf32>
    %111 = arith.addf %109, %110 : vector<16x128xf32>
    %112 = arith.truncf %111 : vector<16x128xf32> to vector<16x128xbf16>
    %c0_39 = arith.constant 0 : index
    %c0_40 = arith.constant 0 : index
    %c0_41 = arith.constant 0 : index
    %113 = vector.load %arg8[%c0_39, %c0_40, %c0_41] : memref<1x128x512xbf16, #tpu.memory_space<vmem>>, vector<1x128x512xbf16>
    %114 = vector.shape_cast %113 : vector<1x128x512xbf16> to vector<128x512xbf16>
    %cst_42 = arith.constant dense<0.000000e+00> : vector<16x512xf32>
    %115 = tpu.matmul %112, %114, %cst_42 {dimension_numbers = #tpu.dot_dimension_numbers<[1], [0], [0], [1], [0, 0, 1, 1], [], []>} : vector<16x128xbf16>, vector<128x512xbf16>, vector<16x512xf32> -> vector<16x512xf32>
    %c0_43 = arith.constant 0 : index
    %c0_44 = arith.constant 0 : index
    %c0_45 = arith.constant 0 : index
    %116 = vector.load %arg9[%c0_43, %c0_44, %c0_45] : memref<1x1x512xf32, #tpu.memory_space<vmem>>, vector<1x1x512xf32>
    %117 = vector.shape_cast %116 : vector<1x1x512xf32> to vector<1x512xf32>
    %118 = vector.broadcast %117 : vector<1x512xf32> to vector<16x512xf32>
    %119 = arith.addf %115, %118 : vector<16x512xf32>
    %120 = arith.mulf %119, %119 : vector<16x512xf32>
    %121 = arith.mulf %119, %120 : vector<16x512xf32>
    %cst_46 = arith.constant 4.471500e-02 : f32
    %122 = vector.broadcast %cst_46 : f32 to vector<16x512xf32>
    %123 = arith.mulf %122, %121 : vector<16x512xf32>
    %124 = arith.addf %119, %123 : vector<16x512xf32>
    %cst_47 = arith.constant 0.797884583 : f32
    %125 = vector.broadcast %cst_47 : f32 to vector<16x512xf32>
    %126 = arith.mulf %125, %124 : vector<16x512xf32>
    %127 = math.tanh %126 : vector<16x512xf32>
    %cst_48 = arith.constant 1.000000e+00 : f32
    %128 = vector.broadcast %cst_48 : f32 to vector<16x512xf32>
    %129 = arith.addf %128, %127 : vector<16x512xf32>
    %cst_49 = arith.constant 5.000000e-01 : f32
    %130 = vector.broadcast %cst_49 : f32 to vector<16x512xf32>
    %131 = arith.mulf %130, %129 : vector<16x512xf32>
    %132 = arith.mulf %119, %131 : vector<16x512xf32>
    %133 = arith.truncf %132 : vector<16x512xf32> to vector<16x512xbf16>
    %c0_50 = arith.constant 0 : index
    %c0_51 = arith.constant 0 : index
    %c0_52 = arith.constant 0 : index
    %134 = vector.load %arg10[%c0_50, %c0_51, %c0_52] : memref<1x512x128xbf16, #tpu.memory_space<vmem>>, vector<1x512x128xbf16>
    %135 = vector.shape_cast %134 : vector<1x512x128xbf16> to vector<512x128xbf16>
    %cst_53 = arith.constant dense<0.000000e+00> : vector<16x128xf32>
    %136 = tpu.matmul %133, %135, %cst_53 {dimension_numbers = #tpu.dot_dimension_numbers<[1], [0], [0], [1], [0, 0, 1, 1], [], []>} : vector<16x512xbf16>, vector<512x128xbf16>, vector<16x128xf32> -> vector<16x128xf32>
    %137 = arith.addf %87, %136 : vector<16x128xf32>
    %138 = vector.extract_strided_slice %6 {offsets = [8, 0], sizes = [1, 128], strides = [1, 1]} : vector<9x128xf32> to vector<1x128xf32>
    %139 = vector.broadcast %138 : vector<1x128xf32> to vector<16x128xf32>
    %140 = arith.addf %137, %139 : vector<16x128xf32>
    %c0_54 = arith.constant 0 : index
    %c0_55 = arith.constant 0 : index
    %c0_56 = arith.constant 0 : index
    %141 = vector.load %arg11[%c0_54, %c0_55, %c0_56] : memref<1x16x128xf32, #tpu.memory_space<vmem>>, vector<1x16x128xf32>
    %142 = vector.shape_cast %141 : vector<1x16x128xf32> to vector<16x128xf32>
    %143 = vector.shape_cast %140 : vector<16x128xf32> to vector<1x16x128xf32>
    tpu.vector_store %arg11[%c0_54, %c0_55, %c0_56], %143 {strides = array<i32>} : memref<1x16x128xf32, #tpu.memory_space<vmem>>, vector<1x16x128xf32>,
    %c0_57 = arith.constant 0 : index
    %c0_58 = arith.constant 0 : index
    %c0_59 = arith.constant 0 : index
    %144 = vector.load %arg3[%c0_57, %c0_58, %c0_59] : memref<1x8x128xf32, #tpu.memory_space<vmem>>, vector<1x8x128xf32>
    %145 = vector.shape_cast %144 : vector<1x8x128xf32> to vector<8x128xf32>
    %c0_60 = arith.constant 0 : index
    %c0_61 = arith.constant 0 : index
    %c0_62 = arith.constant 0 : index
    %146 = vector.load %arg11[%c0_60, %c0_61, %c0_62] : memref<1x16x128xf32, #tpu.memory_space<vmem>>, vector<1x8x128xf32>
    %147 = vector.shape_cast %146 : vector<1x8x128xf32> to vector<8x128xf32>
    %148 = vector.shape_cast %145 : vector<8x128xf32> to vector<1x8x128xf32>
    tpu.vector_store %arg11[%c0_60, %c0_61, %c0_62], %148 {strides = array<i32>} : memref<1x16x128xf32, #tpu.memory_space<vmem>>, vector<1x8x128xf32>,
    return
  }
  func.func @transform_0(%arg0: i32, %arg1: i32) -> (i32, i32, i32) {
    %c0_i32 = arith.constant 0 : i32
    %c0_i32_0 = arith.constant 0 : i32
    %c0_i32_1 = arith.constant 0 : i32
    return %arg0, %c0_i32, %c0_i32_0 : i32, i32, i32
  }
  func.func @transform_1(%arg0: i32, %arg1: i32) -> (i32, i32, i32) {
    %c0_i32 = arith.constant 0 : i32
    %c0_i32_0 = arith.constant 0 : i32
    %c0_i32_1 = arith.constant 0 : i32
    return %arg0, %c0_i32, %c0_i32_0 : i32, i32, i32
  }
  func.func @transform_2(%arg0: i32, %arg1: i32) -> (i32, i32) {
    %c0_i32 = arith.constant 0 : i32
    %c0_i32_0 = arith.constant 0 : i32
    %c0_i32_1 = arith.constant 0 : i32
    return %c0_i32, %c0_i32_0 : i32, i32
  }
  func.func @transform_3(%arg0: i32, %arg1: i32) -> (i32, i32, i32) {
    %c0_i32 = arith.constant 0 : i32
    %c0_i32_0 = arith.constant 0 : i32
    %c0_i32_1 = arith.constant 0 : i32
    return %arg1, %c0_i32, %c0_i32_0 : i32, i32, i32
  }
  func.func @transform_4(%arg0: i32, %arg1: i32) -> (i32, i32, i32, i32) {
    %c0_i32 = arith.constant 0 : i32
    %c0_i32_0 = arith.constant 0 : i32
    %c0_i32_1 = arith.constant 0 : i32
    %c0_i32_2 = arith.constant 0 : i32
    return %arg1, %c0_i32, %c0_i32_0, %c0_i32_1 : i32, i32, i32, i32
  }
  func.func @transform_5(%arg0: i32, %arg1: i32) -> (i32, i32, i32) {
    %c0_i32 = arith.constant 0 : i32
    %c0_i32_0 = arith.constant 0 : i32
    %c0_i32_1 = arith.constant 0 : i32
    return %arg1, %c0_i32, %c0_i32_0 : i32, i32, i32
  }
  func.func @transform_6(%arg0: i32, %arg1: i32) -> (i32, i32, i32) {
    %c0_i32 = arith.constant 0 : i32
    %c0_i32_0 = arith.constant 0 : i32
    %c0_i32_1 = arith.constant 0 : i32
    return %arg1, %c0_i32, %c0_i32_0 : i32, i32, i32
  }
  func.func @transform_7(%arg0: i32, %arg1: i32) -> (i32, i32, i32) {
    %c0_i32 = arith.constant 0 : i32
    %c0_i32_0 = arith.constant 0 : i32
    %c0_i32_1 = arith.constant 0 : i32
    return %arg1, %c0_i32, %c0_i32_0 : i32, i32, i32
  }
  func.func @transform_8(%arg0: i32, %arg1: i32) -> (i32, i32, i32) {
    %c0_i32 = arith.constant 0 : i32
    %c0_i32_0 = arith.constant 0 : i32
    %c0_i32_1 = arith.constant 0 : i32
    return %arg1, %c0_i32, %c0_i32_0 : i32, i32, i32
  }
  func.func @transform_9(%arg0: i32, %arg1: i32) -> (i32, i32, i32) {
    %c0_i32 = arith.constant 0 : i32
    %c0_i32_0 = arith.constant 0 : i32
    %c0_i32_1 = arith.constant 0 : i32
    return %arg0, %c0_i32, %c0_i32_0 : i32, i32, i32
  }
}

</mosaic_0001>

<llo_original>
// kernel: cap_bench_train_forward.5
$region0: #{cap_bench_train_forward.5}
  #allocation0 [shape = 'u32[]', space=smem, size = 0x4, offset = 0x4, fixed_abs, tag = 'smem constant byte address 0x4 - core index']
  #allocation1 [shape = 'u32[144,128]{1,0:T(1,128)}', space=vmem, size = 0x12000, scoped, tag = 'internal scratch']
  #allocation2 [shape = 's32[1]{0}', space=sflag, size = 0x4, scoped, tag = 'scoped memory for cap_bench_train_forward.5']
  #allocation3 [shape = 'u8[1024]{0}', space=smem, size = 0x400, scoped, tag = 'prefetched SMEM operand 0']
  %s0 = inlined_call_operand.vmem [shape: s32[2,8], index: 0, kind: input, shape index: {}]
  %s1 = inlined_call_operand.vmem [shape: f32[2,16,128], index: 1, kind: input, shape index: {}]
  %s2 = inlined_call_operand.vmem [shape: f32[2,128], index: 2, kind: input, shape index: {}]
  %s3 = inlined_call_operand.vmem [shape: bf16[128,128], index: 3, kind: input, shape index: {}]
  %s4 = inlined_call_operand.vmem [shape: f32[1,128], index: 4, kind: input, shape index: {}]
  %s5 = inlined_call_operand.hbm [shape: f32[2,8,128], index: 5, kind: output, shape index: {0}]
  %s6 = inlined_call_operand.vmem [shape: f32[2,1,128], index: 6, kind: output, shape index: {1}]
  %7 = xla_tuple %s5, %s6
  %s8 = sld [smem:[#allocation0]]
  $region57: #{cap_bench_train_forward.5} parent=0
    _
  %s10 = ssub.s32 1, %s8
  %s11 = scalar_select 0, %s10, %s8
  %s12 = sshll.u32 %s0, 4
  %s13 = int_to_ptr.vmem [resolvable:$true] %s12
  %15 = dma.vmem_to_smem %s13, 32, [#allocation3], [#allocation2]
  %16 = dma.done [#allocation2], 32
  %17 = sfence
  $region1: #{cap_bench_train_forward.5} parent=0
    #allocation4 [shape = 'u8[8192]{0}', space=vmem, size = 0x2000, scoped, tag = 'output window, operand 0']
    #allocation5 [shape = 's32[2]{0}', space=sflag, size = 0x8, scoped, tag = 'scoped memory for cap_bench_train_forward.5']
    %18 = vsyncpa [#allocation5], 0
    %s19 = scalar_lea.sflag [#allocation5], 1
    %20 = vsyncpa %s19, 0
    loop: start=0, step=1, limit=4
    $region2: #{cap_bench_train_forward.5} parent=1 // loop_pre_header
      _
    $region3: #{cap_bench_train_forward.5} parent=1 // loop_header
      %s22 = sphi 0, %s26
      %p23 = scmp.ge.s32.totalorder %s22, 4
      %s32 = sphi 0, %s34
      %s35 = sphi 0, %s32
      %s36 = sphi 0, %s35
      %s52 = sphi 0, %s36
      %s56 = sphi 0, %s56
      %s58 = sphi 0, %s56
      %s59 = sphi 0, %s58
      %s73 = sphi 0, %s59
      %s77 = sphi 0, %s77
      %s79 = sphi 0, %s77
      %s80 = sphi 0, %s79
      %s94 = sphi 0, %s80
      %s98 = sphi 0, %s98
      %s100 = sphi 0, %s98
      %s101 = sphi 0, %s100
      %s115 = sphi 0, %s101
      %s121 = sphi 0, %s123
      %s124 = sphi 0, %s121
      %s125 = sphi 0, %s124
      %s141 = sphi 0, %s125
      %s147 = sphi 0, %s149
      %s150 = sphi 0, %s147
      %s151 = sphi 0, %s150
      %s167 = sphi 0, %s151
    $region4: #{cap_bench_train_forward.5} parent=1 // loop_header_branch
      %25 = sbr.rel (%p23) target = $region8
    $region5: #{cap_bench_train_forward.5} parent=1 // loop_body
      %s27 = ssub.s32 %s22, 1
      %s28 = ssub.s32 %s22, 2
      %s29 = sadd.s32 %s22, 1
      %s30 = ssub.s32 %s22, %s29
      %p31 = scmp.eq.s32.totalorder %s30, 0
      %s33 = sadd.s32 %s32, 1
      %s34 = scalar_select %p31, %s32, %s33
      %p37 = pneg %p31
      %p38 = scmp.eq.s32.totalorder %s22, 1
      %p39 = por %p37, %p38
      %p40 = scmp.ne.s32.totalorder %s32, %s35
      %p41 = scmp.eq.s32.totalorder %s22, 0
      %p42 = por %p40, %p41
      %p43 = scmp.ne.s32.totalorder %s32, %s35
      %p44 = scmp.eq.s32.totalorder %s27, 1
      %p45 = por %p43, %p44
      %p46 = scmp.ne.s32.totalorder %s35, %s36
      %p47 = scmp.eq.s32.totalorder %s27, 0
      %p48 = por %p46, %p47
      %p49 = scmp.ne.s32.totalorder %s35, %s36
      %p50 = scmp.eq.s32.totalorder %s28, 1
      %p51 = por %p49, %p50
      %p53 = scmp.ne.s32.totalorder %s36, %s52
      %p54 = scmp.eq.s32.totalorder %s28, 0
      %p55 = por %p53, %p54
      %s57 = sadd.s32 %s56, 1
      %p60 = scmp.eq.s32.totalorder %s22, 1
      %p61 = scmp.ne.s32.totalorder %s56, %s58
      %p62 = scmp.eq.s32.totalorder %s22, 0
      %p63 = por %p61, %p62
      %p64 = scmp.ne.s32.totalorder %s56, %s58
      %p65 = scmp.eq.s32.totalorder %s27, 1
      %p66 = por %p64, %p65
      %p67 = scmp.ne.s32.totalorder %s58, %s59
      %p68 = scmp.eq.s32.totalorder %s27, 0
      %p69 = por %p67, %p68
      %p70 = scmp.ne.s32.totalorder %s58, %s59
      %p71 = scmp.eq.s32.totalorder %s28, 1
      %p72 = por %p70, %p71
      %p74 = scmp.ne.s32.totalorder %s59, %s73
      %p75 = scmp.eq.s32.totalorder %s28, 0
      %p76 = por %p74, %p75
      %s78 = sadd.s32 %s77, 1
      %p81 = scmp.eq.s32.totalorder %s22, 1
      %p82 = scmp.ne.s32.totalorder %s77, %s79
      %p83 = scmp.eq.s32.totalorder %s22, 0
      %p84 = por %p82, %p83
      %p85 = scmp.ne.s32.totalorder %s77, %s79
      %p86 = scmp.eq.s32.totalorder %s27, 1
      %p87 = por %p85, %p86
      %p88 = scmp.ne.s32.totalorder %s79, %s80
      %p89 = scmp.eq.s32.totalorder %s27, 0
      %p90 = por %p88, %p89
      %p91 = scmp.ne.s32.totalorder %s79, %s80
      %p92 = scmp.eq.s32.totalorder %s28, 1
      %p93 = por %p91, %p92
      %p95 = scmp.ne.s32.totalorder %s80, %s94
      %p96 = scmp.eq.s32.totalorder %s28, 0
      %p97 = por %p95, %p96
      %s99 = sadd.s32 %s98, 1
      %p102 = scmp.eq.s32.totalorder %s22, 1
      %p103 = scmp.ne.s32.totalorder %s98, %s100
      %p104 = scmp.eq.s32.totalorder %s22, 0
      %p105 = por %p103, %p104
      %p106 = scmp.ne.s32.totalorder %s98, %s100
      %p107 = scmp.eq.s32.totalorder %s27, 1
      %p108 = por %p106, %p107
      %p109 = scmp.ne.s32.totalorder %s100, %s101
      %p110 = scmp.eq.s32.totalorder %s27, 0
      %p111 = por %p109, %p110
      %p112 = scmp.ne.s32.totalorder %s100, %s101
      %p113 = scmp.eq.s32.totalorder %s28, 1
      %p114 = por %p112, %p113
      %p116 = scmp.ne.s32.totalorder %s101, %s115
      %p117 = scmp.eq.s32.totalorder %s28, 0
      %p118 = por %p116, %p117
      %s119 = ssub.s32 %s22, %s29
      %p120 = scmp.eq.s32.totalorder %s119, 0
      %s122 = sadd.s32 %s121, 1
      %s123 = scalar_select %p120, %s121, %s122
      %p126 = pneg %p120
      %p127 = scmp.eq.s32.totalorder %s22, 1
      %p128 = por %p126, %p127
      %p129 = scmp.ne.s32.totalorder %s121, %s124
      %p130 = scmp.eq.s32.totalorder %s22, 0
      %p131 = por %p129, %p130
      %p132 = scmp.ne.s32.totalorder %s121, %s124
      %p133 = scmp.eq.s32.totalorder %s27, 1
      %p134 = por %p132, %p133
      %p135 = scmp.ne.s32.totalorder %s124, %s125
      %p136 = scmp.eq.s32.totalorder %s27, 0
      %p137 = por %p135, %p136
      %p138 = scmp.ne.s32.totalorder %s124, %s125
      %p139 = scmp.eq.s32.totalorder %s28, 1
      %p140 = por %p138, %p139
      %p142 = scmp.ne.s32.totalorder %s125, %s141
      %p143 = scmp.eq.s32.totalorder %s28, 0
      %p144 = por %p142, %p143
      %s145 = ssub.s32 %s22, %s29
      %p146 = scmp.eq.s32.totalorder %s145, 0
      %s148 = sadd.s32 %s147, 1
      %s149 = scalar_select %p146, %s147, %s148
      %p152 = pneg %p146
      %p153 = scmp.eq.s32.totalorder %s22, 1
      %p154 = por %p152, %p153
      %p155 = scmp.ne.s32.totalorder %s147, %s150
      %p156 = scmp.eq.s32.totalorder %s22, 0
      %p157 = por %p155, %p156
      %p158 = scmp.ne.s32.totalorder %s147, %s150
      %p159 = scmp.eq.s32.totalorder %s27, 1
      %p160 = por %p158, %p159
      %p161 = scmp.ne.s32.totalorder %s150, %s151
      %p162 = scmp.eq.s32.totalorder %s27, 0
      %p163 = por %p161, %p162
      %p164 = scmp.ne.s32.totalorder %s150, %s151
      %p165 = scmp.eq.s32.totalorder %s28, 1
      %p166 = por %p164, %p165
      %p168 = scmp.ne.s32.totalorder %s151, %s167
      %p169 = scmp.eq.s32.totalorder %s28, 0
      %p170 = por %p168, %p169
      %p171 = scmp.le.s32.totalorder 1, %s22
      %p172 = scmp.lt.s32.totalorder %s22, 3
      %p173 = pnand %p171, %p172
      %p174 = pneg %p173
      // Predicated region
      $region9: #{cap_bench_train_forward.5} parent=5 // pred_check
        _
      $region10: #{cap_bench_train_forward.5} parent=5 // pred_check_branch
        %176 = sbr.rel (%p173) target = $region12
      $region11: #{cap_bench_train_forward.5} parent=5 // pred_region
        %s177 = ssub.s32 %s22, 1
        // Predicated region
        $region13: #{cap_bench_train_forward.5} parent=11 // pred_check
          %p178 = pneg %p69
        $region14: #{cap_bench_train_forward.5} parent=11 // pred_check_branch
          %180 = sbr.rel (%p178) target = $region16
        $region15: #{cap_bench_train_forward.5} parent=11 // pred_region
          _
        $region16: #{cap_bench_train_forward.5} parent=11 // pred_fallthru
          _
        // Predicated region
        $region17: #{cap_bench_train_forward.5} parent=11 // pred_check
          %p181 = pneg %p90
        $region18: #{cap_bench_train_forward.5} parent=11 // pred_check_branch
          %183 = sbr.rel (%p181) target = $region20
        $region19: #{cap_bench_train_forward.5} parent=11 // pred_region
          _
        $region20: #{cap_bench_train_forward.5} parent=11 // pred_fallthru
          _
        // Predicated region
        $region21: #{cap_bench_train_forward.5} parent=11 // pred_check
          %p184 = pneg %p111
        $region22: #{cap_bench_train_forward.5} parent=11 // pred_check_branch
          %186 = sbr.rel (%p184) target = $region24
        $region23: #{cap_bench_train_forward.5} parent=11 // pred_region
          _
        $region24: #{cap_bench_train_forward.5} parent=11 // pred_fallthru
          _
      $region12: #{cap_bench_train_forward.5} parent=5 // pred_fallthru
        _
      %p187 = scmp.lt.s32.totalorder %s22, 2
      // Predicated region
      $region25: #{cap_bench_train_forward.5} parent=5 // pred_check
        %p188 = pneg %p187
      $region26: #{cap_bench_train_forward.5} parent=5 // pred_check_branch
        %190 = sbr.rel (%p188) target = $region28
      $region27: #{cap_bench_train_forward.5} parent=5 // pred_region
        // Predicated region
        $region29: #{cap_bench_train_forward.5} parent=27 // pred_check
          %p191 = pneg %p42
        $region30: #{cap_bench_train_forward.5} parent=27 // pred_check_branch
          %193 = sbr.rel (%p191) target = $region32
        $region31: #{cap_bench_train_forward.5} parent=27 // pred_region
          %p194 = scmp.lt.s32.totalorder %s22, 1
          %s195 = scalar_select %p194, %s22, 1
          %s196 = smul.addr %s195, 2
          %s197 = smul.addr %s196, 8
          %s198 = scalar_lea.vmem %s1, %s197
        $region32: #{cap_bench_train_forward.5} parent=27 // pred_fallthru
          _
      $region28: #{cap_bench_train_forward.5} parent=5 // pred_fallthru
        _
      %p199 = scmp.le.s32.totalorder 1, %s22
      %p200 = scmp.lt.s32.totalorder %s22, 3
      %p201 = pnand %p199, %p200
      %p202 = pneg %p201
      // Predicated region
      $region33: #{cap_bench_train_forward.5} parent=5 // pred_check
        _
      $region34: #{cap_bench_train_forward.5} parent=5 // pred_check_branch
        %204 = sbr.rel (%p201) target = $region36
      $region35: #{cap_bench_train_forward.5} parent=5 // pred_region
        %s205 = ssub.s32 %s22, 1
        %p206 = scmp.lt.s32.totalorder %s27, 1
        %s207 = scalar_select %p206, %s27, 1
        %s208 = smul.addr %s207, 2
        %s209 = smul.addr %s208, 8
        %s210 = scalar_lea.vmem %s1, %s209
        %p211 = pneg %p48
        %p212 = pneg %p45
        %p213 = pneg %p69
        %p214 = pneg %p66
        %p215 = pneg %p90
        %p216 = pneg %p87
        %p217 = pneg %p111
        %p218 = pneg %p108
        %p219 = pneg %p137
        %p220 = pneg %p134
        %s221 = sand.u32 %s124, 1
        %s222 = scalar_lea.sflag [#allocation5], %s221
        %s223 = sand.u32 %s124, 1
        %s224 = smul.addr %s223, 8
        %s225 = scalar_lea.vmem [#allocation4], %s224
        %p226 = pneg %p163
        %p227 = pneg %p160
        %p228 = scmp.lt.s32.totalorder %s27, 1
        %s229 = scalar_select %p228, %s27, 1
        %s230 = scalar_lea.vmem %s6, %s229
        %p231 = scmp.lt.s32.totalorder %s27, 1
        %s232 = scalar_select %p231, %s27, 1
        %s233 = smul.addr %s232, 2
        %s234 = smul.addr %s233, 8
        %s235 = scalar_lea.vmem %s1, %s234
        %p236 = scmp.lt.s32.totalorder %s27, 1
        %s237 = scalar_select %p236, %s27, 1
        %s238 = scalar_lea.vmem %s6, %s237
        %v240 = vld [vmem:[%s235 + $0x8] sm:$0xff]
        %v241 = vld [vmem:[%s2] sm:$0x1]
        %v242 = vld [vmem:[%s2 + $0x1] sm:$0x1]
        %243 = vadd.xlane.f32.xlu0 %v240
        %v244 = vpop.xlane.xlu0 %243
        %v245 = vrcp.pop 128.0
        %v246 = vmul.f32 %v244, %v245
        %v247 = vsub.f32 %v240, %v246
        %v248 = vmul.f32 %v247, %v247
        %249 = vadd.xlane.f32.xlu0 %v248
        %v250 = vpop.xlane.xlu0 %249
        %v251 = vmul.f32 %v250, %v245
        %v252 = vadd.f32 %v251, 1e-05
        %v253 = vrsqrt.pop %v252
        %v254 = vmul.f32 %v247, %v253
        %v255 = vlaneseq
        %v256 = vshrl.u32 %v255, 7
        %v257 = vsub.s32 0, %v256
        %v258 = vrot.slane %v241, %v257
        %v259 = vmul.f32 %v254, %v258
        %v260 = vlaneseq
        %v261 = vshrl.u32 %v260, 7
        %v262 = vsub.s32 0, %v261
        %v263 = vrot.slane %v242, %v262
        %v264 = vadd.f32 %v259, %v263
        %v265 = vpack.c.bf16 %v264, %v264
        %v266 = vld [vmem:[%s3] sm:$0xf]
        %v267 = vld [vmem:[%s3 + $0x4] sm:$0xf]
        %v268 = vld [vmem:[%s3 + $0x8] sm:$0xf]
        %v269 = vld [vmem:[%s3 + $0xc] sm:$0xf]
        %v270 = vld [vmem:[%s3 + $0x10] sm:$0xf]
        %v271 = vld [vmem:[%s3 + $0x14] sm:$0xf]
        %v272 = vld [vmem:[%s3 + $0x18] sm:$0xf]
        %v273 = vld [vmem:[%s3 + $0x1c] sm:$0xf]
        %v274 = vld [vmem:[%s3 + $0x20] sm:$0xf]
        %v275 = vld [vmem:[%s3 + $0x24] sm:$0xf]
        %v276 = vld [vmem:[%s3 + $0x28] sm:$0xf]
        %v277 = vld [vmem:[%s3 + $0x2c] sm:$0xf]
        %v278 = vld [vmem:[%s3 + $0x30] sm:$0xf]
        %v279 = vld [vmem:[%s3 + $0x34] sm:$0xf]
        %v280 = vld [vmem:[%s3 + $0x38] sm:$0xf]
        %v281 = vld [vmem:[%s3 + $0x3c] sm:$0xf]
        %v282 = vld [vmem:[%s4] sm:$0x1]
        %v284 = vlaneseq
        %v285 = vshrl.u32 %v284, 7
        %v286 = vsub.s32 0, %v285
        %v287 = vrot.slane %v282, %v286
        %v305 = vunpack.c.l.b16 %v266
        %v306 = vunpack.c.l.b16 %v267
        %v307 = vunpack.c.l.b16 %v268
        %v308 = vunpack.c.l.b16 %v269
        %v309 = vunpack.c.l.b16 %v270
        %v310 = vunpack.c.l.b16 %v271
        %v311 = vunpack.c.l.b16 %v272
        %v312 = vunpack.c.l.b16 %v273
        %v313 = vunpack.c.l.b16 %v274
        %v314 = vunpack.c.l.b16 %v275
        %v315 = vunpack.c.l.b16 %v276
        %v316 = vunpack.c.l.b16 %v277
        %v317 = vunpack.c.l.b16 %v278
        %v318 = vunpack.c.l.b16 %v279
        %v319 = vunpack.c.l.b16 %v280
        %v320 = vunpack.c.l.b16 %v281
        %v321 = vpack.c.b16 %v306, %v305
        %v322 = vpack.c.b16 %v308, %v307
        %v323 = vpack.c.b16 %v310, %v309
        %v324 = vpack.c.b16 %v312, %v311
        %v325 = vpack.c.b16 %v314, %v313
        %v326 = vpack.c.b16 %v316, %v315
        %v327 = vpack.c.b16 %v318, %v317
        %v328 = vpack.c.b16 %v320, %v319
        %337 = vmatprep.subr.bf16.mxu0 0
        %338 = vmatpush1.bf16.msra.mxu0 %v321
        %339 = vmatprep.subr.bf16.mxu0 0
        %340 = vmatpush1.bf16.msra.mxu0 %v322
        %341 = vmatprep.subr.bf16.mxu0 0
        %342 = vmatpush1.bf16.msra.mxu0 %v323
        %343 = vmatprep.subr.bf16.mxu0 0
        %344 = vmatpush1.bf16.msra.mxu0 %v324
        %345 = vmatprep.subr.bf16.mxu0 0
        %346 = vmatpush1.bf16.msra.mxu0 %v325
        %347 = vmatprep.subr.bf16.mxu0 0
        %348 = vmatpush1.bf16.msra.mxu0 %v326
        %349 = vmatprep.subr.bf16.mxu0 0
        %350 = vmatpush1.bf16.msra.mxu0 %v327
        %351 = vmatprep.subr.bf16.mxu0 0
        %352 = vmatpush1.bf16.msra.mxu0 %v328
        %353 = vmatprep.subr.bf16.mxu0 0
        %354 = vmatpush1.bf16.msra.mxu0 0
        %355 = vmatprep.subr.bf16.mxu0 0
        %356 = vmatpush1.bf16.msra.mxu0 0
        %357 = vmatprep.subr.bf16.mxu0 0
        %358 = vmatpush1.bf16.msra.mxu0 0
        %359 = vmatprep.subr.bf16.mxu0 0
        %360 = vmatpush1.bf16.msra.mxu0 0
        %361 = vmatprep.subr.bf16.mxu0 0
        %362 = vmatpush1.bf16.msra.mxu0 0
        %363 = vmatprep.subr.bf16.mxu0 0
        %364 = vmatpush1.bf16.msra.mxu0 0
        %365 = vmatprep.subr.bf16.mxu0 0
        %366 = vmatpush1.bf16.msra.mxu0 0
        %367 = vmatprep.subr.bf16.mxu0 0
        %368 = vmatpush1.bf16.msra.mxu0 0
        %369 = vmatprep.mubr.bf16.mxu0 0
        %370 = vmatmul.mubr.bf16.gmra.mrb[0].mxu0 %v265
        %v371 = vpop.f32.mrb[0].mxu0
        %v372 = vadd.f32 %v287, %v371
        %v373 = vpop.f32.mrb[0].mxu0
        %v374 = vpop.f32.mrb[0].mxu0
        %v375 = vpop.f32.mrb[0].mxu0
        %376 = vdwg.mxu0
        %377 = vst [vmem:[%s225] sm:$0xff] %v372
        %378 = vmax.xlane.f32.xlu0 %v372
        %v379 = vpop.xlane.xlu0 %378
        %v380 = vsub.f32 %v372, %v379
        %v381 = vmul.f32 %v380, 1.442695
        %v382 = vpow.pop %v381
        %383 = vadd.xlane.f32.xlu0 %v382
        %v384 = vpop.xlane.xlu0 %383
        %v385 = vlog2.pop %v384
        %v386 = vmul.f32 %v385, 0.6931472
        %v387 = vadd.f32 %v386, %v379
        %v388 = vlaneseq
        %v389 = vand.u32 %v388, 127
        %s390 = smul.u32 %s27, 128
        %s391 = sld [smem:[#allocation3 + %s390]]
        %v392 = vstv %s391
        %vm393 = vcmp.eq.s32.totalorder %v389, %v392
        %v394 = vsel %vm393, %v372, 0.0
        %vm395 = vcmask 1040384
        %v396 = vsel %vm395, %v394, 0.0
        %397 = vadd.xlane.f32.xlu0 %v396
        %v398 = vpop.xlane.xlu0 %397
        %v399 = vrot.slane %v398, 4
        %v400 = vadd.f32 %v398, %v399
        %v401 = vrot.slane %v400, 2
        %v402 = vadd.f32 %v400, %v401
        %v403 = vrot.slane %v402, 1
        %v404 = vadd.f32 %v402, %v403
        %s405 = vtos %v404
        %s406 = sadd.f32 %s405, 0.0
        %s407 = sadd.s32 %s390, 1
        %s408 = sld [smem:[#allocation3 + %s407]]
        %v409 = vstv %s408
        %vm410 = vcmp.eq.s32.totalorder %v389, %v409
        %v411 = vsel %vm410, %v372, 0.0
        %v413 = vrot.slane %v411, 1
        %v415 = vsel %vm395, %v413, 0.0
        %416 = vadd.xlane.f32.xlu0 %v415
        %v417 = vpop.xlane.xlu0 %416
        %v418 = vrot.slane %v417, 4
        %v419 = vadd.f32 %v417, %v418
        %v420 = vrot.slane %v419, 2
        %v421 = vadd.f32 %v419, %v420
        %v422 = vrot.slane %v421, 1
        %v423 = vadd.f32 %v421, %v422
        %s424 = vtos %v423
        %s425 = sadd.f32 %s406, %s424
        %s426 = sadd.s32 %s390, 2
        %s427 = sld [smem:[#allocation3 + %s426]]
        %v428 = vstv %s427
        %vm429 = vcmp.eq.s32.totalorder %v389, %v428
        %v430 = vsel %vm429, %v372, 0.0
        %v432 = vrot.slane %v430, 2
        %v434 = vsel %vm395, %v432, 0.0
        %435 = vadd.xlane.f32.xlu0 %v434
        %v436 = vpop.xlane.xlu0 %435
        %v437 = vrot.slane %v436, 4
        %v438 = vadd.f32 %v436, %v437
        %v439 = vrot.slane %v438, 2
        %v440 = vadd.f32 %v438, %v439
        %v441 = vrot.slane %v440, 1
        %v442 = vadd.f32 %v440, %v441
        %s443 = vtos %v442
        %s444 = sadd.f32 %s425, %s443
        %s445 = sadd.s32 %s390, 3
        %s446 = sld [smem:[#allocation3 + %s445]]
        %v447 = vstv %s446
        %vm448 = vcmp.eq.s32.totalorder %v389, %v447
        %v449 = vsel %vm448, %v372, 0.0
        %v451 = vrot.slane %v449, 3
        %v453 = vsel %vm395, %v451, 0.0
        %454 = vadd.xlane.f32.xlu0 %v453
        %v455 = vpop.xlane.xlu0 %454
        %v456 = vrot.slane %v455, 4
        %v457 = vadd.f32 %v455, %v456
        %v458 = vrot.slane %v457, 2
        %v459 = vadd.f32 %v457, %v458
        %v460 = vrot.slane %v459, 1
        %v461 = vadd.f32 %v459, %v460
        %s462 = vtos %v461
        %s463 = sadd.f32 %s444, %s462
        %s464 = sadd.s32 %s390, 4
        %s465 = sld [smem:[#allocation3 + %s464]]
        %v466 = vstv %s465
        %vm467 = vcmp.eq.s32.totalorder %v389, %v466
        %v468 = vsel %vm467, %v372, 0.0
        %v470 = vrot.slane %v468, 4
        %v472 = vsel %vm395, %v470, 0.0
        %473 = vadd.xlane.f32.xlu0 %v472
        %v474 = vpop.xlane.xlu0 %473
        %v475 = vrot.slane %v474, 4
        %v476 = vadd.f32 %v474, %v475
        %v477 = vrot.slane %v476, 2
        %v478 = vadd.f32 %v476, %v477
        %v479 = vrot.slane %v478, 1
        %v480 = vadd.f32 %v478, %v479
        %s481 = vtos %v480
        %s482 = sadd.f32 %s463, %s481
        %s483 = sadd.s32 %s390, 5
        %s484 = sld [smem:[#allocation3 + %s483]]
        %v485 = vstv %s484
        %vm486 = vcmp.eq.s32.totalorder %v389, %v485
        %v487 = vsel %vm486, %v372, 0.0
        %v489 = vrot.slane %v487, 5
        %v491 = vsel %vm395, %v489, 0.0
        %492 = vadd.xlane.f32.xlu0 %v491
        %v493 = vpop.xlane.xlu0 %492
        %v494 = vrot.slane %v493, 4
        %v495 = vadd.f32 %v493, %v494
        %v496 = vrot.slane %v495, 2
        %v497 = vadd.f32 %v495, %v496
        %v498 = vrot.slane %v497, 1
        %v499 = vadd.f32 %v497, %v498
        %s500 = vtos %v499
        %s501 = sadd.f32 %s482, %s500
        %s502 = sadd.s32 %s390, 6
        %s503 = sld [smem:[#allocation3 + %s502]]
        %v504 = vstv %s503
        %vm505 = vcmp.eq.s32.totalorder %v389, %v504
        %v506 = vsel %vm505, %v372, 0.0
        %v508 = vrot.slane %v506, 6
        %v510 = vsel %vm395, %v508, 0.0
        %511 = vadd.xlane.f32.xlu0 %v510
        %v512 = vpop.xlane.xlu0 %511
        %v513 = vrot.slane %v512, 4
        %v514 = vadd.f32 %v512, %v513
        %v515 = vrot.slane %v514, 2
        %v516 = vadd.f32 %v514, %v515
        %v517 = vrot.slane %v516, 1
        %v518 = vadd.f32 %v516, %v517
        %s519 = vtos %v518
        %s520 = sadd.f32 %s501, %s519
        %s521 = sadd.s32 %s390, 7
        %s522 = sld [smem:[#allocation3 + %s521]]
        %v523 = vstv %s522
        %vm524 = vcmp.eq.s32.totalorder %v389, %v523
        %v525 = vsel %vm524, %v372, 0.0
        %v527 = vrot.slane %v525, 7
        %v529 = vsel %vm395, %v527, 0.0
        %530 = vadd.xlane.f32.xlu0 %v529
        %v531 = vpop.xlane.xlu0 %530
        %v532 = vrot.slane %v531, 4
        %v533 = vadd.f32 %v531, %v532
        %v534 = vrot.slane %v533, 2
        %v535 = vadd.f32 %v533, %v534
        %v536 = vrot.slane %v535, 1
        %v537 = vadd.f32 %v535, %v536
        %s538 = vtos %v537
        %s539 = sadd.f32 %s520, %s538
        %vm540 = vcmask 7168
        %v541 = vsel %vm540, %v387, 0.0
        %542 = vadd.xlane.f32.xlu0 %v541
        %v543 = vpop.xlane.xlu0 %542
        %v544 = vrot.slane %v543, 4
        %v545 = vadd.f32 %v543, %v544
        %v546 = vrot.slane %v545, 2
        %v547 = vadd.f32 %v545, %v546
        %v548 = vrot.slane %v547, 1
        %v549 = vadd.f32 %v547, %v548
        %s550 = vtos %v549
        %s551 = ssub.f32 %s550, %s539
        %v552 = vstv %s551
        %553 = vst [vmem:[%s238] sm:$0x1] %v552
        %s554 = sand.u32 %s124, 1
        %s555 = scalar_lea.sflag [#allocation5], %s554
        %s556 = sand.u32 %s124, 1
        %s557 = smul.addr %s556, 8
        %s558 = scalar_lea.vmem [#allocation4], %s557
        %p559 = scmp.lt.s32.totalorder %s27, 1
        %s560 = scalar_select %p559, %s27, 1
        %s561 = scalar_lea.vmem %s6, %s560
        // Predicated region
        $region37: #{cap_bench_train_forward.5} parent=35 // pred_check
          %p562 = pneg %p134
        $region38: #{cap_bench_train_forward.5} parent=35 // pred_check_branch
          %564 = sbr.rel (%p562) target = $region40
        $region39: #{cap_bench_train_forward.5} parent=35 // pred_region
          %s566 = ssub.s32 128, 128
          %567 = vsyncadd %s555, %s566
          %s568 = smul.addr %s27, 128
          %s569 = scalar_lea.hbm %s5, %s568
          %s571 = sshll.u32 %s558, 4
          %s572 = int_to_ptr.vmem [resolvable:$true] %s571
          %574 = dma.vmem_to_hbm [thread:$0]  %s572, 128, %s569, %s555
        $region40: #{cap_bench_train_forward.5} parent=35 // pred_fallthru
          _
        // Predicated region
        $region41: #{cap_bench_train_forward.5} parent=35 // pred_check
          %p575 = pneg %p160
        $region42: #{cap_bench_train_forward.5} parent=35 // pred_check_branch
          %577 = sbr.rel (%p575) target = $region44
        $region43: #{cap_bench_train_forward.5} parent=35 // pred_region
          _
        $region44: #{cap_bench_train_forward.5} parent=35 // pred_fallthru
          _
      $region36: #{cap_bench_train_forward.5} parent=5 // pred_fallthru
        _
      %p578 = scmp.le.s32.totalorder 2, %s22
      // Predicated region
      $region45: #{cap_bench_train_forward.5} parent=5 // pred_check
        %p579 = pneg %p578
      $region46: #{cap_bench_train_forward.5} parent=5 // pred_check_branch
        %581 = sbr.rel (%p579) target = $region48
      $region47: #{cap_bench_train_forward.5} parent=5 // pred_region
        %s582 = ssub.s32 %s22, 2
        // Predicated region
        $region49: #{cap_bench_train_forward.5} parent=47 // pred_check
          %p583 = pneg %p140
        $region50: #{cap_bench_train_forward.5} parent=47 // pred_check_branch
          %585 = sbr.rel (%p583) target = $region52
        $region51: #{cap_bench_train_forward.5} parent=47 // pred_region
          %s586 = sand.u32 %s125, 1
          %s587 = scalar_lea.sflag [#allocation5], %s586
          %s588 = sand.u32 %s125, 1
          %s589 = smul.addr %s588, 8
          %s590 = scalar_lea.vmem [#allocation4], %s589
          %591 = dma.done %s587, 128
        $region52: #{cap_bench_train_forward.5} parent=47 // pred_fallthru
          _
        // Predicated region
        $region53: #{cap_bench_train_forward.5} parent=47 // pred_check
          %p592 = pneg %p166
        $region54: #{cap_bench_train_forward.5} parent=47 // pred_check_branch
          %594 = sbr.rel (%p592) target = $region56
        $region55: #{cap_bench_train_forward.5} parent=47 // pred_region
          %p595 = scmp.lt.s32.totalorder %s28, 1
          %s596 = scalar_select %p595, %s28, 1
          %s597 = scalar_lea.vmem %s6, %s596
        $region56: #{cap_bench_train_forward.5} parent=47 // pred_fallthru
          _
      $region48: #{cap_bench_train_forward.5} parent=5 // pred_fallthru
        _
    $region6: #{cap_bench_train_forward.5} parent=1 // loop_footer
      %s26 = sadd.s32 1, %s22
    $region7: #{cap_bench_train_forward.5} parent=1 // loop_footer_branch
      %21 = sbr.rel target = $region3
    $region8: #{cap_bench_train_forward.5} parent=1 // loop_exit
      _
    %598 = vsyncpa [#allocation5], 1
    %s599 = scalar_lea.sflag [#allocation5], 1
    %600 = vsyncpa %s599, 1

// kernel: cap_bench_train_forward.3
$region0: #{cap_bench_train_forward.3}
  #allocation0 [shape = 'u32[]', space=smem, size = 0x4, offset = 0x4, fixed_abs, tag = 'smem constant byte address 0x4 - core index']
  #allocation1 [shape = 'u32[144,128]{1,0:T(1,128)}', space=vmem, size = 0x12000, scoped, tag = 'internal scratch']
  %s0 = inlined_call_operand.vmem [shape: f32[2,768], index: 0, kind: input, shape index: {}]
  %s1 = inlined_call_operand.vmem [shape: f32[2,7,128], index: 1, kind: input, shape index: {}]
  %s2 = inlined_call_operand.vmem [shape: f32[2,8,128], index: 2, kind: input, shape index: {}]
  %s3 = inlined_call_operand.vmem [shape: f32[16,128], index: 3, kind: input, shape index: {}]
  %s4 = inlined_call_operand.vmem [shape: bf16[768,128], index: 4, kind: input, shape index: {}]
  %s5 = inlined_call_operand.vmem [shape: f32[1,128], index: 5, kind: input, shape index: {}, may-alias: {5,7,9}]
  %s6 = inlined_call_operand.hbm [shape: bf16[128,128], index: 6, kind: input, shape index: {}]
  %s7 = inlined_call_operand.vmem [shape: f32[1,128], index: 7, kind: input, shape index: {}, may-alias: {5,7,9}]
  %s8 = inlined_call_operand.hbm [shape: bf16[128,128], index: 8, kind: input, shape index: {}]
  %s9 = inlined_call_operand.vmem [shape: f32[1,128], index: 9, kind: input, shape index: {}, may-alias: {5,7,9}]
  %s10 = inlined_call_operand.vmem [shape: f32[2,16,128], index: 10, kind: output, shape index: {0}]
  %s11 = inlined_call_operand.vmem [shape: f32[2,8,128], index: 11, kind: output, shape index: {1}]
  %12 = xla_tuple %s10, %s11
  %s13 = sld [smem:[#allocation0]]
  $region66: #{cap_bench_train_forward.3} parent=0
    _
  %s15 = ssub.s32 1, %s13
  %s16 = scalar_select 0, %s15, %s13
  $region1: #{cap_bench_train_forward.3} parent=0
    #allocation2 [shape = 'u8[32768]{0}', space=vmem, size = 0x8000, scoped, tag = 'input window, operand 6, single buffered']
    #allocation3 [shape = 's32[1]{0}', space=sflag, size = 0x4, scoped, tag = 'scoped memory for cap_bench_train_forward.3']
    #allocation4 [shape = 'u8[32768]{0}', space=vmem, size = 0x8000, scoped, tag = 'input window, operand 8, single buffered']
    #allocation5 [shape = 's32[1]{0}', space=sflag, size = 0x4, scoped, tag = 'scoped memory for cap_bench_train_forward.3']
    %17 = vsyncpa [#allocation3], 0
    %18 = vsyncpa [#allocation5], 0
    // Predicated region
    $region2: #{cap_bench_train_forward.3} parent=1 // pred_check
      _
    $region3: #{cap_bench_train_forward.3} parent=1 // pred_check_branch
      %20 = sbr.rel (0) target = $region5
    $region4: #{cap_bench_train_forward.3} parent=1 // pred_region
      _
    $region5: #{cap_bench_train_forward.3} parent=1 // pred_fallthru
      _
    // Predicated region
    $region6: #{cap_bench_train_forward.3} parent=1 // pred_check
      _
    $region7: #{cap_bench_train_forward.3} parent=1 // pred_check_branch
      %22 = sbr.rel (0) target = $region9
    $region8: #{cap_bench_train_forward.3} parent=1 // pred_region
      _
    $region9: #{cap_bench_train_forward.3} parent=1 // pred_fallthru
      _
    // Predicated region
    $region10: #{cap_bench_train_forward.3} parent=1 // pred_check
      _
    $region11: #{cap_bench_train_forward.3} parent=1 // pred_check_branch
      %24 = sbr.rel (0) target = $region13
    $region12: #{cap_bench_train_forward.3} parent=1 // pred_region
      _
    $region13: #{cap_bench_train_forward.3} parent=1 // pred_fallthru
      _
    // Predicated region
    $region14: #{cap_bench_train_forward.3} parent=1 // pred_check
      _
    $region15: #{cap_bench_train_forward.3} parent=1 // pred_check_branch
      %26 = sbr.rel (0) target = $region17
    $region16: #{cap_bench_train_forward.3} parent=1 // pred_region
      _
    $region17: #{cap_bench_train_forward.3} parent=1 // pred_fallthru
      _
    // Predicated region
    $region18: #{cap_bench_train_forward.3} parent=1 // pred_check
      _
    $region19: #{cap_bench_train_forward.3} parent=1 // pred_check_branch
      %28 = sbr.rel (0) target = $region21
    $region20: #{cap_bench_train_forward.3} parent=1 // pred_region
      _
    $region21: #{cap_bench_train_forward.3} parent=1 // pred_fallthru
      _
    // Predicated region
    $region22: #{cap_bench_train_forward.3} parent=1 // pred_check
      _
    $region23: #{cap_bench_train_forward.3} parent=1 // pred_check_branch
      %30 = sbr.rel (0) target = $region25
    $region24: #{cap_bench_train_forward.3} parent=1 // pred_region
      _
    $region25: #{cap_bench_train_forward.3} parent=1 // pred_fallthru
      _
    // Predicated region
    $region26: #{cap_bench_train_forward.3} parent=1 // pred_check
      _
    $region27: #{cap_bench_train_forward.3} parent=1 // pred_check_branch
      %32 = sbr.rel (0) target = $region29
    $region28: #{cap_bench_train_forward.3} parent=1 // pred_region
      %s34 = ssub.s32 1024, 1024
      %35 = vsyncadd [#allocation3], %s34
      %s36 = sshll.u32 [#allocation2], 4
      %s37 = int_to_ptr.vmem [resolvable:$true] %s36
      %42 = dma.hbm_to_vmem [thread:$0]  %s6, 1024, %s37, [#allocation3], 64, 64, 4
    $region29: #{cap_bench_train_forward.3} parent=1 // pred_fallthru
      _
    // Predicated region
    $region30: #{cap_bench_train_forward.3} parent=1 // pred_check
      _
    $region31: #{cap_bench_train_forward.3} parent=1 // pred_check_branch
      %44 = sbr.rel (0) target = $region33
    $region32: #{cap_bench_train_forward.3} parent=1 // pred_region
      _
    $region33: #{cap_bench_train_forward.3} parent=1 // pred_fallthru
      _
    // Predicated region
    $region34: #{cap_bench_train_forward.3} parent=1 // pred_check
      _
    $region35: #{cap_bench_train_forward.3} parent=1 // pred_check_branch
      %46 = sbr.rel (0) target = $region37
    $region36: #{cap_bench_train_forward.3} parent=1 // pred_region
      %s48 = ssub.s32 1024, 1024
      %49 = vsyncadd [#allocation5], %s48
      %s50 = sshll.u32 [#allocation4], 4
      %s51 = int_to_ptr.vmem [resolvable:$true] %s50
      %56 = dma.hbm_to_vmem [thread:$0]  %s8, 1024, %s51, [#allocation5], 64, 64, 4
    $region37: #{cap_bench_train_forward.3} parent=1 // pred_fallthru
      _
    // Predicated region
    $region38: #{cap_bench_train_forward.3} parent=1 // pred_check
      _
    $region39: #{cap_bench_train_forward.3} parent=1 // pred_check_branch
      %58 = sbr.rel (0) target = $region41
    $region40: #{cap_bench_train_forward.3} parent=1 // pred_region
      _
    $region41: #{cap_bench_train_forward.3} parent=1 // pred_fallthru
      _
    // Predicated region
    $region42: #{cap_bench_train_forward.3} parent=1 // pred_check
      _
    $region43: #{cap_bench_train_forward.3} parent=1 // pred_check_branch
      %60 = sbr.rel (0) target = $region45
    $region44: #{cap_bench_train_forward.3} parent=1 // pred_region
      %61 = dma.done [#allocation3], 1024
    $region45: #{cap_bench_train_forward.3} parent=1 // pred_fallthru
      _
    // Predicated region
    $region46: #{cap_bench_train_forward.3} parent=1 // pred_check
      _
    $region47: #{cap_bench_train_forward.3} parent=1 // pred_check_branch
      %63 = sbr.rel (0) target = $region49
    $region48: #{cap_bench_train_forward.3} parent=1 // pred_region
      %64 = dma.done [#allocation5], 1024
    $region49: #{cap_bench_train_forward.3} parent=1 // pred_fallthru
      _
    %v66 = vld [vmem:[%s0] sm:$0xff]
    %v67 = vld [vmem:[%s0 + $0x8] sm:$0xf]
    %v70 = vcombine.high %v66, %v66
    %v72 = vunpack.c.l.s4 1983009808
    %v73 = vunpack.c.0.s8 %v72
    %v74 = vlaneseq
    %v75 = vshrl.u32 %v74, 7
    %v76 = vsub.s32 %v73, %v75
    %v77 = vrot.slane %v66, %v76
    %v79 = vunpack.c.l.s4 1983009808
    %v80 = vunpack.c.0.s8 %v79
    %v81 = vlaneseq
    %v82 = vshrl.u32 %v81, 7
    %v83 = vsub.s32 %v80, %v82
    %v84 = vrot.slane %v70, %v83
    %v85 = vcombine.high %v77, %v77
    %v86 = vcombine.high %v84, %v84
    %v88 = vunpack.c.l.s4 1983009808
    %v89 = vunpack.c.0.s8 %v88
    %v90 = vlaneseq
    %v91 = vshrl.u32 %v90, 7
    %v92 = vsub.s32 %v89, %v91
    %v93 = vrot.slane %v67, %v92
    %v94 = vcombine.high %v93, %v93
    %v101 = vpack.c.bf16 %v77, %v77
    %v102 = vpack.c.bf16 %v85, %v85
    %v103 = vpack.c.bf16 %v84, %v84
    %v104 = vpack.c.bf16 %v86, %v86
    %v105 = vpack.c.bf16 %v93, %v93
    %v106 = vpack.c.bf16 %v94, %v94
    %v107 = vld [vmem:[%s4] sm:$0xf]
    %v108 = vld [vmem:[%s4 + $0x4] sm:$0xf]
    %v109 = vld [vmem:[%s4 + $0x8] sm:$0xf]
    %v110 = vld [vmem:[%s4 + $0xc] sm:$0xf]
    %v111 = vld [vmem:[%s4 + $0x10] sm:$0xf]
    %v112 = vld [vmem:[%s4 + $0x14] sm:$0xf]
    %v113 = vld [vmem:[%s4 + $0x18] sm:$0xf]
    %v114 = vld [vmem:[%s4 + $0x1c] sm:$0xf]
    %v115 = vld [vmem:[%s4 + $0x20] sm:$0xf]
    %v116 = vld [vmem:[%s4 + $0x24] sm:$0xf]
    %v117 = vld [vmem:[%s4 + $0x28] sm:$0xf]
    %v118 = vld [vmem:[%s4 + $0x2c] sm:$0xf]
    %v119 = vld [vmem:[%s4 + $0x30] sm:$0xf]
    %v120 = vld [vmem:[%s4 + $0x34] sm:$0xf]
    %v121 = vld [vmem:[%s4 + $0x38] sm:$0xf]
    %v122 = vld [vmem:[%s4 + $0x3c] sm:$0xf]
    %v123 = vld [vmem:[%s4 + $0x40] sm:$0xf]
    %v124 = vld [vmem:[%s4 + $0x44] sm:$0xf]
    %v125 = vld [vmem:[%s4 + $0x48] sm:$0xf]
    %v126 = vld [vmem:[%s4 + $0x4c] sm:$0xf]
    %v127 = vld [vmem:[%s4 + $0x50] sm:$0xf]
    %v128 = vld [vmem:[%s4 + $0x54] sm:$0xf]
    %v129 = vld [vmem:[%s4 + $0x58] sm:$0xf]
    %v130 = vld [vmem:[%s4 + $0x5c] sm:$0xf]
    %v131 = vld [vmem:[%s4 + $0x60] sm:$0xf]
    %v132 = vld [vmem:[%s4 + $0x64] sm:$0xf]
    %v133 = vld [vmem:[%s4 + $0x68] sm:$0xf]
    %v134 = vld [vmem:[%s4 + $0x6c] sm:$0xf]
    %v135 = vld [vmem:[%s4 + $0x70] sm:$0xf]
    %v136 = vld [vmem:[%s4 + $0x74] sm:$0xf]
    %v137 = vld [vmem:[%s4 + $0x78] sm:$0xf]
    %v138 = vld [vmem:[%s4 + $0x7c] sm:$0xf]
    %v139 = vld [vmem:[%s4 + $0x80] sm:$0xf]
    %v140 = vld [vmem:[%s4 + $0x84] sm:$0xf]
    %v141 = vld [vmem:[%s4 + $0x88] sm:$0xf]
    %v142 = vld [vmem:[%s4 + $0x8c] sm:$0xf]
    %v143 = vld [vmem:[%s4 + $0x90] sm:$0xf]
    %v144 = vld [vmem:[%s4 + $0x94] sm:$0xf]
    %v145 = vld [vmem:[%s4 + $0x98] sm:$0xf]
    %v146 = vld [vmem:[%s4 + $0x9c] sm:$0xf]
    %v147 = vld [vmem:[%s4 + $0xa0] sm:$0xf]
    %v148 = vld [vmem:[%s4 + $0xa4] sm:$0xf]
    %v149 = vld [vmem:[%s4 + $0xa8] sm:$0xf]
    %v150 = vld [vmem:[%s4 + $0xac] sm:$0xf]
    %v151 = vld [vmem:[%s4 + $0xb0] sm:$0xf]
    %v152 = vld [vmem:[%s4 + $0xb4] sm:$0xf]
    %v153 = vld [vmem:[%s4 + $0xb8] sm:$0xf]
    %v154 = vld [vmem:[%s4 + $0xbc] sm:$0xf]
    %v155 = vld [vmem:[%s4 + $0xc0] sm:$0xf]
    %v156 = vld [vmem:[%s4 + $0xc4] sm:$0xf]
    %v157 = vld [vmem:[%s4 + $0xc8] sm:$0xf]
    %v158 = vld [vmem:[%s4 + $0xcc] sm:$0xf]
    %v159 = vld [vmem:[%s4 + $0xd0] sm:$0xf]
    %v160 = vld [vmem:[%s4 + $0xd4] sm:$0xf]
    %v161 = vld [vmem:[%s4 + $0xd8] sm:$0xf]
    %v162 = vld [vmem:[%s4 + $0xdc] sm:$0xf]
    %v163 = vld [vmem:[%s4 + $0xe0] sm:$0xf]
    %v164 = vld [vmem:[%s4 + $0xe4] sm:$0xf]
    %v165 = vld [vmem:[%s4 + $0xe8] sm:$0xf]
    %v166 = vld [vmem:[%s4 + $0xec] sm:$0xf]
    %v167 = vld [vmem:[%s4 + $0xf0] sm:$0xf]
    %v168 = vld [vmem:[%s4 + $0xf4] sm:$0xf]
    %v169 = vld [vmem:[%s4 + $0xf8] sm:$0xf]
    %v170 = vld [vmem:[%s4 + $0xfc] sm:$0xf]
    %v171 = vld [vmem:[%s4 + $0x100] sm:$0xf]
    %v172 = vld [vmem:[%s4 + $0x104] sm:$0xf]
    %v173 = vld [vmem:[%s4 + $0x108] sm:$0xf]
    %v174 = vld [vmem:[%s4 + $0x10c] sm:$0xf]
    %v175 = vld [vmem:[%s4 + $0x110] sm:$0xf]
    %v176 = vld [vmem:[%s4 + $0x114] sm:$0xf]
    %v177 = vld [vmem:[%s4 + $0x118] sm:$0xf]
    %v178 = vld [vmem:[%s4 + $0x11c] sm:$0xf]
    %v179 = vld [vmem:[%s4 + $0x120] sm:$0xf]
    %v180 = vld [vmem:[%s4 + $0x124] sm:$0xf]
    %v181 = vld [vmem:[%s4 + $0x128] sm:$0xf]
    %v182 = vld [vmem:[%s4 + $0x12c] sm:$0xf]
    %v183 = vld [vmem:[%s4 + $0x130] sm:$0xf]
    %v184 = vld [vmem:[%s4 + $0x134] sm:$0xf]
    %v185 = vld [vmem:[%s4 + $0x138] sm:$0xf]
    %v186 = vld [vmem:[%s4 + $0x13c] sm:$0xf]
    %v187 = vld [vmem:[%s4 + $0x140] sm:$0xf]
    %v188 = vld [vmem:[%s4 + $0x144] sm:$0xf]
    %v189 = vld [vmem:[%s4 + $0x148] sm:$0xf]
    %v190 = vld [vmem:[%s4 + $0x14c] sm:$0xf]
    %v191 = vld [vmem:[%s4 + $0x150] sm:$0xf]
    %v192 = vld [vmem:[%s4 + $0x154] sm:$0xf]
    %v193 = vld [vmem:[%s4 + $0x158] sm:$0xf]
    %v194 = vld [vmem:[%s4 + $0x15c] sm:$0xf]
    %v195 = vld [vmem:[%s4 + $0x160] sm:$0xf]
    %v196 = vld [vmem:[%s4 + $0x164] sm:$0xf]
    %v197 = vld [vmem:[%s4 + $0x168] sm:$0xf]
    %v198 = vld [vmem:[%s4 + $0x16c] sm:$0xf]
    %v199 = vld [vmem:[%s4 + $0x170] sm:$0xf]
    %v200 = vld [vmem:[%s4 + $0x174] sm:$0xf]
    %v201 = vld [vmem:[%s4 + $0x178] sm:$0xf]
    %v202 = vld [vmem:[%s4 + $0x17c] sm:$0xf]
    %v203 = vld [vmem:[%s5] sm:$0x1]
    %v205 = vlaneseq
    %v206 = vshrl.u32 %v205, 7
    %v207 = vsub.s32 0, %v206
    %v208 = vrot.slane %v203, %v207
    %v306 = vunpack.c.l.b16 %v107
    %v307 = vunpack.c.l.b16 %v108
    %v308 = vunpack.c.l.b16 %v109
    %v309 = vunpack.c.l.b16 %v110
    %v310 = vunpack.c.l.b16 %v111
    %v311 = vunpack.c.l.b16 %v112
    %v312 = vunpack.c.l.b16 %v113
    %v313 = vunpack.c.l.b16 %v114
    %v314 = vunpack.c.l.b16 %v115
    %v315 = vunpack.c.l.b16 %v116
    %v316 = vunpack.c.l.b16 %v117
    %v317 = vunpack.c.l.b16 %v118
    %v318 = vunpack.c.l.b16 %v119
    %v319 = vunpack.c.l.b16 %v120
    %v320 = vunpack.c.l.b16 %v121
    %v321 = vunpack.c.l.b16 %v122
    %v322 = vunpack.c.l.b16 %v123
    %v323 = vunpack.c.l.b16 %v124
    %v324 = vunpack.c.l.b16 %v125
    %v325 = vunpack.c.l.b16 %v126
    %v326 = vunpack.c.l.b16 %v127
    %v327 = vunpack.c.l.b16 %v128
    %v328 = vunpack.c.l.b16 %v129
    %v329 = vunpack.c.l.b16 %v130
    %v330 = vunpack.c.l.b16 %v131
    %v331 = vunpack.c.l.b16 %v132
    %v332 = vunpack.c.l.b16 %v133
    %v333 = vunpack.c.l.b16 %v134
    %v334 = vunpack.c.l.b16 %v135
    %v335 = vunpack.c.l.b16 %v136
    %v336 = vunpack.c.l.b16 %v137
    %v337 = vunpack.c.l.b16 %v138
    %v338 = vunpack.c.l.b16 %v139
    %v339 = vunpack.c.l.b16 %v140
    %v340 = vunpack.c.l.b16 %v141
    %v341 = vunpack.c.l.b16 %v142
    %v342 = vunpack.c.l.b16 %v143
    %v343 = vunpack.c.l.b16 %v144
    %v344 = vunpack.c.l.b16 %v145
    %v345 = vunpack.c.l.b16 %v146
    %v346 = vunpack.c.l.b16 %v147
    %v347 = vunpack.c.l.b16 %v148
    %v348 = vunpack.c.l.b16 %v149
    %v349 = vunpack.c.l.b16 %v150
    %v350 = vunpack.c.l.b16 %v151
    %v351 = vunpack.c.l.b16 %v152
    %v352 = vunpack.c.l.b16 %v153
    %v353 = vunpack.c.l.b16 %v154
    %v354 = vunpack.c.l.b16 %v155
    %v355 = vunpack.c.l.b16 %v156
    %v356 = vunpack.c.l.b16 %v157
    %v357 = vunpack.c.l.b16 %v158
    %v358 = vunpack.c.l.b16 %v159
    %v359 = vunpack.c.l.b16 %v160
    %v360 = vunpack.c.l.b16 %v161
    %v361 = vunpack.c.l.b16 %v162
    %v362 = vunpack.c.l.b16 %v163
    %v363 = vunpack.c.l.b16 %v164
    %v364 = vunpack.c.l.b16 %v165
    %v365 = vunpack.c.l.b16 %v166
    %v366 = vunpack.c.l.b16 %v167
    %v367 = vunpack.c.l.b16 %v168
    %v368 = vunpack.c.l.b16 %v169
    %v369 = vunpack.c.l.b16 %v170
    %v370 = vunpack.c.l.b16 %v171
    %v371 = vunpack.c.l.b16 %v172
    %v372 = vunpack.c.l.b16 %v173
    %v373 = vunpack.c.l.b16 %v174
    %v374 = vunpack.c.l.b16 %v175
    %v375 = vunpack.c.l.b16 %v176
    %v376 = vunpack.c.l.b16 %v177
    %v377 = vunpack.c.l.b16 %v178
    %v378 = vunpack.c.l.b16 %v179
    %v379 = vunpack.c.l.b16 %v180
    %v380 = vunpack.c.l.b16 %v181
    %v381 = vunpack.c.l.b16 %v182
    %v382 = vunpack.c.l.b16 %v183
    %v383 = vunpack.c.l.b16 %v184
    %v384 = vunpack.c.l.b16 %v185
    %v385 = vunpack.c.l.b16 %v186
    %v386 = vunpack.c.l.b16 %v187
    %v387 = vunpack.c.l.b16 %v188
    %v388 = vunpack.c.l.b16 %v189
    %v389 = vunpack.c.l.b16 %v190
    %v390 = vunpack.c.l.b16 %v191
    %v391 = vunpack.c.l.b16 %v192
    %v392 = vunpack.c.l.b16 %v193
    %v393 = vunpack.c.l.b16 %v194
    %v394 = vunpack.c.l.b16 %v195
    %v395 = vunpack.c.l.b16 %v196
    %v396 = vunpack.c.l.b16 %v197
    %v397 = vunpack.c.l.b16 %v198
    %v398 = vunpack.c.l.b16 %v199
    %v399 = vunpack.c.l.b16 %v200
    %v400 = vunpack.c.l.b16 %v201
    %v401 = vunpack.c.l.b16 %v202
    %v402 = vpack.c.b16 %v307, %v306
    %v403 = vpack.c.b16 %v309, %v308
    %v404 = vpack.c.b16 %v311, %v310
    %v405 = vpack.c.b16 %v313, %v312
    %v406 = vpack.c.b16 %v315, %v314
    %v407 = vpack.c.b16 %v317, %v316
    %v408 = vpack.c.b16 %v319, %v318
    %v409 = vpack.c.b16 %v321, %v320
    %v410 = vpack.c.b16 %v323, %v322
    %v411 = vpack.c.b16 %v325, %v324
    %v412 = vpack.c.b16 %v327, %v326
    %v413 = vpack.c.b16 %v329, %v328
    %v414 = vpack.c.b16 %v331, %v330
    %v415 = vpack.c.b16 %v333, %v332
    %v416 = vpack.c.b16 %v335, %v334
    %v417 = vpack.c.b16 %v337, %v336
    %v418 = vpack.c.b16 %v339, %v338
    %v419 = vpack.c.b16 %v341, %v340
    %v420 = vpack.c.b16 %v343, %v342
    %v421 = vpack.c.b16 %v345, %v344
    %v422 = vpack.c.b16 %v347, %v346
    %v423 = vpack.c.b16 %v349, %v348
    %v424 = vpack.c.b16 %v351, %v350
    %v425 = vpack.c.b16 %v353, %v352
    %v426 = vpack.c.b16 %v355, %v354
    %v427 = vpack.c.b16 %v357, %v356
    %v428 = vpack.c.b16 %v359, %v358
    %v429 = vpack.c.b16 %v361, %v360
    %v430 = vpack.c.b16 %v363, %v362
    %v431 = vpack.c.b16 %v365, %v364
    %v432 = vpack.c.b16 %v367, %v366
    %v433 = vpack.c.b16 %v369, %v368
    %v434 = vpack.c.b16 %v371, %v370
    %v435 = vpack.c.b16 %v373, %v372
    %v436 = vpack.c.b16 %v375, %v374
    %v437 = vpack.c.b16 %v377, %v376
    %v438 = vpack.c.b16 %v379, %v378
    %v439 = vpack.c.b16 %v381, %v380
    %v440 = vpack.c.b16 %v383, %v382
    %v441 = vpack.c.b16 %v385, %v384
    %v442 = vpack.c.b16 %v387, %v386
    %v443 = vpack.c.b16 %v389, %v388
    %v444 = vpack.c.b16 %v391, %v390
    %v445 = vpack.c.b16 %v393, %v392
    %v446 = vpack.c.b16 %v395, %v394
    %v447 = vpack.c.b16 %v397, %v396
    %v448 = vpack.c.b16 %v399, %v398
    %v449 = vpack.c.b16 %v401, %v400
    %498 = vmatprep.subr.bf16.mxu0 0
    %499 = vmatpush1.bf16.msra.mxu0 %v402
    %500 = vmatprep.subr.bf16.mxu0 0
    %501 = vmatpush1.bf16.msra.mxu0 %v403
    %502 = vmatprep.subr.bf16.mxu0 0
    %503 = vmatpush1.bf16.msra.mxu0 %v404
    %504 = vmatprep.subr.bf16.mxu0 0
    %505 = vmatpush1.bf16.msra.mxu0 %v405
    %506 = vmatprep.subr.bf16.mxu0 0
    %507 = vmatpush1.bf16.msra.mxu0 %v406
    %508 = vmatprep.subr.bf16.mxu0 0
    %509 = vmatpush1.bf16.msra.mxu0 %v407
    %510 = vmatprep.subr.bf16.mxu0 0
    %511 = vmatpush1.bf16.msra.mxu0 %v408
    %512 = vmatprep.subr.bf16.mxu0 0
    %513 = vmatpush1.bf16.msra.mxu0 %v409
    %514 = vmatprep.subr.bf16.mxu0 0
    %515 = vmatpush1.bf16.msra.mxu0 %v410
    %516 = vmatprep.subr.bf16.mxu0 0
    %517 = vmatpush1.bf16.msra.mxu0 %v411
    %518 = vmatprep.subr.bf16.mxu0 0
    %519 = vmatpush1.bf16.msra.mxu0 %v412
    %520 = vmatprep.subr.bf16.mxu0 0
    %521 = vmatpush1.bf16.msra.mxu0 %v413
    %522 = vmatprep.subr.bf16.mxu0 0
    %523 = vmatpush1.bf16.msra.mxu0 %v414
    %524 = vmatprep.subr.bf16.mxu0 0
    %525 = vmatpush1.bf16.msra.mxu0 %v415
    %526 = vmatprep.subr.bf16.mxu0 0
    %527 = vmatpush1.bf16.msra.mxu0 %v416
    %528 = vmatprep.subr.bf16.mxu0 0
    %529 = vmatpush1.bf16.msra.mxu0 %v417
    %530 = vmatprep.mubr.bf16.mxu0 %v102
    %531 = vmatmul.mubr.bf16.gmra.mrb[0].mxu0 %v101
    %v532 = vpop.f32.mrb[0].mxu0
    %v533 = vadd.f32 %v208, %v532
    %v534 = vpop.f32.mrb[0].mxu0
    %v535 = vpop.f32.mrb[0].mxu0
    %v536 = vpop.f32.mrb[0].mxu0
    %537 = vdwg.mxu0
    %538 = vmatprep.subr.bf16.mxu0 0
    %539 = vmatpush1.bf16.msra.mxu0 %v418
    %540 = vmatprep.subr.bf16.mxu0 0
    %541 = vmatpush1.bf16.msra.mxu0 %v419
    %542 = vmatprep.subr.bf16.mxu0 0
    %543 = vmatpush1.bf16.msra.mxu0 %v420
    %544 = vmatprep.subr.bf16.mxu0 0
    %545 = vmatpush1.bf16.msra.mxu0 %v421
    %546 = vmatprep.subr.bf16.mxu0 0
    %547 = vmatpush1.bf16.msra.mxu0 %v422
    %548 = vmatprep.subr.bf16.mxu0 0
    %549 = vmatpush1.bf16.msra.mxu0 %v423
    %550 = vmatprep.subr.bf16.mxu0 0
    %551 = vmatpush1.bf16.msra.mxu0 %v424
    %552 = vmatprep.subr.bf16.mxu0 0
    %553 = vmatpush1.bf16.msra.mxu0 %v425
    %554 = vmatprep.subr.bf16.mxu0 0
    %555 = vmatpush1.bf16.msra.mxu0 %v426
    %556 = vmatprep.subr.bf16.mxu0 0
    %557 = vmatpush1.bf16.msra.mxu0 %v427
    %558 = vmatprep.subr.bf16.mxu0 0
    %559 = vmatpush1.bf16.msra.mxu0 %v428
    %560 = vmatprep.subr.bf16.mxu0 0
    %561 = vmatpush1.bf16.msra.mxu0 %v429
    %562 = vmatprep.subr.bf16.mxu0 0
    %563 = vmatpush1.bf16.msra.mxu0 %v430
    %564 = vmatprep.subr.bf16.mxu0 0
    %565 = vmatpush1.bf16.msra.mxu0 %v431
    %566 = vmatprep.subr.bf16.mxu0 0
    %567 = vmatpush1.bf16.msra.mxu0 %v432
    %568 = vmatprep.subr.bf16.mxu0 0
    %569 = vmatpush1.bf16.msra.mxu0 %v433
    %570 = vmatprep.mubr.bf16.mxu0 %v104
    %571 = vmatmul.mubr.bf16.gmra.mrb[0].mxu0 %v103
    %v572 = vpop.f32.mrb[0].mxu0
    %v573 = vadd.f32 %v533, %v572
    %v574 = vpop.f32.mrb[0].mxu0
    %v575 = vpop.f32.mrb[0].mxu0
    %v576 = vpop.f32.mrb[0].mxu0
    %577 = vdwg.mxu0
    %578 = vmatprep.subr.bf16.mxu0 0
    %579 = vmatpush1.bf16.msra.mxu0 %v434
    %580 = vmatprep.subr.bf16.mxu0 0
    %581 = vmatpush1.bf16.msra.mxu0 %v435
    %582 = vmatprep.subr.bf16.mxu0 0
    %583 = vmatpush1.bf16.msra.mxu0 %v436
    %584 = vmatprep.subr.bf16.mxu0 0
    %585 = vmatpush1.bf16.msra.mxu0 %v437
    %586 = vmatprep.subr.bf16.mxu0 0
    %587 = vmatpush1.bf16.msra.mxu0 %v438
    %588 = vmatprep.subr.bf16.mxu0 0
    %589 = vmatpush1.bf16.msra.mxu0 %v439
    %590 = vmatprep.subr.bf16.mxu0 0
    %591 = vmatpush1.bf16.msra.mxu0 %v440
    %592 = vmatprep.subr.bf16.mxu0 0
    %593 = vmatpush1.bf16.msra.mxu0 %v441
    %594 = vmatprep.subr.bf16.mxu0 0
    %595 = vmatpush1.bf16.msra.mxu0 %v442
    %596 = vmatprep.subr.bf16.mxu0 0
    %597 = vmatpush1.bf16.msra.mxu0 %v443
    %598 = vmatprep.subr.bf16.mxu0 0
    %599 = vmatpush1.bf16.msra.mxu0 %v444
    %600 = vmatprep.subr.bf16.mxu0 0
    %601 = vmatpush1.bf16.msra.mxu0 %v445
    %602 = vmatprep.subr.bf16.mxu0 0
    %603 = vmatpush1.bf16.msra.mxu0 %v446
    %604 = vmatprep.subr.bf16.mxu0 0
    %605 = vmatpush1.bf16.msra.mxu0 %v447
    %606 = vmatprep.subr.bf16.mxu0 0
    %607 = vmatpush1.bf16.msra.mxu0 %v448
    %608 = vmatprep.subr.bf16.mxu0 0
    %609 = vmatpush1.bf16.msra.mxu0 %v449
    %610 = vmatprep.mubr.bf16.mxu0 %v106
    %611 = vmatmul.mubr.bf16.gmra.mrb[0].mxu0 %v105
    %v612 = vpop.f32.mrb[0].mxu0
    %v613 = vadd.f32 %v573, %v612
    %v614 = vpop.f32.mrb[0].mxu0
    %v615 = vpop.f32.mrb[0].mxu0
    %v616 = vpop.f32.mrb[0].mxu0
    %617 = vdwg.mxu0
    %v618 = vpack.c.bf16 %v613, %v613
    %v619 = vld [vmem:[#allocation2] sm:$0xf]
    %v620 = vld [vmem:[#allocation2 + $0x4] sm:$0xf]
    %v621 = vld [vmem:[#allocation2 + $0x8] sm:$0xf]
    %v622 = vld [vmem:[#allocation2 + $0xc] sm:$0xf]
    %v623 = vld [vmem:[#allocation2 + $0x10] sm:$0xf]
    %v624 = vld [vmem:[#allocation2 + $0x14] sm:$0xf]
    %v625 = vld [vmem:[#allocation2 + $0x18] sm:$0xf]
    %v626 = vld [vmem:[#allocation2 + $0x1c] sm:$0xf]
    %v627 = vld [vmem:[#allocation2 + $0x20] sm:$0xf]
    %v628 = vld [vmem:[#allocation2 + $0x24] sm:$0xf]
    %v629 = vld [vmem:[#allocation2 + $0x28] sm:$0xf]
    %v630 = vld [vmem:[#allocation2 + $0x2c] sm:$0xf]
    %v631 = vld [vmem:[#allocation2 + $0x30] sm:$0xf]
    %v632 = vld [vmem:[#allocation2 + $0x34] sm:$0xf]
    %v633 = vld [vmem:[#allocation2 + $0x38] sm:$0xf]
    %v634 = vld [vmem:[#allocation2 + $0x3c] sm:$0xf]
    %v635 = vld [vmem:[%s7] sm:$0x1]
    %v637 = vlaneseq
    %v638 = vshrl.u32 %v637, 7
    %v639 = vsub.s32 0, %v638
    %v640 = vrot.slane %v635, %v639
    %v658 = vunpack.c.l.b16 %v619
    %v659 = vunpack.c.l.b16 %v620
    %v660 = vunpack.c.l.b16 %v621
    %v661 = vunpack.c.l.b16 %v622
    %v662 = vunpack.c.l.b16 %v623
    %v663 = vunpack.c.l.b16 %v624
    %v664 = vunpack.c.l.b16 %v625
    %v665 = vunpack.c.l.b16 %v626
    %v666 = vunpack.c.l.b16 %v627
    %v667 = vunpack.c.l.b16 %v628
    %v668 = vunpack.c.l.b16 %v629
    %v669 = vunpack.c.l.b16 %v630
    %v670 = vunpack.c.l.b16 %v631
    %v671 = vunpack.c.l.b16 %v632
    %v672 = vunpack.c.l.b16 %v633
    %v673 = vunpack.c.l.b16 %v634
    %v674 = vpack.c.b16 %v659, %v658
    %v675 = vpack.c.b16 %v661, %v660
    %v676 = vpack.c.b16 %v663, %v662
    %v677 = vpack.c.b16 %v665, %v664
    %v678 = vpack.c.b16 %v667, %v666
    %v679 = vpack.c.b16 %v669, %v668
    %v680 = vpack.c.b16 %v671, %v670
    %v681 = vpack.c.b16 %v673, %v672
    %690 = vmatprep.subr.bf16.mxu0 0
    %691 = vmatpush1.bf16.msra.mxu0 %v674
    %692 = vmatprep.subr.bf16.mxu0 0
    %693 = vmatpush1.bf16.msra.mxu0 %v675
    %694 = vmatprep.subr.bf16.mxu0 0
    %695 = vmatpush1.bf16.msra.mxu0 %v676
    %696 = vmatprep.subr.bf16.mxu0 0
    %697 = vmatpush1.bf16.msra.mxu0 %v677
    %698 = vmatprep.subr.bf16.mxu0 0
    %699 = vmatpush1.bf16.msra.mxu0 %v678
    %700 = vmatprep.subr.bf16.mxu0 0
    %701 = vmatpush1.bf16.msra.mxu0 %v679
    %702 = vmatprep.subr.bf16.mxu0 0
    %703 = vmatpush1.bf16.msra.mxu0 %v680
    %704 = vmatprep.subr.bf16.mxu0 0
    %705 = vmatpush1.bf16.msra.mxu0 %v681
    %706 = vmatprep.subr.bf16.mxu0 0
    %707 = vmatpush1.bf16.msra.mxu0 0
    %708 = vmatprep.subr.bf16.mxu0 0
    %709 = vmatpush1.bf16.msra.mxu0 0
    %710 = vmatprep.subr.bf16.mxu0 0
    %711 = vmatpush1.bf16.msra.mxu0 0
    %712 = vmatprep.subr.bf16.mxu0 0
    %713 = vmatpush1.bf16.msra.mxu0 0
    %714 = vmatprep.subr.bf16.mxu0 0
    %715 = vmatpush1.bf16.msra.mxu0 0
    %716 = vmatprep.subr.bf16.mxu0 0
    %717 = vmatpush1.bf16.msra.mxu0 0
    %718 = vmatprep.subr.bf16.mxu0 0
    %719 = vmatpush1.bf16.msra.mxu0 0
    %720 = vmatprep.subr.bf16.mxu0 0
    %721 = vmatpush1.bf16.msra.mxu0 0
    %722 = vmatprep.mubr.bf16.mxu0 0
    %723 = vmatmul.mubr.bf16.gmra.mrb[0].mxu0 %v618
    %v724 = vpop.f32.mrb[0].mxu0
    %v725 = vadd.f32 %v640, %v724
    %v726 = vpop.f32.mrb[0].mxu0
    %v727 = vpop.f32.mrb[0].mxu0
    %v728 = vpop.f32.mrb[0].mxu0
    %729 = vdwg.mxu0
    %v730 = vld [vmem:[%s1] sm:$0x7f]
    %v731 = vld [vmem:[%s1 + $0x8] sm:$0x7f]
    %v734 = vcombine.high %v730, %v730
    %v736 = vunpack.c.l.s4 1966171168
    %v737 = vunpack.c.0.s8 %v736
    %v738 = vlaneseq
    %v739 = vshrl.u32 %v738, 7
    %v740 = vsub.s32 %v737, %v739
    %v741 = vrot.slane %v730, %v740
    %v743 = vunpack.c.l.s4 1966171168
    %v744 = vunpack.c.0.s8 %v743
    %v745 = vlaneseq
    %v746 = vshrl.u32 %v745, 7
    %v747 = vsub.s32 %v744, %v746
    %v748 = vrot.slane %v734, %v747
    %v749 = vcombine.high %v741, %v741
    %v750 = vcombine.high %v748, %v748
    %v752 = vunpack.c.l.s4 1966171168
    %v753 = vunpack.c.0.s8 %v752
    %v754 = vlaneseq
    %v755 = vshrl.u32 %v754, 7
    %v756 = vsub.s32 %v753, %v755
    %v757 = vrot.slane %v741, %v756
    %v759 = vunpack.c.l.s4 1966171168
    %v760 = vunpack.c.0.s8 %v759
    %v761 = vlaneseq
    %v762 = vshrl.u32 %v761, 7
    %v763 = vsub.s32 %v760, %v762
    %v764 = vrot.slane %v748, %v763
    %v766 = vunpack.c.l.s4 1966171168
    %v767 = vunpack.c.0.s8 %v766
    %v768 = vlaneseq
    %v769 = vshrl.u32 %v768, 7
    %v770 = vsub.s32 %v767, %v769
    %v771 = vrot.slane %v749, %v770
    %v773 = vunpack.c.l.s4 1966171168
    %v774 = vunpack.c.0.s8 %v773
    %v775 = vlaneseq
    %v776 = vshrl.u32 %v775, 7
    %v777 = vsub.s32 %v774, %v776
    %v778 = vrot.slane %v750, %v777
    %v779 = vcombine.high %v757, %v757
    %v780 = vcombine.high %v764, %v764
    %v781 = vcombine.high %v771, %v771
    %v782 = vcombine.high %v731, %v731
    %v784 = vunpack.c.l.s4 1966171168
    %v785 = vunpack.c.0.s8 %v784
    %v786 = vlaneseq
    %v787 = vshrl.u32 %v786, 7
    %v788 = vsub.s32 %v785, %v787
    %v789 = vrot.slane %v731, %v788
    %v791 = vunpack.c.l.s4 1966171168
    %v792 = vunpack.c.0.s8 %v791
    %v793 = vlaneseq
    %v794 = vshrl.u32 %v793, 7
    %v795 = vsub.s32 %v792, %v794
    %v796 = vrot.slane %v782, %v795
    %v797 = vcombine.high %v789, %v789
    %v798 = vcombine.high %v796, %v796
    %v800 = vunpack.c.l.s4 1966171168
    %v801 = vunpack.c.0.s8 %v800
    %v802 = vlaneseq
    %v803 = vshrl.u32 %v802, 7
    %v804 = vsub.s32 %v801, %v803
    %v805 = vrot.slane %v789, %v804
    %v807 = vunpack.c.l.s4 1966171168
    %v808 = vunpack.c.0.s8 %v807
    %v809 = vlaneseq
    %v810 = vshrl.u32 %v809, 7
    %v811 = vsub.s32 %v808, %v810
    %v812 = vrot.slane %v796, %v811
    %v814 = vunpack.c.l.s4 1966171168
    %v815 = vunpack.c.0.s8 %v814
    %v816 = vlaneseq
    %v817 = vshrl.u32 %v816, 7
    %v818 = vsub.s32 %v815, %v817
    %v819 = vrot.slane %v797, %v818
    %v821 = vunpack.c.l.s4 1966171168
    %v822 = vunpack.c.0.s8 %v821
    %v823 = vlaneseq
    %v824 = vshrl.u32 %v823, 7
    %v825 = vsub.s32 %v822, %v824
    %v826 = vrot.slane %v798, %v825
    %v827 = vcombine.high %v805, %v805
    %v828 = vcombine.high %v812, %v812
    %v829 = vcombine.high %v819, %v819
    %v830 = vcombine.low %v757, %v771
    %v831 = vcombine.low %v779, %v781
    %v832 = vcombine.low %v764, %v778
    %v833 = vcombine.low %v780, %v805
    %v835 = vunpack.c.l.s4 1966171168
    %v836 = vunpack.c.0.s8 %v835
    %v837 = vlaneseq
    %v838 = vshrl.u32 %v837, 7
    %v839 = vsub.s32 %v836, %v838
    %v840 = vrot.slane %v830, %v839
    %v842 = vunpack.c.l.s4 1966171168
    %v843 = vunpack.c.0.s8 %v842
    %v844 = vlaneseq
    %v845 = vshrl.u32 %v844, 7
    %v846 = vsub.s32 %v843, %v845
    %v847 = vrot.slane %v831, %v846
    %v849 = vunpack.c.l.s4 1966171168
    %v850 = vunpack.c.0.s8 %v849
    %v851 = vlaneseq
    %v852 = vshrl.u32 %v851, 7
    %v853 = vsub.s32 %v850, %v852
    %v854 = vrot.slane %v832, %v853
    %v856 = vunpack.c.l.s4 1966171168
    %v857 = vunpack.c.0.s8 %v856
    %v858 = vlaneseq
    %v859 = vshrl.u32 %v858, 7
    %v860 = vsub.s32 %v857, %v859
    %v861 = vrot.slane %v833, %v860
    %v862 = vcombine.low %v840, %v847
    %v863 = vcombine.low %v854, %v861
    %v865 = vunpack.c.l.s4 1966171168
    %v866 = vunpack.c.0.s8 %v865
    %v867 = vlaneseq
    %v868 = vshrl.u32 %v867, 7
    %v869 = vsub.s32 %v866, %v868
    %v870 = vrot.slane %v862, %v869
    %v872 = vunpack.c.l.s4 1966171168
    %v873 = vunpack.c.0.s8 %v872
    %v874 = vlaneseq
    %v875 = vshrl.u32 %v874, 7
    %v876 = vsub.s32 %v873, %v875
    %v877 = vrot.slane %v863, %v876
    %v878 = vcombine.low %v870, %v877
    %v879 = vcombine.low %v819, %v827
    %v880 = vcombine.low %v829, %v812
    %v881 = vcombine.low %v826, %v828
    %v883 = vunpack.c.l.s4 1966171168
    %v884 = vunpack.c.0.s8 %v883
    %v885 = vlaneseq
    %v886 = vshrl.u32 %v885, 7
    %v887 = vsub.s32 %v884, %v886
    %v888 = vrot.slane %v879, %v887
    %v890 = vunpack.c.l.s4 1966171168
    %v891 = vunpack.c.0.s8 %v890
    %v892 = vlaneseq
    %v893 = vshrl.u32 %v892, 7
    %v894 = vsub.s32 %v891, %v893
    %v895 = vrot.slane %v880, %v894
    %v897 = vunpack.c.l.s4 1966171168
    %v898 = vunpack.c.0.s8 %v897
    %v899 = vlaneseq
    %v900 = vshrl.u32 %v899, 7
    %v901 = vsub.s32 %v898, %v900
    %v902 = vrot.slane %v881, %v901
    %v903 = vcombine.low %v888, %v895
    %v905 = vunpack.c.l.s4 1966171168
    %v906 = vunpack.c.0.s8 %v905
    %v907 = vlaneseq
    %v908 = vshrl.u32 %v907, 7
    %v909 = vsub.s32 %v906, %v908
    %v910 = vrot.slane %v903, %v909
    %v912 = vunpack.c.l.s4 1966171168
    %v913 = vunpack.c.0.s8 %v912
    %v914 = vlaneseq
    %v915 = vshrl.u32 %v914, 7
    %v916 = vsub.s32 %v913, %v915
    %v917 = vrot.slane %v902, %v916
    %v918 = vcombine.low %v910, %v917
    %v921 = vpack.c.bf16 %v918, %v878
    %v922 = vld [vmem:[#allocation4] sm:$0xf]
    %v923 = vld [vmem:[#allocation4 + $0x4] sm:$0xf]
    %v924 = vld [vmem:[#allocation4 + $0x8] sm:$0xf]
    %v925 = vld [vmem:[#allocation4 + $0xc] sm:$0xf]
    %v926 = vld [vmem:[#allocation4 + $0x10] sm:$0xf]
    %v927 = vld [vmem:[#allocation4 + $0x14] sm:$0xf]
    %v928 = vld [vmem:[#allocation4 + $0x18] sm:$0xf]
    %v929 = vld [vmem:[#allocation4 + $0x1c] sm:$0xf]
    %v930 = vld [vmem:[#allocation4 + $0x20] sm:$0xf]
    %v931 = vld [vmem:[#allocation4 + $0x24] sm:$0xf]
    %v932 = vld [vmem:[#allocation4 + $0x28] sm:$0xf]
    %v933 = vld [vmem:[#allocation4 + $0x2c] sm:$0xf]
    %v934 = vld [vmem:[#allocation4 + $0x30] sm:$0xf]
    %v935 = vld [vmem:[#allocation4 + $0x34] sm:$0xf]
    %v936 = vld [vmem:[#allocation4 + $0x38] sm:$0xf]
    %v937 = vld [vmem:[#allocation4 + $0x3c] sm:$0xf]
    %v938 = vld [vmem:[%s9] sm:$0x1]
    %v940 = vlaneseq
    %v941 = vshrl.u32 %v940, 7
    %v942 = vsub.s32 0, %v941
    %v943 = vrot.slane %v938, %v942
    %v961 = vunpack.c.l.b16 %v922
    %v962 = vunpack.c.l.b16 %v923
    %v963 = vunpack.c.l.b16 %v924
    %v964 = vunpack.c.l.b16 %v925
    %v965 = vunpack.c.l.b16 %v926
    %v966 = vunpack.c.l.b16 %v927
    %v967 = vunpack.c.l.b16 %v928
    %v968 = vunpack.c.l.b16 %v929
    %v969 = vunpack.c.l.b16 %v930
    %v970 = vunpack.c.l.b16 %v931
    %v971 = vunpack.c.l.b16 %v932
    %v972 = vunpack.c.l.b16 %v933
    %v973 = vunpack.c.l.b16 %v934
    %v974 = vunpack.c.l.b16 %v935
    %v975 = vunpack.c.l.b16 %v936
    %v976 = vunpack.c.l.b16 %v937
    %v977 = vpack.c.b16 %v962, %v961
    %v978 = vpack.c.b16 %v964, %v963
    %v979 = vpack.c.b16 %v966, %v965
    %v980 = vpack.c.b16 %v968, %v967
    %v981 = vpack.c.b16 %v970, %v969
    %v982 = vpack.c.b16 %v972, %v971
    %v983 = vpack.c.b16 %v974, %v973
    %v984 = vpack.c.b16 %v976, %v975
    %993 = vmatprep.subr.bf16.mxu0 0
    %994 = vmatpush1.bf16.msra.mxu0 %v977
    %995 = vmatprep.subr.bf16.mxu0 0
    %996 = vmatpush1.bf16.msra.mxu0 %v978
    %997 = vmatprep.subr.bf16.mxu0 0
    %998 = vmatpush1.bf16.msra.mxu0 %v979
    %999 = vmatprep.subr.bf16.mxu0 0
    %1000 = vmatpush1.bf16.msra.mxu0 %v980
    %1001 = vmatprep.subr.bf16.mxu0 0
    %1002 = vmatpush1.bf16.msra.mxu0 %v981
    %1003 = vmatprep.subr.bf16.mxu0 0
    %1004 = vmatpush1.bf16.msra.mxu0 %v982
    %1005 = vmatprep.subr.bf16.mxu0 0
    %1006 = vmatpush1.bf16.msra.mxu0 %v983
    %1007 = vmatprep.subr.bf16.mxu0 0
    %1008 = vmatpush1.bf16.msra.mxu0 %v984
    %1009 = vmatprep.subr.bf16.mxu0 0
    %1010 = vmatpush1.bf16.msra.mxu0 0
    %1011 = vmatprep.subr.bf16.mxu0 0
    %1012 = vmatpush1.bf16.msra.mxu0 0
    %1013 = vmatprep.subr.bf16.mxu0 0
    %1014 = vmatpush1.bf16.msra.mxu0 0
    %1015 = vmatprep.subr.bf16.mxu0 0
    %1016 = vmatpush1.bf16.msra.mxu0 0
    %1017 = vmatprep.subr.bf16.mxu0 0
    %1018 = vmatpush1.bf16.msra.mxu0 0
    %1019 = vmatprep.subr.bf16.mxu0 0
    %1020 = vmatpush1.bf16.msra.mxu0 0
    %1021 = vmatprep.subr.bf16.mxu0 0
    %1022 = vmatpush1.bf16.msra.mxu0 0
    %1023 = vmatprep.subr.bf16.mxu0 0
    %1024 = vmatpush1.bf16.msra.mxu0 0
    %1025 = vmatprep.mubr.bf16.mxu0 0
    %1026 = vmatmul.mubr.bf16.gmra.mrb[0].mxu0 %v921
    %v1027 = vpop.f32.mrb[0].mxu0
    %v1028 = vadd.f32 %v943, %v1027
    %v1029 = vpop.f32.mrb[0].mxu0
    %v1030 = vpop.f32.mrb[0].mxu0
    %v1031 = vadd.f32 %v943, %v1030
    %v1032 = vpop.f32.mrb[0].mxu0
    %1033 = vdwg.mxu0
    %v1036 = vcombine.high %v1028, %v1028
    %v1038 = vunpack.c.l.s4 1966171168
    %v1039 = vunpack.c.0.s8 %v1038
    %v1040 = vlaneseq
    %v1041 = vshrl.u32 %v1040, 7
    %v1042 = vsub.s32 %v1039, %v1041
    %v1043 = vrot.slane %v1028, %v1042
    %v1045 = vunpack.c.l.s4 1966171168
    %v1046 = vunpack.c.0.s8 %v1045
    %v1047 = vlaneseq
    %v1048 = vshrl.u32 %v1047, 7
    %v1049 = vsub.s32 %v1046, %v1048
    %v1050 = vrot.slane %v1036, %v1049
    %v1051 = vcombine.high %v1043, %v1043
    %v1052 = vcombine.high %v1050, %v1050
    %v1054 = vunpack.c.l.s4 1966171168
    %v1055 = vunpack.c.0.s8 %v1054
    %v1056 = vlaneseq
    %v1057 = vshrl.u32 %v1056, 7
    %v1058 = vsub.s32 %v1055, %v1057
    %v1059 = vrot.slane %v1043, %v1058
    %v1061 = vunpack.c.l.s4 1966171168
    %v1062 = vunpack.c.0.s8 %v1061
    %v1063 = vlaneseq
    %v1064 = vshrl.u32 %v1063, 7
    %v1065 = vsub.s32 %v1062, %v1064
    %v1066 = vrot.slane %v1050, %v1065
    %v1068 = vunpack.c.l.s4 1966171168
    %v1069 = vunpack.c.0.s8 %v1068
    %v1070 = vlaneseq
    %v1071 = vshrl.u32 %v1070, 7
    %v1072 = vsub.s32 %v1069, %v1071
    %v1073 = vrot.slane %v1051, %v1072
    %v1075 = vunpack.c.l.s4 1966171168
    %v1076 = vunpack.c.0.s8 %v1075
    %v1077 = vlaneseq
    %v1078 = vshrl.u32 %v1077, 7
    %v1079 = vsub.s32 %v1076, %v1078
    %v1080 = vrot.slane %v1052, %v1079
    %v1081 = vcombine.high %v1059, %v1059
    %v1082 = vcombine.high %v1066, %v1066
    %v1083 = vcombine.high %v1073, %v1073
    %v1084 = vcombine.high %v1080, %v1080
    %v1085 = vcombine.high %v1031, %v1031
    %v1087 = vunpack.c.l.s4 1966171168
    %v1088 = vunpack.c.0.s8 %v1087
    %v1089 = vlaneseq
    %v1090 = vshrl.u32 %v1089, 7
    %v1091 = vsub.s32 %v1088, %v1090
    %v1092 = vrot.slane %v1031, %v1091
    %v1094 = vunpack.c.l.s4 1966171168
    %v1095 = vunpack.c.0.s8 %v1094
    %v1096 = vlaneseq
    %v1097 = vshrl.u32 %v1096, 7
    %v1098 = vsub.s32 %v1095, %v1097
    %v1099 = vrot.slane %v1085, %v1098
    %v1100 = vcombine.high %v1092, %v1092
    %v1101 = vcombine.high %v1099, %v1099
    %v1103 = vunpack.c.l.s4 1966171168
    %v1104 = vunpack.c.0.s8 %v1103
    %v1105 = vlaneseq
    %v1106 = vshrl.u32 %v1105, 7
    %v1107 = vsub.s32 %v1104, %v1106
    %v1108 = vrot.slane %v1092, %v1107
    %v1110 = vunpack.c.l.s4 1966171168
    %v1111 = vunpack.c.0.s8 %v1110
    %v1112 = vlaneseq
    %v1113 = vshrl.u32 %v1112, 7
    %v1114 = vsub.s32 %v1111, %v1113
    %v1115 = vrot.slane %v1099, %v1114
    %v1117 = vunpack.c.l.s4 1966171168
    %v1118 = vunpack.c.0.s8 %v1117
    %v1119 = vlaneseq
    %v1120 = vshrl.u32 %v1119, 7
    %v1121 = vsub.s32 %v1118, %v1120
    %v1122 = vrot.slane %v1100, %v1121
    %v1124 = vunpack.c.l.s4 1966171168
    %v1125 = vunpack.c.0.s8 %v1124
    %v1126 = vlaneseq
    %v1127 = vshrl.u32 %v1126, 7
    %v1128 = vsub.s32 %v1125, %v1127
    %v1129 = vrot.slane %v1101, %v1128
    %v1130 = vcombine.high %v1108, %v1108
    %v1131 = vcombine.high %v1122, %v1122
    %v1146 = vld [vmem:[%s3] sm:$0xff]
    %v1147 = vld [vmem:[%s3 + $0x8] sm:$0xff]
    %v1150 = vunpack.c.l.s4 1966171168
    %v1151 = vunpack.c.0.s8 %v1150
    %v1152 = vlaneseq
    %v1153 = vshrl.u32 %v1152, 7
    %v1154 = vsub.s32 %v1151, %v1153
    %v1155 = vrot.slane %v725, %v1154
    %v1156 = vcombine.high %v1155, %v1155
    %v1158 = vunpack.c.l.s4 1966171168
    %v1159 = vunpack.c.0.s8 %v1158
    %v1160 = vlaneseq
    %v1161 = vshrl.u32 %v1160, 7
    %v1162 = vsub.s32 %v1159, %v1161
    %v1163 = vrot.slane %v1155, %v1162
    %v1165 = vunpack.c.l.s4 1966171168
    %v1166 = vunpack.c.0.s8 %v1165
    %v1167 = vlaneseq
    %v1168 = vshrl.u32 %v1167, 7
    %v1169 = vsub.s32 %v1166, %v1168
    %v1170 = vrot.slane %v1156, %v1169
    %v1173 = vadd.f32 %v1163, %v1146
    %v1174 = vadd.f32 %v1170, %v1146
    %v1176 = vcombine.high %v1146, %v1146
    %v1178 = vunpack.c.l.s4 1966171168
    %v1179 = vunpack.c.0.s8 %v1178
    %v1180 = vlaneseq
    %v1181 = vshrl.u32 %v1180, 7
    %v1182 = vsub.s32 %v1179, %v1181
    %v1183 = vrot.slane %v1146, %v1182
    %v1185 = vunpack.c.l.s4 1966171168
    %v1186 = vunpack.c.0.s8 %v1185
    %v1187 = vlaneseq
    %v1188 = vshrl.u32 %v1187, 7
    %v1189 = vsub.s32 %v1186, %v1188
    %v1190 = vrot.slane %v1176, %v1189
    %v1191 = vcombine.high %v1183, %v1183
    %v1192 = vcombine.high %v1190, %v1190
    %v1194 = vunpack.c.l.s4 1966171168
    %v1195 = vunpack.c.0.s8 %v1194
    %v1196 = vlaneseq
    %v1197 = vshrl.u32 %v1196, 7
    %v1198 = vsub.s32 %v1195, %v1197
    %v1199 = vrot.slane %v1183, %v1198
    %v1201 = vunpack.c.l.s4 1966171168
    %v1202 = vunpack.c.0.s8 %v1201
    %v1203 = vlaneseq
    %v1204 = vshrl.u32 %v1203, 7
    %v1205 = vsub.s32 %v1202, %v1204
    %v1206 = vrot.slane %v1190, %v1205
    %v1208 = vunpack.c.l.s4 1966171168
    %v1209 = vunpack.c.0.s8 %v1208
    %v1210 = vlaneseq
    %v1211 = vshrl.u32 %v1210, 7
    %v1212 = vsub.s32 %v1209, %v1211
    %v1213 = vrot.slane %v1191, %v1212
    %v1215 = vunpack.c.l.s4 1966171168
    %v1216 = vunpack.c.0.s8 %v1215
    %v1217 = vlaneseq
    %v1218 = vshrl.u32 %v1217, 7
    %v1219 = vsub.s32 %v1216, %v1218
    %v1220 = vrot.slane %v1192, %v1219
    %v1221 = vcombine.high %v1199, %v1199
    %v1222 = vcombine.high %v1206, %v1206
    %v1223 = vcombine.high %v1213, %v1213
    %v1224 = vcombine.high %v1220, %v1220
    %v1232 = vadd.f32 %v1059, %v1213
    %v1233 = vadd.f32 %v1073, %v1221
    %v1234 = vadd.f32 %v1081, %v1223
    %v1235 = vadd.f32 %v1083, %v1206
    %v1236 = vadd.f32 %v1066, %v1220
    %v1237 = vadd.f32 %v1080, %v1222
    %v1238 = vadd.f32 %v1082, %v1224
    %v1239 = vadd.f32 %v1084, %v1213
    %v1240 = vadd.f32 %v1108, %v1221
    %v1241 = vadd.f32 %v1122, %v1223
    %v1242 = vadd.f32 %v1130, %v1206
    %v1243 = vadd.f32 %v1131, %v1220
    %v1244 = vadd.f32 %v1115, %v1222
    %v1245 = vadd.f32 %v1129, %v1224
    %1246 = vst [vmem:[%s11] sm:$0x1] %v1173
    %1247 = vst [vmem:[%s11 + $0x8] sm:$0x1] %v1174
    %v1262 = vcombine.low %v1232, %v1233
    %v1263 = vcombine.low %v1234, %v1235
    %v1264 = vcombine.low %v1236, %v1237
    %v1266 = vunpack.c.l.s4 1966171168
    %v1267 = vunpack.c.0.s8 %v1266
    %v1268 = vlaneseq
    %v1269 = vshrl.u32 %v1268, 7
    %v1270 = vsub.s32 %v1267, %v1269
    %v1271 = vrot.slane %v1262, %v1270
    %v1273 = vunpack.c.l.s4 1966171168
    %v1274 = vunpack.c.0.s8 %v1273
    %v1275 = vlaneseq
    %v1276 = vshrl.u32 %v1275, 7
    %v1277 = vsub.s32 %v1274, %v1276
    %v1278 = vrot.slane %v1263, %v1277
    %v1280 = vunpack.c.l.s4 1966171168
    %v1281 = vunpack.c.0.s8 %v1280
    %v1282 = vlaneseq
    %v1283 = vshrl.u32 %v1282, 7
    %v1284 = vsub.s32 %v1281, %v1283
    %v1285 = vrot.slane %v1264, %v1284
    %v1287 = vunpack.c.l.s4 1966171168
    %v1288 = vunpack.c.0.s8 %v1287
    %v1289 = vlaneseq
    %v1290 = vshrl.u32 %v1289, 7
    %v1291 = vsub.s32 %v1288, %v1290
    %v1292 = vrot.slane %v1238, %v1291
    %v1293 = vcombine.low %v1271, %v1278
    %v1294 = vcombine.low %v1285, %v1292
    %v1296 = vunpack.c.l.s4 1966171168
    %v1297 = vunpack.c.0.s8 %v1296
    %v1298 = vlaneseq
    %v1299 = vshrl.u32 %v1298, 7
    %v1300 = vsub.s32 %v1297, %v1299
    %v1301 = vrot.slane %v1293, %v1300
    %v1303 = vunpack.c.l.s4 1966171168
    %v1304 = vunpack.c.0.s8 %v1303
    %v1305 = vlaneseq
    %v1306 = vshrl.u32 %v1305, 7
    %v1307 = vsub.s32 %v1304, %v1306
    %v1308 = vrot.slane %v1294, %v1307
    %v1309 = vcombine.low %v1301, %v1308
    %v1310 = vcombine.low %v1239, %v1240
    %v1311 = vcombine.low %v1241, %v1242
    %v1312 = vcombine.low %v1243, %v1244
    %v1314 = vunpack.c.l.s4 1966171168
    %v1315 = vunpack.c.0.s8 %v1314
    %v1316 = vlaneseq
    %v1317 = vshrl.u32 %v1316, 7
    %v1318 = vsub.s32 %v1315, %v1317
    %v1319 = vrot.slane %v1310, %v1318
    %v1321 = vunpack.c.l.s4 1966171168
    %v1322 = vunpack.c.0.s8 %v1321
    %v1323 = vlaneseq
    %v1324 = vshrl.u32 %v1323, 7
    %v1325 = vsub.s32 %v1322, %v1324
    %v1326 = vrot.slane %v1311, %v1325
    %v1328 = vunpack.c.l.s4 1966171168
    %v1329 = vunpack.c.0.s8 %v1328
    %v1330 = vlaneseq
    %v1331 = vshrl.u32 %v1330, 7
    %v1332 = vsub.s32 %v1329, %v1331
    %v1333 = vrot.slane %v1312, %v1332
    %v1335 = vunpack.c.l.s4 1966171168
    %v1336 = vunpack.c.0.s8 %v1335
    %v1337 = vlaneseq
    %v1338 = vshrl.u32 %v1337, 7
    %v1339 = vsub.s32 %v1336, %v1338
    %v1340 = vrot.slane %v1245, %v1339
    %v1341 = vcombine.low %v1319, %v1326
    %v1342 = vcombine.low %v1333, %v1340
    %v1344 = vunpack.c.l.s4 1966171168
    %v1345 = vunpack.c.0.s8 %v1344
    %v1346 = vlaneseq
    %v1347 = vshrl.u32 %v1346, 7
    %v1348 = vsub.s32 %v1345, %v1347
    %v1349 = vrot.slane %v1341, %v1348
    %v1351 = vunpack.c.l.s4 1966171168
    %v1352 = vunpack.c.0.s8 %v1351
    %v1353 = vlaneseq
    %v1354 = vshrl.u32 %v1353, 7
    %v1355 = vsub.s32 %v1352, %v1354
    %v1356 = vrot.slane %v1342, %v1355
    %v1357 = vcombine.low %v1349, %v1356
    %1360 = vst [vmem:[%s11 + $0x1] sm:$0x7f] %v1309
    %1361 = vst [vmem:[%s11 + $0x9] sm:$0x7f] %v1357
    %1362 = vst [vmem:[%s10] sm:$0x1] %v1173
    %1363 = vst [vmem:[%s10 + $0x10] sm:$0x1] %v1174
    %1364 = vst [vmem:[%s10 + $0x1] sm:$0x7f] %v1309
    %1365 = vst [vmem:[%s10 + $0x11] sm:$0x7f] %v1357
    %v1366 = vld [vmem:[%s2] sm:$0xff]
    %v1367 = vld [vmem:[%s2 + $0x8] sm:$0xff]
    %v1368 = vadd.f32 %v1366, %v1147
    %v1369 = vadd.f32 %v1367, %v1147
    %1370 = vst [vmem:[%s10 + $0x8] sm:$0xff] %v1368
    %1371 = vst [vmem:[%s10 + $0x18] sm:$0xff] %v1369
    // Predicated region
    $region50: #{cap_bench_train_forward.3} parent=1 // pred_check
      _
    $region51: #{cap_bench_train_forward.3} parent=1 // pred_check_branch
      %1373 = sbr.rel (0) target = $region53
    $region52: #{cap_bench_train_forward.3} parent=1 // pred_region
      _
    $region53: #{cap_bench_train_forward.3} parent=1 // pred_fallthru
      _
    // Predicated region
    $region54: #{cap_bench_train_forward.3} parent=1 // pred_check
      _
    $region55: #{cap_bench_train_forward.3} parent=1 // pred_check_branch
      %1375 = sbr.rel (0) target = $region57
    $region56: #{cap_bench_train_forward.3} parent=1 // pred_region
      _
    $region57: #{cap_bench_train_forward.3} parent=1 // pred_fallthru
      _
    // Predicated region
    $region58: #{cap_bench_train_forward.3} parent=1 // pred_check
      _
    $region59: #{cap_bench_train_forward.3} parent=1 // pred_check_branch
      %1377 = sbr.rel (0) target = $region61
    $region60: #{cap_bench_train_forward.3} parent=1 // pred_region
      _
    $region61: #{cap_bench_train_forward.3} parent=1 // pred_fallthru
      _
    // Predicated region
    $region62: #{cap_bench_train_forward.3} parent=1 // pred_check
      _
    $region63: #{cap_bench_train_forward.3} parent=1 // pred_check_branch
      %1379 = sbr.rel (0) target = $region65
    $region64: #{cap_bench_train_forward.3} parent=1 // pred_region
      _
    $region65: #{cap_bench_train_forward.3} parent=1 // pred_fallthru
      _
    %1380 = vsyncpa [#allocation3], 1
    %1381 = vsyncpa [#allocation5], 1

// kernel: cap_bench_train_forward.4
$region0: #{cap_bench_train_forward.4}
  #allocation0 [shape = 'u32[]', space=smem, size = 0x4, offset = 0x4, fixed_abs, tag = 'smem constant byte address 0x4 - core index']
  #allocation1 [shape = 'u32[144,128]{1,0:T(1,128)}', space=vmem, size = 0x12000, scoped, tag = 'internal scratch']
  %s0 = inlined_call_operand.vmem [shape: f32[2,16,128], index: 0, kind: input, shape index: {}]
  %s1 = inlined_call_operand.vmem [shape: f32[2,8,128], index: 1, kind: input, shape index: {}]
  %s2 = inlined_call_operand.vmem [shape: f32[16,16], index: 2, kind: input, shape index: {}]
  %s3 = inlined_call_operand.vmem [shape: f32[2,9,128], index: 3, kind: input, shape index: {}]
  %s4 = inlined_call_operand.vmem [shape: bf16[2,3,128,128], index: 4, kind: input, shape index: {}]
  %s5 = inlined_call_operand.vmem [shape: bf16[2,128,128], index: 5, kind: input, shape index: {}]
  %s6 = inlined_call_operand.vmem [shape: bf16[2,128,512], index: 6, kind: input, shape index: {}]
  %s7 = inlined_call_operand.vmem [shape: f32[2,1,512], index: 7, kind: input, shape index: {}]
  %s8 = inlined_call_operand.vmem [shape: bf16[2,512,128], index: 8, kind: input, shape index: {}]
  %s9 = inlined_call_operand.vmem [shape: f32[2,16,128], index: 9, kind: output, shape index: {}]
  %s10 = sld [smem:[#allocation0]]
  $region73: #{cap_bench_train_forward.4} parent=0
    _
  %s12 = ssub.s32 1, %s10
  %s13 = scalar_select 0, %s12, %s10
  loop: start=0, step=1, limit=6
  $region2: #{cap_bench_train_forward.4} parent=0 // loop_pre_header
    _
  $region3: #{cap_bench_train_forward.4} parent=0 // loop_header
    %s15 = sphi 0, %s19
    %p16 = scmp.ge.s32.totalorder %s15, 6
    %s22 = sphi 0, %s34
    %s23 = sphi 0, %s30
    %s24 = sphi 0, %s22
    %s25 = sphi 0, %s23
    %s26 = sphi 0, %s24
    %s27 = sphi 0, %s25
    %s37 = sphi 0, %s39
    %s40 = sphi 0, %s37
    %s41 = sphi 0, %s40
    %s57 = sphi 0, %s41
    %s63 = sphi 0, %s65
    %s66 = sphi 0, %s63
    %s67 = sphi 0, %s66
    %s83 = sphi 0, %s67
    %s87 = sphi 0, %s87
    %s89 = sphi 0, %s87
    %s90 = sphi 0, %s89
    %s104 = sphi 0, %s90
    %s110 = sphi 0, %s112
    %s113 = sphi 0, %s110
    %s114 = sphi 0, %s113
    %s130 = sphi 0, %s114
    %s136 = sphi 0, %s138
    %s139 = sphi 0, %s136
    %s140 = sphi 0, %s139
    %s156 = sphi 0, %s140
    %s162 = sphi 0, %s164
    %s165 = sphi 0, %s162
    %s166 = sphi 0, %s165
    %s182 = sphi 0, %s166
    %s188 = sphi 0, %s190
    %s191 = sphi 0, %s188
    %s192 = sphi 0, %s191
    %s208 = sphi 0, %s192
    %s214 = sphi 0, %s216
    %s217 = sphi 0, %s214
    %s218 = sphi 0, %s217
    %s234 = sphi 0, %s218
    %s240 = sphi 0, %s242
    %s243 = sphi 0, %s240
    %s244 = sphi 0, %s243
    %s260 = sphi 0, %s244
    %s266 = sphi 0, %s268
    %s269 = sphi 0, %s266
    %s270 = sphi 0, %s269
    %s286 = sphi 0, %s270
  $region4: #{cap_bench_train_forward.4} parent=0 // loop_header_branch
    %18 = sbr.rel (%p16) target = $region8
  $region5: #{cap_bench_train_forward.4} parent=0 // loop_body
    %s20 = ssub.s32 %s15, 1
    %s21 = ssub.s32 %s15, 2
    %s28 = sadd.s32 1, %s23
    %p29 = scmp.ge.s32.totalorder %s28, 2
    %s30 = scalar_select %p29, 0, %s28
    %s31 = sadd.s32 1, %s22
    %s32 = scalar_select %p29, %s31, %s22
    %p33 = scmp.ge.s32.totalorder %s32, 2
    %s34 = scalar_select %p33, 0, %s32
    %s35 = ssub.s32 %s22, %s34
    %p36 = scmp.eq.s32.totalorder %s35, 0
    %s38 = sadd.s32 %s37, 1
    %s39 = scalar_select %p36, %s37, %s38
    %p42 = pneg %p36
    %p43 = scmp.eq.s32.totalorder %s15, 3
    %p44 = por %p42, %p43
    %p45 = scmp.ne.s32.totalorder %s37, %s40
    %p46 = scmp.eq.s32.totalorder %s15, 0
    %p47 = por %p45, %p46
    %p48 = scmp.ne.s32.totalorder %s37, %s40
    %p49 = scmp.eq.s32.totalorder %s20, 3
    %p50 = por %p48, %p49
    %p51 = scmp.ne.s32.totalorder %s40, %s41
    %p52 = scmp.eq.s32.totalorder %s20, 0
    %p53 = por %p51, %p52
    %p54 = scmp.ne.s32.totalorder %s40, %s41
    %p55 = scmp.eq.s32.totalorder %s21, 3
    %p56 = por %p54, %p55
    %p58 = scmp.ne.s32.totalorder %s41, %s57
    %p59 = scmp.eq.s32.totalorder %s21, 0
    %p60 = por %p58, %p59
    %s61 = ssub.s32 %s22, %s34
    %p62 = scmp.eq.s32.totalorder %s61, 0
    %s64 = sadd.s32 %s63, 1
    %s65 = scalar_select %p62, %s63, %s64
    %p68 = pneg %p62
    %p69 = scmp.eq.s32.totalorder %s15, 3
    %p70 = por %p68, %p69
    %p71 = scmp.ne.s32.totalorder %s63, %s66
    %p72 = scmp.eq.s32.totalorder %s15, 0
    %p73 = por %p71, %p72
    %p74 = scmp.ne.s32.totalorder %s63, %s66
    %p75 = scmp.eq.s32.totalorder %s20, 3
    %p76 = por %p74, %p75
    %p77 = scmp.ne.s32.totalorder %s66, %s67
    %p78 = scmp.eq.s32.totalorder %s20, 0
    %p79 = por %p77, %p78
    %p80 = scmp.ne.s32.totalorder %s66, %s67
    %p81 = scmp.eq.s32.totalorder %s21, 3
    %p82 = por %p80, %p81
    %p84 = scmp.ne.s32.totalorder %s67, %s83
    %p85 = scmp.eq.s32.totalorder %s21, 0
    %p86 = por %p84, %p85
    %s88 = sadd.s32 %s87, 1
    %p91 = scmp.eq.s32.totalorder %s15, 3
    %p92 = scmp.ne.s32.totalorder %s87, %s89
    %p93 = scmp.eq.s32.totalorder %s15, 0
    %p94 = por %p92, %p93
    %p95 = scmp.ne.s32.totalorder %s87, %s89
    %p96 = scmp.eq.s32.totalorder %s20, 3
    %p97 = por %p95, %p96
    %p98 = scmp.ne.s32.totalorder %s89, %s90
    %p99 = scmp.eq.s32.totalorder %s20, 0
    %p100 = por %p98, %p99
    %p101 = scmp.ne.s32.totalorder %s89, %s90
    %p102 = scmp.eq.s32.totalorder %s21, 3
    %p103 = por %p101, %p102
    %p105 = scmp.ne.s32.totalorder %s90, %s104
    %p106 = scmp.eq.s32.totalorder %s21, 0
    %p107 = por %p105, %p106
    %s108 = ssub.s32 %s23, %s30
    %p109 = scmp.eq.s32.totalorder %s108, 0
    %s111 = sadd.s32 %s110, 1
    %s112 = scalar_select %p109, %s110, %s111
    %p115 = pneg %p109
    %p116 = scmp.eq.s32.totalorder %s15, 3
    %p117 = por %p115, %p116
    %p118 = scmp.ne.s32.totalorder %s110, %s113
    %p119 = scmp.eq.s32.totalorder %s15, 0
    %p120 = por %p118, %p119
    %p121 = scmp.ne.s32.totalorder %s110, %s113
    %p122 = scmp.eq.s32.totalorder %s20, 3
    %p123 = por %p121, %p122
    %p124 = scmp.ne.s32.totalorder %s113, %s114
    %p125 = scmp.eq.s32.totalorder %s20, 0
    %p126 = por %p124, %p125
    %p127 = scmp.ne.s32.totalorder %s113, %s114
    %p128 = scmp.eq.s32.totalorder %s21, 3
    %p129 = por %p127, %p128
    %p131 = scmp.ne.s32.totalorder %s114, %s130
    %p132 = scmp.eq.s32.totalorder %s21, 0
    %p133 = por %p131, %p132
    %s134 = ssub.s32 %s23, %s30
    %p135 = scmp.eq.s32.totalorder %s134, 0
    %s137 = sadd.s32 %s136, 1
    %s138 = scalar_select %p135, %s136, %s137
    %p141 = pneg %p135
    %p142 = scmp.eq.s32.totalorder %s15, 3
    %p143 = por %p141, %p142
    %p144 = scmp.ne.s32.totalorder %s136, %s139
    %p145 = scmp.eq.s32.totalorder %s15, 0
    %p146 = por %p144, %p145
    %p147 = scmp.ne.s32.totalorder %s136, %s139
    %p148 = scmp.eq.s32.totalorder %s20, 3
    %p149 = por %p147, %p148
    %p150 = scmp.ne.s32.totalorder %s139, %s140
    %p151 = scmp.eq.s32.totalorder %s20, 0
    %p152 = por %p150, %p151
    %p153 = scmp.ne.s32.totalorder %s139, %s140
    %p154 = scmp.eq.s32.totalorder %s21, 3
    %p155 = por %p153, %p154
    %p157 = scmp.ne.s32.totalorder %s140, %s156
    %p158 = scmp.eq.s32.totalorder %s21, 0
    %p159 = por %p157, %p158
    %s160 = ssub.s32 %s23, %s30
    %p161 = scmp.eq.s32.totalorder %s160, 0
    %s163 = sadd.s32 %s162, 1
    %s164 = scalar_select %p161, %s162, %s163
    %p167 = pneg %p161
    %p168 = scmp.eq.s32.totalorder %s15, 3
    %p169 = por %p167, %p168
    %p170 = scmp.ne.s32.totalorder %s162, %s165
    %p171 = scmp.eq.s32.totalorder %s15, 0
    %p172 = por %p170, %p171
    %p173 = scmp.ne.s32.totalorder %s162, %s165
    %p174 = scmp.eq.s32.totalorder %s20, 3
    %p175 = por %p173, %p174
    %p176 = scmp.ne.s32.totalorder %s165, %s166
    %p177 = scmp.eq.s32.totalorder %s20, 0
    %p178 = por %p176, %p177
    %p179 = scmp.ne.s32.totalorder %s165, %s166
    %p180 = scmp.eq.s32.totalorder %s21, 3
    %p181 = por %p179, %p180
    %p183 = scmp.ne.s32.totalorder %s166, %s182
    %p184 = scmp.eq.s32.totalorder %s21, 0
    %p185 = por %p183, %p184
    %s186 = ssub.s32 %s23, %s30
    %p187 = scmp.eq.s32.totalorder %s186, 0
    %s189 = sadd.s32 %s188, 1
    %s190 = scalar_select %p187, %s188, %s189
    %p193 = pneg %p187
    %p194 = scmp.eq.s32.totalorder %s15, 3
    %p195 = por %p193, %p194
    %p196 = scmp.ne.s32.totalorder %s188, %s191
    %p197 = scmp.eq.s32.totalorder %s15, 0
    %p198 = por %p196, %p197
    %p199 = scmp.ne.s32.totalorder %s188, %s191
    %p200 = scmp.eq.s32.totalorder %s20, 3
    %p201 = por %p199, %p200
    %p202 = scmp.ne.s32.totalorder %s191, %s192
    %p203 = scmp.eq.s32.totalorder %s20, 0
    %p204 = por %p202, %p203
    %p205 = scmp.ne.s32.totalorder %s191, %s192
    %p206 = scmp.eq.s32.totalorder %s21, 3
    %p207 = por %p205, %p206
    %p209 = scmp.ne.s32.totalorder %s192, %s208
    %p210 = scmp.eq.s32.totalorder %s21, 0
    %p211 = por %p209, %p210
    %s212 = ssub.s32 %s23, %s30
    %p213 = scmp.eq.s32.totalorder %s212, 0
    %s215 = sadd.s32 %s214, 1
    %s216 = scalar_select %p213, %s214, %s215
    %p219 = pneg %p213
    %p220 = scmp.eq.s32.totalorder %s15, 3
    %p221 = por %p219, %p220
    %p222 = scmp.ne.s32.totalorder %s214, %s217
    %p223 = scmp.eq.s32.totalorder %s15, 0
    %p224 = por %p222, %p223
    %p225 = scmp.ne.s32.totalorder %s214, %s217
    %p226 = scmp.eq.s32.totalorder %s20, 3
    %p227 = por %p225, %p226
    %p228 = scmp.ne.s32.totalorder %s217, %s218
    %p229 = scmp.eq.s32.totalorder %s20, 0
    %p230 = por %p228, %p229
    %p231 = scmp.ne.s32.totalorder %s217, %s218
    %p232 = scmp.eq.s32.totalorder %s21, 3
    %p233 = por %p231, %p232
    %p235 = scmp.ne.s32.totalorder %s218, %s234
    %p236 = scmp.eq.s32.totalorder %s21, 0
    %p237 = por %p235, %p236
    %s238 = ssub.s32 %s23, %s30
    %p239 = scmp.eq.s32.totalorder %s238, 0
    %s241 = sadd.s32 %s240, 1
    %s242 = scalar_select %p239, %s240, %s241
    %p245 = pneg %p239
    %p246 = scmp.eq.s32.totalorder %s15, 3
    %p247 = por %p245, %p246
    %p248 = scmp.ne.s32.totalorder %s240, %s243
    %p249 = scmp.eq.s32.totalorder %s15, 0
    %p250 = por %p248, %p249
    %p251 = scmp.ne.s32.totalorder %s240, %s243
    %p252 = scmp.eq.s32.totalorder %s20, 3
    %p253 = por %p251, %p252
    %p254 = scmp.ne.s32.totalorder %s243, %s244
    %p255 = scmp.eq.s32.totalorder %s20, 0
    %p256 = por %p254, %p255
    %p257 = scmp.ne.s32.totalorder %s243, %s244
    %p258 = scmp.eq.s32.totalorder %s21, 3
    %p259 = por %p257, %p258
    %p261 = scmp.ne.s32.totalorder %s244, %s260
    %p262 = scmp.eq.s32.totalorder %s21, 0
    %p263 = por %p261, %p262
    %s264 = ssub.s32 %s22, %s34
    %p265 = scmp.eq.s32.totalorder %s264, 0
    %s267 = sadd.s32 %s266, 1
    %s268 = scalar_select %p265, %s266, %s267
    %p271 = pneg %p265
    %p272 = scmp.eq.s32.totalorder %s15, 3
    %p273 = por %p271, %p272
    %p274 = scmp.ne.s32.totalorder %s266, %s269
    %p275 = scmp.eq.s32.totalorder %s15, 0
    %p276 = por %p274, %p275
    %p277 = scmp.ne.s32.totalorder %s266, %s269
    %p278 = scmp.eq.s32.totalorder %s20, 3
    %p279 = por %p277, %p278
    %p280 = scmp.ne.s32.totalorder %s269, %s270
    %p281 = scmp.eq.s32.totalorder %s20, 0
    %p282 = por %p280, %p281
    %p283 = scmp.ne.s32.totalorder %s269, %s270
    %p284 = scmp.eq.s32.totalorder %s21, 3
    %p285 = por %p283, %p284
    %p287 = scmp.ne.s32.totalorder %s270, %s286
    %p288 = scmp.eq.s32.totalorder %s21, 0
    %p289 = por %p287, %p288
    %p290 = scmp.le.s32.totalorder 1, %s15
    %p291 = scmp.lt.s32.totalorder %s15, 5
    %p292 = pnand %p290, %p291
    %p293 = pneg %p292
    // Predicated region
    $region9: #{cap_bench_train_forward.4} parent=5 // pred_check
      _
    $region10: #{cap_bench_train_forward.4} parent=5 // pred_check_branch
      %295 = sbr.rel (%p292) target = $region12
    $region11: #{cap_bench_train_forward.4} parent=5 // pred_region
      %s296 = ssub.s32 %s15, 1
      // Predicated region
      $region13: #{cap_bench_train_forward.4} parent=11 // pred_check
        %p297 = pneg %p100
      $region14: #{cap_bench_train_forward.4} parent=11 // pred_check_branch
        %299 = sbr.rel (%p297) target = $region16
      $region15: #{cap_bench_train_forward.4} parent=11 // pred_region
        _
      $region16: #{cap_bench_train_forward.4} parent=11 // pred_fallthru
        _
    $region12: #{cap_bench_train_forward.4} parent=5 // pred_fallthru
      _
    %p300 = scmp.lt.s32.totalorder %s15, 4
    // Predicated region
    $region17: #{cap_bench_train_forward.4} parent=5 // pred_check
      %p301 = pneg %p300
    $region18: #{cap_bench_train_forward.4} parent=5 // pred_check_branch
      %303 = sbr.rel (%p301) target = $region20
    $region19: #{cap_bench_train_forward.4} parent=5 // pred_region
      // Predicated region
      $region21: #{cap_bench_train_forward.4} parent=19 // pred_check
        %p304 = pneg %p47
      $region22: #{cap_bench_train_forward.4} parent=19 // pred_check_branch
        %306 = sbr.rel (%p304) target = $region24
      $region23: #{cap_bench_train_forward.4} parent=19 // pred_region
        %p307 = scmp.lt.s32.totalorder %s22, 1
        %s308 = scalar_select %p307, %s22, 1
        %s309 = smul.addr %s308, 2
        %s310 = smul.addr %s309, 8
        %s311 = scalar_lea.vmem %s0, %s310
      $region24: #{cap_bench_train_forward.4} parent=19 // pred_fallthru
        _
      // Predicated region
      $region25: #{cap_bench_train_forward.4} parent=19 // pred_check
        %p312 = pneg %p73
      $region26: #{cap_bench_train_forward.4} parent=19 // pred_check_branch
        %314 = sbr.rel (%p312) target = $region28
      $region27: #{cap_bench_train_forward.4} parent=19 // pred_region
        %p315 = scmp.lt.s32.totalorder %s22, 1
        %s316 = scalar_select %p315, %s22, 1
        %s317 = smul.addr %s316, 8
        %s318 = scalar_lea.vmem %s1, %s317
      $region28: #{cap_bench_train_forward.4} parent=19 // pred_fallthru
        _
      // Predicated region
      $region29: #{cap_bench_train_forward.4} parent=19 // pred_check
        %p319 = pneg %p120
      $region30: #{cap_bench_train_forward.4} parent=19 // pred_check_branch
        %321 = sbr.rel (%p319) target = $region32
      $region31: #{cap_bench_train_forward.4} parent=19 // pred_region
        %p322 = scmp.lt.s32.totalorder %s23, 1
        %s323 = scalar_select %p322, %s23, 1
        %s324 = smul.addr %s323, 2
        %s325 = smul.addr %s324, 8
        %s326 = scalar_lea.vmem %s3, %s325
      $region32: #{cap_bench_train_forward.4} parent=19 // pred_fallthru
        _
      // Predicated region
      $region33: #{cap_bench_train_forward.4} parent=19 // pred_check
        %p327 = pneg %p146
      $region34: #{cap_bench_train_forward.4} parent=19 // pred_check_branch
        %329 = sbr.rel (%p327) target = $region36
      $region35: #{cap_bench_train_forward.4} parent=19 // pred_region
        %p330 = scmp.lt.s32.totalorder %s23, 1
        %s331 = scalar_select %p330, %s23, 1
        %s332 = smul.addr %s331, 48
        %s333 = smul.addr %s332, 4
        %s334 = scalar_lea.vmem %s4, %s333
      $region36: #{cap_bench_train_forward.4} parent=19 // pred_fallthru
        _
      // Predicated region
      $region37: #{cap_bench_train_forward.4} parent=19 // pred_check
        %p335 = pneg %p172
      $region38: #{cap_bench_train_forward.4} parent=19 // pred_check_branch
        %337 = sbr.rel (%p335) target = $region40
      $region39: #{cap_bench_train_forward.4} parent=19 // pred_region
        %p338 = scmp.lt.s32.totalorder %s23, 1
        %s339 = scalar_select %p338, %s23, 1
        %s340 = smul.addr %s339, 16
        %s341 = smul.addr %s340, 4
        %s342 = scalar_lea.vmem %s5, %s341
      $region40: #{cap_bench_train_forward.4} parent=19 // pred_fallthru
        _
      // Predicated region
      $region41: #{cap_bench_train_forward.4} parent=19 // pred_check
        %p343 = pneg %p198
      $region42: #{cap_bench_train_forward.4} parent=19 // pred_check_branch
        %345 = sbr.rel (%p343) target = $region44
      $region43: #{cap_bench_train_forward.4} parent=19 // pred_region
        %p346 = scmp.lt.s32.totalorder %s23, 1
        %s347 = scalar_select %p346, %s23, 1
        %s348 = smul.addr %s347, 64
        %s349 = smul.addr %s348, 4
        %s350 = scalar_lea.vmem %s6, %s349
      $region44: #{cap_bench_train_forward.4} parent=19 // pred_fallthru
        _
      // Predicated region
      $region45: #{cap_bench_train_forward.4} parent=19 // pred_check
        %p351 = pneg %p224
      $region46: #{cap_bench_train_forward.4} parent=19 // pred_check_branch
        %353 = sbr.rel (%p351) target = $region48
      $region47: #{cap_bench_train_forward.4} parent=19 // pred_region
        %p354 = scmp.lt.s32.totalorder %s23, 1
        %s355 = scalar_select %p354, %s23, 1
        %s356 = smul.addr %s355, 4
        %s357 = scalar_lea.vmem %s7, %s356
      $region48: #{cap_bench_train_forward.4} parent=19 // pred_fallthru
        _
      // Predicated region
      $region49: #{cap_bench_train_forward.4} parent=19 // pred_check
        %p358 = pneg %p250
      $region50: #{cap_bench_train_forward.4} parent=19 // pred_check_branch
        %360 = sbr.rel (%p358) target = $region52
      $region51: #{cap_bench_train_forward.4} parent=19 // pred_region
        %p361 = scmp.lt.s32.totalorder %s23, 1
        %s362 = scalar_select %p361, %s23, 1
        %s363 = smul.addr %s362, 64
        %s364 = smul.addr %s363, 4
        %s365 = scalar_lea.vmem %s8, %s364
      $region52: #{cap_bench_train_forward.4} parent=19 // pred_fallthru
        _
    $region20: #{cap_bench_train_forward.4} parent=5 // pred_fallthru
      _
    %p366 = scmp.le.s32.totalorder 1, %s15
    %p367 = scmp.lt.s32.totalorder %s15, 5
    %p368 = pnand %p366, %p367
    %p369 = pneg %p368
    // Predicated region
    $region53: #{cap_bench_train_forward.4} parent=5 // pred_check
      _
    $region54: #{cap_bench_train_forward.4} parent=5 // pred_check_branch
      %371 = sbr.rel (%p368) target = $region56
    $region55: #{cap_bench_train_forward.4} parent=5 // pred_region
      %s372 = ssub.s32 %s15, 1
      %p373 = scmp.lt.s32.totalorder %s24, 1
      %s374 = scalar_select %p373, %s24, 1
      %s375 = smul.addr %s374, 2
      %s376 = smul.addr %s375, 8
      %s377 = scalar_lea.vmem %s0, %s376
      %p378 = pneg %p53
      %p379 = pneg %p50
      %p380 = scmp.lt.s32.totalorder %s24, 1
      %s381 = scalar_select %p380, %s24, 1
      %s382 = smul.addr %s381, 8
      %s383 = scalar_lea.vmem %s1, %s382
      %p384 = pneg %p79
      %p385 = pneg %p76
      %p386 = pneg %p100
      %p387 = pneg %p97
      %p388 = scmp.lt.s32.totalorder %s25, 1
      %s389 = scalar_select %p388, %s25, 1
      %s390 = smul.addr %s389, 2
      %s391 = smul.addr %s390, 8
      %s392 = scalar_lea.vmem %s3, %s391
      %p393 = pneg %p126
      %p394 = pneg %p123
      %p395 = scmp.lt.s32.totalorder %s25, 1
      %s396 = scalar_select %p395, %s25, 1
      %s397 = smul.addr %s396, 48
      %s398 = smul.addr %s397, 4
      %s399 = scalar_lea.vmem %s4, %s398
      %p400 = pneg %p152
      %p401 = pneg %p149
      %p402 = scmp.lt.s32.totalorder %s25, 1
      %s403 = scalar_select %p402, %s25, 1
      %s404 = smul.addr %s403, 16
      %s405 = smul.addr %s404, 4
      %s406 = scalar_lea.vmem %s5, %s405
      %p407 = pneg %p178
      %p408 = pneg %p175
      %p409 = scmp.lt.s32.totalorder %s25, 1
      %s410 = scalar_select %p409, %s25, 1
      %s411 = smul.addr %s410, 64
      %s412 = smul.addr %s411, 4
      %s413 = scalar_lea.vmem %s6, %s412
      %p414 = pneg %p204
      %p415 = pneg %p201
      %p416 = scmp.lt.s32.totalorder %s25, 1
      %s417 = scalar_select %p416, %s25, 1
      %s418 = smul.addr %s417, 4
      %s419 = scalar_lea.vmem %s7, %s418
      %p420 = pneg %p230
      %p421 = pneg %p227
      %p422 = scmp.lt.s32.totalorder %s25, 1
      %s423 = scalar_select %p422, %s25, 1
      %s424 = smul.addr %s423, 64
      %s425 = smul.addr %s424, 4
      %s426 = scalar_lea.vmem %s8, %s425
      %p427 = pneg %p256
      %p428 = pneg %p253
      %p429 = pneg %p282
      %p430 = pneg %p279
      %p431 = scmp.lt.s32.totalorder %s24, 1
      %s432 = scalar_select %p431, %s24, 1
      %s433 = smul.addr %s432, 2
      %s434 = smul.addr %s433, 8
      %s435 = scalar_lea.vmem %s9, %s434
      %p436 = scmp.lt.s32.totalorder %s24, 1
      %s437 = scalar_select %p436, %s24, 1
      %s438 = smul.addr %s437, 2
      %s439 = smul.addr %s438, 8
      %s440 = scalar_lea.vmem %s0, %s439
      %p441 = scmp.lt.s32.totalorder %s24, 1
      %s442 = scalar_select %p441, %s24, 1
      %s443 = smul.addr %s442, 8
      %s444 = scalar_lea.vmem %s1, %s443
      %p445 = scmp.lt.s32.totalorder %s25, 1
      %s446 = scalar_select %p445, %s25, 1
      %s447 = smul.addr %s446, 2
      %s448 = smul.addr %s447, 8
      %s449 = scalar_lea.vmem %s3, %s448
      %p450 = scmp.lt.s32.totalorder %s25, 1
      %s451 = scalar_select %p450, %s25, 1
      %s452 = smul.addr %s451, 48
      %s453 = smul.addr %s452, 4
      %s454 = scalar_lea.vmem %s4, %s453
      %p455 = scmp.lt.s32.totalorder %s25, 1
      %s456 = scalar_select %p455, %s25, 1
      %s457 = smul.addr %s456, 16
      %s458 = smul.addr %s457, 4
      %s459 = scalar_lea.vmem %s5, %s458
      %p460 = scmp.lt.s32.totalorder %s25, 1
      %s461 = scalar_select %p460, %s25, 1
      %s462 = smul.addr %s461, 64
      %s463 = smul.addr %s462, 4
      %s464 = scalar_lea.vmem %s6, %s463
      %p465 = scmp.lt.s32.totalorder %s25, 1
      %s466 = scalar_select %p465, %s25, 1
      %s467 = smul.addr %s466, 4
      %s468 = scalar_lea.vmem %s7, %s467
      %p469 = scmp.lt.s32.totalorder %s25, 1
      %s470 = scalar_select %p469, %s25, 1
      %s471 = smul.addr %s470, 64
      %s472 = smul.addr %s471, 4
      %s473 = scalar_lea.vmem %s8, %s472
      %p474 = scmp.lt.s32.totalorder %s24, 1
      %s475 = scalar_select %p474, %s24, 1
      %s476 = smul.addr %s475, 2
      %s477 = smul.addr %s476, 8
      %s478 = scalar_lea.vmem %s9, %s477
      %p480 = scmp.eq.s32.totalorder %s25, 0
      // Predicated region
      $region57: #{cap_bench_train_forward.4} parent=55 // pred_check
        %p481 = pneg %p480
      $region58: #{cap_bench_train_forward.4} parent=55 // pred_check_branch
        %483 = sbr.rel (%p481) target = $region60
      $region59: #{cap_bench_train_forward.4} parent=55 // pred_region
        %v484 = vld [vmem:[%s440] sm:$0xff]
        %v485 = vld [vmem:[%s440 + $0x8] sm:$0xff]
        %486 = vst [vmem:[%s478] sm:$0xff] %v484
        %487 = vst [vmem:[%s478 + $0x8] sm:$0xff] %v485
      $region60: #{cap_bench_train_forward.4} parent=55 // pred_fallthru
        _
      %v488 = vld [vmem:[%s478] sm:$0xff]
      %v489 = vld [vmem:[%s478 + $0x8] sm:$0xff]
      %v490 = vld [vmem:[%s449] sm:$0xff]
      %v491 = vld [vmem:[%s449 + $0x8] sm:$0x1]
      %492 = vadd.xlane.f32.xlu0 %v488
      %v493 = vpop.xlane.xlu0 %492
      %494 = vadd.xlane.f32.xlu0 %v489
      %v495 = vpop.xlane.xlu0 %494
      %v496 = vrcp.pop 128.0
      %v497 = vmul.f32 %v493, %v496
      %v498 = vmul.f32 %v495, %v496
      %v499 = vsub.f32 %v488, %v497
      %v500 = vsub.f32 %v489, %v498
      %v501 = vmul.f32 %v499, %v499
      %v502 = vmul.f32 %v500, %v500
      %503 = vadd.xlane.f32.xlu0 %v501
      %v504 = vpop.xlane.xlu0 %503
      %505 = vadd.xlane.f32.xlu0 %v502
      %v506 = vpop.xlane.xlu0 %505
      %v507 = vmul.f32 %v504, %v496
      %v508 = vmul.f32 %v506, %v496
      %v509 = vadd.f32 %v507, 1e-05
      %v510 = vadd.f32 %v508, 1e-05
      %v511 = vrsqrt.pop %v509
      %v512 = vrsqrt.pop %v510
      %v513 = vmul.f32 %v499, %v511
      %v514 = vmul.f32 %v500, %v512
      %v515 = vlaneseq
      %v516 = vshrl.u32 %v515, 7
      %v517 = vsub.s32 0, %v516
      %v518 = vrot.slane %v490, %v517
      %v519 = vmul.f32 %v513, %v518
      %v520 = vmul.f32 %v514, %v518
      %v521 = vlaneseq
      %v522 = vshrl.u32 %v521, 7
      %v523 = vsub.s32 1, %v522
      %v524 = vrot.slane %v490, %v523
      %v525 = vadd.f32 %v519, %v524
      %v526 = vadd.f32 %v520, %v524
      %v527 = vpack.c.bf16 %v526, %v525
      %v528 = vld [vmem:[%s454] sm:$0xf]
      %v529 = vld [vmem:[%s454 + $0x4] sm:$0xf]
      %v530 = vld [vmem:[%s454 + $0x8] sm:$0xf]
      %v531 = vld [vmem:[%s454 + $0xc] sm:$0xf]
      %v532 = vld [vmem:[%s454 + $0x10] sm:$0xf]
      %v533 = vld [vmem:[%s454 + $0x14] sm:$0xf]
      %v534 = vld [vmem:[%s454 + $0x18] sm:$0xf]
      %v535 = vld [vmem:[%s454 + $0x1c] sm:$0xf]
      %v536 = vld [vmem:[%s454 + $0x20] sm:$0xf]
      %v537 = vld [vmem:[%s454 + $0x24] sm:$0xf]
      %v538 = vld [vmem:[%s454 + $0x28] sm:$0xf]
      %v539 = vld [vmem:[%s454 + $0x2c] sm:$0xf]
      %v540 = vld [vmem:[%s454 + $0x30] sm:$0xf]
      %v541 = vld [vmem:[%s454 + $0x34] sm:$0xf]
      %v542 = vld [vmem:[%s454 + $0x38] sm:$0xf]
      %v543 = vld [vmem:[%s454 + $0x3c] sm:$0xf]
      %v544 = vlaneseq
      %v545 = vshrl.u32 %v544, 7
      %v546 = vsub.s32 4, %v545
      %v547 = vrot.slane %v490, %v546
      %v564 = vunpack.c.l.b16 %v528
      %v565 = vunpack.c.l.b16 %v529
      %v566 = vunpack.c.l.b16 %v530
      %v567 = vunpack.c.l.b16 %v531
      %v568 = vunpack.c.l.b16 %v532
      %v569 = vunpack.c.l.b16 %v533
      %v570 = vunpack.c.l.b16 %v534
      %v571 = vunpack.c.l.b16 %v535
      %v572 = vunpack.c.l.b16 %v536
      %v573 = vunpack.c.l.b16 %v537
      %v574 = vunpack.c.l.b16 %v538
      %v575 = vunpack.c.l.b16 %v539
      %v576 = vunpack.c.l.b16 %v540
      %v577 = vunpack.c.l.b16 %v541
      %v578 = vunpack.c.l.b16 %v542
      %v579 = vunpack.c.l.b16 %v543
      %v580 = vpack.c.b16 %v565, %v564
      %v581 = vpack.c.b16 %v567, %v566
      %v582 = vpack.c.b16 %v569, %v568
      %v583 = vpack.c.b16 %v571, %v570
      %v584 = vpack.c.b16 %v573, %v572
      %v585 = vpack.c.b16 %v575, %v574
      %v586 = vpack.c.b16 %v577, %v576
      %v587 = vpack.c.b16 %v579, %v578
      %596 = vmatprep.subr.bf16.mxu0 0
      %597 = vmatpush1.bf16.msra.mxu0 %v580
      %598 = vmatprep.subr.bf16.mxu0 0
      %599 = vmatpush1.bf16.msra.mxu0 %v581
      %600 = vmatprep.subr.bf16.mxu0 0
      %601 = vmatpush1.bf16.msra.mxu0 %v582
      %602 = vmatprep.subr.bf16.mxu0 0
      %603 = vmatpush1.bf16.msra.mxu0 %v583
      %604 = vmatprep.subr.bf16.mxu0 0
      %605 = vmatpush1.bf16.msra.mxu0 %v584
      %606 = vmatprep.subr.bf16.mxu0 0
      %607 = vmatpush1.bf16.msra.mxu0 %v585
      %608 = vmatprep.subr.bf16.mxu0 0
      %609 = vmatpush1.bf16.msra.mxu0 %v586
      %610 = vmatprep.subr.bf16.mxu0 0
      %611 = vmatpush1.bf16.msra.mxu0 %v587
      %612 = vmatprep.subr.bf16.mxu0 0
      %613 = vmatpush1.bf16.msra.mxu0 0
      %614 = vmatprep.subr.bf16.mxu0 0
      %615 = vmatpush1.bf16.msra.mxu0 0
      %616 = vmatprep.subr.bf16.mxu0 0
      %617 = vmatpush1.bf16.msra.mxu0 0
      %618 = vmatprep.subr.bf16.mxu0 0
      %619 = vmatpush1.bf16.msra.mxu0 0
      %620 = vmatprep.subr.bf16.mxu0 0
      %621 = vmatpush1.bf16.msra.mxu0 0
      %622 = vmatprep.subr.bf16.mxu0 0
      %623 = vmatpush1.bf16.msra.mxu0 0
      %624 = vmatprep.subr.bf16.mxu0 0
      %625 = vmatpush1.bf16.msra.mxu0 0
      %626 = vmatprep.subr.bf16.mxu0 0
      %627 = vmatpush1.bf16.msra.mxu0 0
      %628 = vmatprep.mubr.bf16.mxu0 0
      %629 = vmatmul.mubr.bf16.gmra.mrb[0].mxu0 %v527
      %v630 = vpop.f32.mrb[0].mxu0
      %v631 = vadd.f32 %v547, %v630
      %v632 = vpop.f32.mrb[0].mxu0
      %v633 = vpop.f32.mrb[0].mxu0
      %v634 = vadd.f32 %v547, %v633
      %v635 = vpop.f32.mrb[0].mxu0
      %636 = vdwg.mxu0
      %s637 = scalar_lea.vmem %s454, 64
      %v638 = vld [vmem:[%s637] sm:$0xf]
      %v639 = vld [vmem:[%s637 + $0x4] sm:$0xf]
      %v640 = vld [vmem:[%s637 + $0x8] sm:$0xf]
      %v641 = vld [vmem:[%s637 + $0xc] sm:$0xf]
      %v642 = vld [vmem:[%s637 + $0x10] sm:$0xf]
      %v643 = vld [vmem:[%s637 + $0x14] sm:$0xf]
      %v644 = vld [vmem:[%s637 + $0x18] sm:$0xf]
      %v645 = vld [vmem:[%s637 + $0x1c] sm:$0xf]
      %v646 = vld [vmem:[%s637 + $0x20] sm:$0xf]
      %v647 = vld [vmem:[%s637 + $0x24] sm:$0xf]
      %v648 = vld [vmem:[%s637 + $0x28] sm:$0xf]
      %v649 = vld [vmem:[%s637 + $0x2c] sm:$0xf]
      %v650 = vld [vmem:[%s637 + $0x30] sm:$0xf]
      %v651 = vld [vmem:[%s637 + $0x34] sm:$0xf]
      %v652 = vld [vmem:[%s637 + $0x38] sm:$0xf]
      %v653 = vld [vmem:[%s637 + $0x3c] sm:$0xf]
      %v654 = vlaneseq
      %v655 = vshrl.u32 %v654, 7
      %v656 = vsub.s32 5, %v655
      %v657 = vrot.slane %v490, %v656
      %v674 = vunpack.c.l.b16 %v638
      %v675 = vunpack.c.l.b16 %v639
      %v676 = vunpack.c.l.b16 %v640
      %v677 = vunpack.c.l.b16 %v641
      %v678 = vunpack.c.l.b16 %v642
      %v679 = vunpack.c.l.b16 %v643
      %v680 = vunpack.c.l.b16 %v644
      %v681 = vunpack.c.l.b16 %v645
      %v682 = vunpack.c.l.b16 %v646
      %v683 = vunpack.c.l.b16 %v647
      %v684 = vunpack.c.l.b16 %v648
      %v685 = vunpack.c.l.b16 %v649
      %v686 = vunpack.c.l.b16 %v650
      %v687 = vunpack.c.l.b16 %v651
      %v688 = vunpack.c.l.b16 %v652
      %v689 = vunpack.c.l.b16 %v653
      %v690 = vpack.c.b16 %v675, %v674
      %v691 = vpack.c.b16 %v677, %v676
      %v692 = vpack.c.b16 %v679, %v678
      %v693 = vpack.c.b16 %v681, %v680
      %v694 = vpack.c.b16 %v683, %v682
      %v695 = vpack.c.b16 %v685, %v684
      %v696 = vpack.c.b16 %v687, %v686
      %v697 = vpack.c.b16 %v689, %v688
      %706 = vmatprep.subr.bf16.mxu0 0
      %707 = vmatpush1.bf16.msra.mxu0 %v690
      %708 = vmatprep.subr.bf16.mxu0 0
      %709 = vmatpush1.bf16.msra.mxu0 %v691
      %710 = vmatprep.subr.bf16.mxu0 0
      %711 = vmatpush1.bf16.msra.mxu0 %v692
      %712 = vmatprep.subr.bf16.mxu0 0
      %713 = vmatpush1.bf16.msra.mxu0 %v693
      %714 = vmatprep.subr.bf16.mxu0 0
      %715 = vmatpush1.bf16.msra.mxu0 %v694
      %716 = vmatprep.subr.bf16.mxu0 0
      %717 = vmatpush1.bf16.msra.mxu0 %v695
      %718 = vmatprep.subr.bf16.mxu0 0
      %719 = vmatpush1.bf16.msra.mxu0 %v696
      %720 = vmatprep.subr.bf16.mxu0 0
      %721 = vmatpush1.bf16.msra.mxu0 %v697
      %722 = vmatprep.subr.bf16.mxu0 0
      %723 = vmatpush1.bf16.msra.mxu0 0
      %724 = vmatprep.subr.bf16.mxu0 0
      %725 = vmatpush1.bf16.msra.mxu0 0
      %726 = vmatprep.subr.bf16.mxu0 0
      %727 = vmatpush1.bf16.msra.mxu0 0
      %728 = vmatprep.subr.bf16.mxu0 0
      %729 = vmatpush1.bf16.msra.mxu0 0
      %730 = vmatprep.subr.bf16.mxu0 0
      %731 = vmatpush1.bf16.msra.mxu0 0
      %732 = vmatprep.subr.bf16.mxu0 0
      %733 = vmatpush1.bf16.msra.mxu0 0
      %734 = vmatprep.subr.bf16.mxu0 0
      %735 = vmatpush1.bf16.msra.mxu0 0
      %736 = vmatprep.subr.bf16.mxu0 0
      %737 = vmatpush1.bf16.msra.mxu0 0
      %738 = vmatprep.mubr.bf16.mxu0 0
      %739 = vmatmul.mubr.bf16.gmra.mrb[0].mxu0 %v527
      %v740 = vpop.f32.mrb[0].mxu0
      %v741 = vadd.f32 %v657, %v740
      %v742 = vpop.f32.mrb[0].mxu0
      %v743 = vpop.f32.mrb[0].mxu0
      %v744 = vadd.f32 %v657, %v743
      %v745 = vpop.f32.mrb[0].mxu0
      %746 = vdwg.mxu0
      %s747 = scalar_lea.vmem %s454, 128
      %v748 = vld [vmem:[%s747] sm:$0xf]
      %v749 = vld [vmem:[%s747 + $0x4] sm:$0xf]
      %v750 = vld [vmem:[%s747 + $0x8] sm:$0xf]
      %v751 = vld [vmem:[%s747 + $0xc] sm:$0xf]
      %v752 = vld [vmem:[%s747 + $0x10] sm:$0xf]
      %v753 = vld [vmem:[%s747 + $0x14] sm:$0xf]
      %v754 = vld [vmem:[%s747 + $0x18] sm:$0xf]
      %v755 = vld [vmem:[%s747 + $0x1c] sm:$0xf]
      %v756 = vld [vmem:[%s747 + $0x20] sm:$0xf]
      %v757 = vld [vmem:[%s747 + $0x24] sm:$0xf]
      %v758 = vld [vmem:[%s747 + $0x28] sm:$0xf]
      %v759 = vld [vmem:[%s747 + $0x2c] sm:$0xf]
      %v760 = vld [vmem:[%s747 + $0x30] sm:$0xf]
      %v761 = vld [vmem:[%s747 + $0x34] sm:$0xf]
      %v762 = vld [vmem:[%s747 + $0x38] sm:$0xf]
      %v763 = vld [vmem:[%s747 + $0x3c] sm:$0xf]
      %v764 = vlaneseq
      %v765 = vshrl.u32 %v764, 7
      %v766 = vsub.s32 6, %v765
      %v767 = vrot.slane %v490, %v766
      %v784 = vunpack.c.l.b16 %v748
      %v785 = vunpack.c.l.b16 %v749
      %v786 = vunpack.c.l.b16 %v750
      %v787 = vunpack.c.l.b16 %v751
      %v788 = vunpack.c.l.b16 %v752
      %v789 = vunpack.c.l.b16 %v753
      %v790 = vunpack.c.l.b16 %v754
      %v791 = vunpack.c.l.b16 %v755
      %v792 = vunpack.c.l.b16 %v756
      %v793 = vunpack.c.l.b16 %v757
      %v794 = vunpack.c.l.b16 %v758
      %v795 = vunpack.c.l.b16 %v759
      %v796 = vunpack.c.l.b16 %v760
      %v797 = vunpack.c.l.b16 %v761
      %v798 = vunpack.c.l.b16 %v762
      %v799 = vunpack.c.l.b16 %v763
      %v800 = vpack.c.b16 %v785, %v784
      %v801 = vpack.c.b16 %v787, %v786
      %v802 = vpack.c.b16 %v789, %v788
      %v803 = vpack.c.b16 %v791, %v790
      %v804 = vpack.c.b16 %v793, %v792
      %v805 = vpack.c.b16 %v795, %v794
      %v806 = vpack.c.b16 %v797, %v796
      %v807 = vpack.c.b16 %v799, %v798
      %816 = vmatprep.subr.bf16.mxu0 0
      %817 = vmatpush1.bf16.msra.mxu0 %v800
      %818 = vmatprep.subr.bf16.mxu0 0
      %819 = vmatpush1.bf16.msra.mxu0 %v801
      %820 = vmatprep.subr.bf16.mxu0 0
      %821 = vmatpush1.bf16.msra.mxu0 %v802
      %822 = vmatprep.subr.bf16.mxu0 0
      %823 = vmatpush1.bf16.msra.mxu0 %v803
      %824 = vmatprep.subr.bf16.mxu0 0
      %825 = vmatpush1.bf16.msra.mxu0 %v804
      %826 = vmatprep.subr.bf16.mxu0 0
      %827 = vmatpush1.bf16.msra.mxu0 %v805
      %828 = vmatprep.subr.bf16.mxu0 0
      %829 = vmatpush1.bf16.msra.mxu0 %v806
      %830 = vmatprep.subr.bf16.mxu0 0
      %831 = vmatpush1.bf16.msra.mxu0 %v807
      %832 = vmatprep.subr.bf16.mxu0 0
      %833 = vmatpush1.bf16.msra.mxu0 0
      %834 = vmatprep.subr.bf16.mxu0 0
      %835 = vmatpush1.bf16.msra.mxu0 0
      %836 = vmatprep.subr.bf16.mxu0 0
      %837 = vmatpush1.bf16.msra.mxu0 0
      %838 = vmatprep.subr.bf16.mxu0 0
      %839 = vmatpush1.bf16.msra.mxu0 0
      %840 = vmatprep.subr.bf16.mxu0 0
      %841 = vmatpush1.bf16.msra.mxu0 0
      %842 = vmatprep.subr.bf16.mxu0 0
      %843 = vmatpush1.bf16.msra.mxu0 0
      %844 = vmatprep.subr.bf16.mxu0 0
      %845 = vmatpush1.bf16.msra.mxu0 0
      %846 = vmatprep.subr.bf16.mxu0 0
      %847 = vmatpush1.bf16.msra.mxu0 0
      %848 = vmatprep.mubr.bf16.mxu0 0
      %849 = vmatmul.mubr.bf16.gmra.mrb[0].mxu0 %v527
      %v850 = vpop.f32.mrb[0].mxu0
      %v851 = vadd.f32 %v767, %v850
      %v852 = vpop.f32.mrb[0].mxu0
      %v853 = vpop.f32.mrb[0].mxu0
      %v854 = vadd.f32 %v767, %v853
      %v855 = vpop.f32.mrb[0].mxu0
      %856 = vdwg.mxu0
      %v857 = vmul.f32 %v631, 0.17677669
      %v858 = vmul.f32 %v634, 0.17677669
      %861 = vrot.lane.b32.xlu0 %v857, 96
      %v862 = vpop.permute.xlu0 %861
      %863 = vrot.lane.b32.xlu0 %v858, 96
      %v864 = vpop.permute.xlu0 %863
      %867 = vrot.lane.b32.xlu0 %v857, 64
      %v868 = vpop.permute.xlu0 %867
      %869 = vrot.lane.b32.xlu0 %v858, 64
      %v870 = vpop.permute.xlu0 %869
      %873 = vrot.lane.b32.xlu0 %v857, 32
      %v874 = vpop.permute.xlu0 %873
      %875 = vrot.lane.b32.xlu0 %v858, 32
      %v876 = vpop.permute.xlu0 %875
      %v879 = vcombine.low %v857, %v868
      %v880 = vcombine.high %v857, %v868
      %v882 = vunpack.c.l.s4 1983009808
      %v883 = vunpack.c.0.s8 %v882
      %v884 = vlaneseq
      %v885 = vshrl.u32 %v884, 7
      %v886 = vsub.s32 %v883, %v885
      %v887 = vrot.slane %v879, %v886
      %v889 = vunpack.c.l.s4 1983009808
      %v890 = vunpack.c.0.s8 %v889
      %v891 = vlaneseq
      %v892 = vshrl.u32 %v891, 7
      %v893 = vsub.s32 %v890, %v892
      %v894 = vrot.slane %v880, %v893
      %v895 = vcombine.low %v862, %v874
      %v896 = vcombine.high %v862, %v874
      %v898 = vunpack.c.l.s4 1983009808
      %v899 = vunpack.c.0.s8 %v898
      %v900 = vlaneseq
      %v901 = vshrl.u32 %v900, 7
      %v902 = vsub.s32 %v899, %v901
      %v903 = vrot.slane %v895, %v902
      %v905 = vunpack.c.l.s4 1983009808
      %v906 = vunpack.c.0.s8 %v905
      %v907 = vlaneseq
      %v908 = vshrl.u32 %v907, 7
      %v909 = vsub.s32 %v906, %v908
      %v910 = vrot.slane %v896, %v909
      %v911 = vcombine.low %v887, %v903
      %v912 = vcombine.high %v887, %v903
      %v914 = vunpack.c.l.s4 1934713408
      %v915 = vunpack.c.0.s8 %v914
      %v916 = vlaneseq
      %v917 = vshrl.u32 %v916, 7
      %v918 = vsub.s32 %v915, %v917
      %v919 = vrot.slane %v911, %v918
      %v921 = vunpack.c.l.s4 1934713408
      %v922 = vunpack.c.0.s8 %v921
      %v923 = vlaneseq
      %v924 = vshrl.u32 %v923, 7
      %v925 = vsub.s32 %v922, %v924
      %v926 = vrot.slane %v912, %v925
      %v927 = vcombine.low %v894, %v910
      %v928 = vcombine.high %v894, %v910
      %v930 = vunpack.c.l.s4 1934713408
      %v931 = vunpack.c.0.s8 %v930
      %v932 = vlaneseq
      %v933 = vshrl.u32 %v932, 7
      %v934 = vsub.s32 %v931, %v933
      %v935 = vrot.slane %v927, %v934
      %v937 = vunpack.c.l.s4 1934713408
      %v938 = vunpack.c.0.s8 %v937
      %v939 = vlaneseq
      %v940 = vshrl.u32 %v939, 7
      %v941 = vsub.s32 %v938, %v940
      %v942 = vrot.slane %v928, %v941
      %v943 = vcombine.high %v919, 0.0
      %v944 = vcombine.high %v926, 0.0
      %v945 = vcombine.high %v935, 0.0
      %v946 = vcombine.high %v942, 0.0
      %v947 = vcombine.low %v858, %v870
      %v948 = vcombine.high %v858, %v870
      %v950 = vunpack.c.l.s4 1983009808
      %v951 = vunpack.c.0.s8 %v950
      %v952 = vlaneseq
      %v953 = vshrl.u32 %v952, 7
      %v954 = vsub.s32 %v951, %v953
      %v955 = vrot.slane %v947, %v954
      %v957 = vunpack.c.l.s4 1983009808
      %v958 = vunpack.c.0.s8 %v957
      %v959 = vlaneseq
      %v960 = vshrl.u32 %v959, 7
      %v961 = vsub.s32 %v958, %v960
      %v962 = vrot.slane %v948, %v961
      %v963 = vcombine.low %v864, %v876
      %v964 = vcombine.high %v864, %v876
      %v966 = vunpack.c.l.s4 1983009808
      %v967 = vunpack.c.0.s8 %v966
      %v968 = vlaneseq
      %v969 = vshrl.u32 %v968, 7
      %v970 = vsub.s32 %v967, %v969
      %v971 = vrot.slane %v963, %v970
      %v973 = vunpack.c.l.s4 1983009808
      %v974 = vunpack.c.0.s8 %v973
      %v975 = vlaneseq
      %v976 = vshrl.u32 %v975, 7
      %v977 = vsub.s32 %v974, %v976
      %v978 = vrot.slane %v964, %v977
      %v979 = vcombine.low %v955, %v971
      %v980 = vcombine.high %v955, %v971
      %v982 = vunpack.c.l.s4 1934713408
      %v983 = vunpack.c.0.s8 %v982
      %v984 = vlaneseq
      %v985 = vshrl.u32 %v984, 7
      %v986 = vsub.s32 %v983, %v985
      %v987 = vrot.slane %v979, %v986
      %v989 = vunpack.c.l.s4 1934713408
      %v990 = vunpack.c.0.s8 %v989
      %v991 = vlaneseq
      %v992 = vshrl.u32 %v991, 7
      %v993 = vsub.s32 %v990, %v992
      %v994 = vrot.slane %v980, %v993
      %v995 = vcombine.low %v962, %v978
      %v996 = vcombine.high %v962, %v978
      %v998 = vunpack.c.l.s4 1934713408
      %v999 = vunpack.c.0.s8 %v998
      %v1000 = vlaneseq
      %v1001 = vshrl.u32 %v1000, 7
      %v1002 = vsub.s32 %v999, %v1001
      %v1003 = vrot.slane %v995, %v1002
      %v1005 = vunpack.c.l.s4 1934713408
      %v1006 = vunpack.c.0.s8 %v1005
      %v1007 = vlaneseq
      %v1008 = vshrl.u32 %v1007, 7
      %v1009 = vsub.s32 %v1006, %v1008
      %v1010 = vrot.slane %v996, %v1009
      %v1011 = vcombine.high %v987, 0.0
      %v1012 = vcombine.high %v994, 0.0
      %v1013 = vcombine.high %v1003, 0.0
      %v1014 = vcombine.high %v1010, 0.0
      %v1015 = vcombine.low %v919, %v926
      %v1017 = vunpack.c.l.s4 1983009808
      %v1018 = vunpack.c.0.s8 %v1017
      %v1019 = vlaneseq
      %v1020 = vshrl.u32 %v1019, 7
      %v1021 = vsub.s32 %v1018, %v1020
      %v1022 = vrot.slane %v1015, %v1021
      %v1023 = vcombine.low %v943, %v944
      %v1025 = vunpack.c.l.s4 1983009808
      %v1026 = vunpack.c.0.s8 %v1025
      %v1027 = vlaneseq
      %v1028 = vshrl.u32 %v1027, 7
      %v1029 = vsub.s32 %v1026, %v1028
      %v1030 = vrot.slane %v1023, %v1029
      %v1031 = vcombine.low %v935, %v942
      %v1033 = vunpack.c.l.s4 1983009808
      %v1034 = vunpack.c.0.s8 %v1033
      %v1035 = vlaneseq
      %v1036 = vshrl.u32 %v1035, 7
      %v1037 = vsub.s32 %v1034, %v1036
      %v1038 = vrot.slane %v1031, %v1037
      %v1039 = vcombine.low %v945, %v946
      %v1041 = vunpack.c.l.s4 1983009808
      %v1042 = vunpack.c.0.s8 %v1041
      %v1043 = vlaneseq
      %v1044 = vshrl.u32 %v1043, 7
      %v1045 = vsub.s32 %v1042, %v1044
      %v1046 = vrot.slane %v1039, %v1045
      %v1047 = vcombine.low %v1022, %v1030
      %v1048 = vcombine.high %v1022, %v1030
      %v1050 = vunpack.c.l.s4 1934713408
      %v1051 = vunpack.c.0.s8 %v1050
      %v1052 = vlaneseq
      %v1053 = vshrl.u32 %v1052, 7
      %v1054 = vsub.s32 %v1051, %v1053
      %v1055 = vrot.slane %v1047, %v1054
      %v1057 = vunpack.c.l.s4 1934713408
      %v1058 = vunpack.c.0.s8 %v1057
      %v1059 = vlaneseq
      %v1060 = vshrl.u32 %v1059, 7
      %v1061 = vsub.s32 %v1058, %v1060
      %v1062 = vrot.slane %v1048, %v1061
      %v1063 = vcombine.low %v1038, %v1046
      %v1064 = vcombine.high %v1038, %v1046
      %v1066 = vunpack.c.l.s4 1934713408
      %v1067 = vunpack.c.0.s8 %v1066
      %v1068 = vlaneseq
      %v1069 = vshrl.u32 %v1068, 7
      %v1070 = vsub.s32 %v1067, %v1069
      %v1071 = vrot.slane %v1063, %v1070
      %v1073 = vunpack.c.l.s4 1934713408
      %v1074 = vunpack.c.0.s8 %v1073
      %v1075 = vlaneseq
      %v1076 = vshrl.u32 %v1075, 7
      %v1077 = vsub.s32 %v1074, %v1076
      %v1078 = vrot.slane %v1064, %v1077
      %v1079 = vcombine.low %v1055, %v1071
      %v1080 = vcombine.high %v1055, %v1071
      %v1081 = vcombine.low %v1062, %v1078
      %v1082 = vcombine.high %v1062, %v1078
      %v1083 = vcombine.low %v987, %v994
      %v1085 = vunpack.c.l.s4 1983009808
      %v1086 = vunpack.c.0.s8 %v1085
      %v1087 = vlaneseq
      %v1088 = vshrl.u32 %v1087, 7
      %v1089 = vsub.s32 %v1086, %v1088
      %v1090 = vrot.slane %v1083, %v1089
      %v1091 = vcombine.low %v1011, %v1012
      %v1093 = vunpack.c.l.s4 1983009808
      %v1094 = vunpack.c.0.s8 %v1093
      %v1095 = vlaneseq
      %v1096 = vshrl.u32 %v1095, 7
      %v1097 = vsub.s32 %v1094, %v1096
      %v1098 = vrot.slane %v1091, %v1097
      %v1099 = vcombine.low %v1003, %v1010
      %v1101 = vunpack.c.l.s4 1983009808
      %v1102 = vunpack.c.0.s8 %v1101
      %v1103 = vlaneseq
      %v1104 = vshrl.u32 %v1103, 7
      %v1105 = vsub.s32 %v1102, %v1104
      %v1106 = vrot.slane %v1099, %v1105
      %v1107 = vcombine.low %v1013, %v1014
      %v1109 = vunpack.c.l.s4 1983009808
      %v1110 = vunpack.c.0.s8 %v1109
      %v1111 = vlaneseq
      %v1112 = vshrl.u32 %v1111, 7
      %v1113 = vsub.s32 %v1110, %v1112
      %v1114 = vrot.slane %v1107, %v1113
      %v1115 = vcombine.low %v1090, %v1098
      %v1116 = vcombine.high %v1090, %v1098
      %v1118 = vunpack.c.l.s4 1934713408
      %v1119 = vunpack.c.0.s8 %v1118
      %v1120 = vlaneseq
      %v1121 = vshrl.u32 %v1120, 7
      %v1122 = vsub.s32 %v1119, %v1121
      %v1123 = vrot.slane %v1115, %v1122
      %v1125 = vunpack.c.l.s4 1934713408
      %v1126 = vunpack.c.0.s8 %v1125
      %v1127 = vlaneseq
      %v1128 = vshrl.u32 %v1127, 7
      %v1129 = vsub.s32 %v1126, %v1128
      %v1130 = vrot.slane %v1116, %v1129
      %v1131 = vcombine.low %v1106, %v1114
      %v1132 = vcombine.high %v1106, %v1114
      %v1134 = vunpack.c.l.s4 1934713408
      %v1135 = vunpack.c.0.s8 %v1134
      %v1136 = vlaneseq
      %v1137 = vshrl.u32 %v1136, 7
      %v1138 = vsub.s32 %v1135, %v1137
      %v1139 = vrot.slane %v1131, %v1138
      %v1141 = vunpack.c.l.s4 1934713408
      %v1142 = vunpack.c.0.s8 %v1141
      %v1143 = vlaneseq
      %v1144 = vshrl.u32 %v1143, 7
      %v1145 = vsub.s32 %v1142, %v1144
      %v1146 = vrot.slane %v1132, %v1145
      %v1147 = vcombine.low %v1123, %v1139
      %v1148 = vcombine.high %v1123, %v1139
      %v1149 = vcombine.low %v1130, %v1146
      %v1150 = vcombine.high %v1130, %v1146
      %v1151 = vpack.c.bf16 %v1147, %v1079
      %v1152 = vpack.c.bf16 %v1148, %v1080
      %v1153 = vpack.c.bf16 %v1149, %v1081
      %v1154 = vpack.c.bf16 %v1150, %v1082
      %1157 = vrot.lane.b32.xlu0 %v741, 96
      %v1158 = vpop.permute.xlu0 %1157
      %1159 = vrot.lane.b32.xlu0 %v744, 96
      %v1160 = vpop.permute.xlu0 %1159
      %1163 = vrot.lane.b32.xlu0 %v741, 64
      %v1164 = vpop.permute.xlu0 %1163
      %1165 = vrot.lane.b32.xlu0 %v744, 64
      %v1166 = vpop.permute.xlu0 %1165
      %1169 = vrot.lane.b32.xlu0 %v741, 32
      %v1170 = vpop.permute.xlu0 %1169
      %1171 = vrot.lane.b32.xlu0 %v744, 32
      %v1172 = vpop.permute.xlu0 %1171
      %v1175 = vcombine.low %v741, %v1164
      %v1176 = vcombine.high %v741, %v1164
      %v1178 = vunpack.c.l.s4 1983009808
      %v1179 = vunpack.c.0.s8 %v1178
      %v1180 = vlaneseq
      %v1181 = vshrl.u32 %v1180, 7
      %v1182 = vsub.s32 %v1179, %v1181
      %v1183 = vrot.slane %v1175, %v1182
      %v1185 = vunpack.c.l.s4 1983009808
      %v1186 = vunpack.c.0.s8 %v1185
      %v1187 = vlaneseq
      %v1188 = vshrl.u32 %v1187, 7
      %v1189 = vsub.s32 %v1186, %v1188
      %v1190 = vrot.slane %v1176, %v1189
      %v1191 = vcombine.low %v1158, %v1170
      %v1192 = vcombine.high %v1158, %v1170
      %v1194 = vunpack.c.l.s4 1983009808
      %v1195 = vunpack.c.0.s8 %v1194
      %v1196 = vlaneseq
      %v1197 = vshrl.u32 %v1196, 7
      %v1198 = vsub.s32 %v1195, %v1197
      %v1199 = vrot.slane %v1191, %v1198
      %v1201 = vunpack.c.l.s4 1983009808
      %v1202 = vunpack.c.0.s8 %v1201
      %v1203 = vlaneseq
      %v1204 = vshrl.u32 %v1203, 7
      %v1205 = vsub.s32 %v1202, %v1204
      %v1206 = vrot.slane %v1192, %v1205
      %v1207 = vcombine.low %v1183, %v1199
      %v1208 = vcombine.high %v1183, %v1199
      %v1210 = vunpack.c.l.s4 1934713408
      %v1211 = vunpack.c.0.s8 %v1210
      %v1212 = vlaneseq
      %v1213 = vshrl.u32 %v1212, 7
      %v1214 = vsub.s32 %v1211, %v1213
      %v1215 = vrot.slane %v1207, %v1214
      %v1217 = vunpack.c.l.s4 1934713408
      %v1218 = vunpack.c.0.s8 %v1217
      %v1219 = vlaneseq
      %v1220 = vshrl.u32 %v1219, 7
      %v1221 = vsub.s32 %v1218, %v1220
      %v1222 = vrot.slane %v1208, %v1221
      %v1223 = vcombine.low %v1190, %v1206
      %v1224 = vcombine.high %v1190, %v1206
      %v1226 = vunpack.c.l.s4 1934713408
      %v1227 = vunpack.c.0.s8 %v1226
      %v1228 = vlaneseq
      %v1229 = vshrl.u32 %v1228, 7
      %v1230 = vsub.s32 %v1227, %v1229
      %v1231 = vrot.slane %v1223, %v1230
      %v1233 = vunpack.c.l.s4 1934713408
      %v1234 = vunpack.c.0.s8 %v1233
      %v1235 = vlaneseq
      %v1236 = vshrl.u32 %v1235, 7
      %v1237 = vsub.s32 %v1234, %v1236
      %v1238 = vrot.slane %v1224, %v1237
      %v1239 = vcombine.high %v1215, 0.0
      %v1240 = vcombine.high %v1222, 0.0
      %v1241 = vcombine.high %v1231, 0.0
      %v1242 = vcombine.high %v1238, 0.0
      %v1243 = vcombine.low %v744, %v1166
      %v1244 = vcombine.high %v744, %v1166
      %v1246 = vunpack.c.l.s4 1983009808
      %v1247 = vunpack.c.0.s8 %v1246
      %v1248 = vlaneseq
      %v1249 = vshrl.u32 %v1248, 7
      %v1250 = vsub.s32 %v1247, %v1249
      %v1251 = vrot.slane %v1243, %v1250
      %v1253 = vunpack.c.l.s4 1983009808
      %v1254 = vunpack.c.0.s8 %v1253
      %v1255 = vlaneseq
      %v1256 = vshrl.u32 %v1255, 7
      %v1257 = vsub.s32 %v1254, %v1256
      %v1258 = vrot.slane %v1244, %v1257
      %v1259 = vcombine.low %v1160, %v1172
      %v1260 = vcombine.high %v1160, %v1172
      %v1262 = vunpack.c.l.s4 1983009808
      %v1263 = vunpack.c.0.s8 %v1262
      %v1264 = vlaneseq
      %v1265 = vshrl.u32 %v1264, 7
      %v1266 = vsub.s32 %v1263, %v1265
      %v1267 = vrot.slane %v1259, %v1266
      %v1269 = vunpack.c.l.s4 1983009808
      %v1270 = vunpack.c.0.s8 %v1269
      %v1271 = vlaneseq
      %v1272 = vshrl.u32 %v1271, 7
      %v1273 = vsub.s32 %v1270, %v1272
      %v1274 = vrot.slane %v1260, %v1273
      %v1275 = vcombine.low %v1251, %v1267
      %v1276 = vcombine.high %v1251, %v1267
      %v1278 = vunpack.c.l.s4 1934713408
      %v1279 = vunpack.c.0.s8 %v1278
      %v1280 = vlaneseq
      %v1281 = vshrl.u32 %v1280, 7
      %v1282 = vsub.s32 %v1279, %v1281
      %v1283 = vrot.slane %v1275, %v1282
      %v1285 = vunpack.c.l.s4 1934713408
      %v1286 = vunpack.c.0.s8 %v1285
      %v1287 = vlaneseq
      %v1288 = vshrl.u32 %v1287, 7
      %v1289 = vsub.s32 %v1286, %v1288
      %v1290 = vrot.slane %v1276, %v1289
      %v1291 = vcombine.low %v1258, %v1274
      %v1292 = vcombine.high %v1258, %v1274
      %v1294 = vunpack.c.l.s4 1934713408
      %v1295 = vunpack.c.0.s8 %v1294
      %v1296 = vlaneseq
      %v1297 = vshrl.u32 %v1296, 7
      %v1298 = vsub.s32 %v1295, %v1297
      %v1299 = vrot.slane %v1291, %v1298
      %v1301 = vunpack.c.l.s4 1934713408
      %v1302 = vunpack.c.0.s8 %v1301
      %v1303 = vlaneseq
      %v1304 = vshrl.u32 %v1303, 7
      %v1305 = vsub.s32 %v1302, %v1304
      %v1306 = vrot.slane %v1292, %v1305
      %v1307 = vcombine.high %v1283, 0.0
      %v1308 = vcombine.high %v1290, 0.0
      %v1309 = vcombine.high %v1299, 0.0
      %v1310 = vcombine.high %v1306, 0.0
      %v1311 = vcombine.low %v1215, %v1222
      %v1313 = vunpack.c.l.s4 1983009808
      %v1314 = vunpack.c.0.s8 %v1313
      %v1315 = vlaneseq
      %v1316 = vshrl.u32 %v1315, 7
      %v1317 = vsub.s32 %v1314, %v1316
      %v1318 = vrot.slane %v1311, %v1317
      %v1319 = vcombine.low %v1239, %v1240
      %v1321 = vunpack.c.l.s4 1983009808
      %v1322 = vunpack.c.0.s8 %v1321
      %v1323 = vlaneseq
      %v1324 = vshrl.u32 %v1323, 7
      %v1325 = vsub.s32 %v1322, %v1324
      %v1326 = vrot.slane %v1319, %v1325
      %v1327 = vcombine.low %v1231, %v1238
      %v1329 = vunpack.c.l.s4 1983009808
      %v1330 = vunpack.c.0.s8 %v1329
      %v1331 = vlaneseq
      %v1332 = vshrl.u32 %v1331, 7
      %v1333 = vsub.s32 %v1330, %v1332
      %v1334 = vrot.slane %v1327, %v1333
      %v1335 = vcombine.low %v1241, %v1242
      %v1337 = vunpack.c.l.s4 1983009808
      %v1338 = vunpack.c.0.s8 %v1337
      %v1339 = vlaneseq
      %v1340 = vshrl.u32 %v1339, 7
      %v1341 = vsub.s32 %v1338, %v1340
      %v1342 = vrot.slane %v1335, %v1341
      %v1343 = vcombine.low %v1318, %v1326
      %v1344 = vcombine.high %v1318, %v1326
      %v1346 = vunpack.c.l.s4 1934713408
      %v1347 = vunpack.c.0.s8 %v1346
      %v1348 = vlaneseq
      %v1349 = vshrl.u32 %v1348, 7
      %v1350 = vsub.s32 %v1347, %v1349
      %v1351 = vrot.slane %v1343, %v1350
      %v1353 = vunpack.c.l.s4 1934713408
      %v1354 = vunpack.c.0.s8 %v1353
      %v1355 = vlaneseq
      %v1356 = vshrl.u32 %v1355, 7
      %v1357 = vsub.s32 %v1354, %v1356
      %v1358 = vrot.slane %v1344, %v1357
      %v1359 = vcombine.low %v1334, %v1342
      %v1360 = vcombine.high %v1334, %v1342
      %v1362 = vunpack.c.l.s4 1934713408
      %v1363 = vunpack.c.0.s8 %v1362
      %v1364 = vlaneseq
      %v1365 = vshrl.u32 %v1364, 7
      %v1366 = vsub.s32 %v1363, %v1365
      %v1367 = vrot.slane %v1359, %v1366
      %v1369 = vunpack.c.l.s4 1934713408
      %v1370 = vunpack.c.0.s8 %v1369
      %v1371 = vlaneseq
      %v1372 = vshrl.u32 %v1371, 7
      %v1373 = vsub.s32 %v1370, %v1372
      %v1374 = vrot.slane %v1360, %v1373
      %v1375 = vcombine.low %v1351, %v1367
      %v1376 = vcombine.high %v1351, %v1367
      %v1377 = vcombine.low %v1358, %v1374
      %v1378 = vcombine.high %v1358, %v1374
      %v1379 = vcombine.low %v1283, %v1290
      %v1381 = vunpack.c.l.s4 1983009808
      %v1382 = vunpack.c.0.s8 %v1381
      %v1383 = vlaneseq
      %v1384 = vshrl.u32 %v1383, 7
      %v1385 = vsub.s32 %v1382, %v1384
      %v1386 = vrot.slane %v1379, %v1385
      %v1387 = vcombine.low %v1307, %v1308
      %v1389 = vunpack.c.l.s4 1983009808
      %v1390 = vunpack.c.0.s8 %v1389
      %v1391 = vlaneseq
      %v1392 = vshrl.u32 %v1391, 7
      %v1393 = vsub.s32 %v1390, %v1392
      %v1394 = vrot.slane %v1387, %v1393
      %v1395 = vcombine.low %v1299, %v1306
      %v1397 = vunpack.c.l.s4 1983009808
      %v1398 = vunpack.c.0.s8 %v1397
      %v1399 = vlaneseq
      %v1400 = vshrl.u32 %v1399, 7
      %v1401 = vsub.s32 %v1398, %v1400
      %v1402 = vrot.slane %v1395, %v1401
      %v1403 = vcombine.low %v1309, %v1310
      %v1405 = vunpack.c.l.s4 1983009808
      %v1406 = vunpack.c.0.s8 %v1405
      %v1407 = vlaneseq
      %v1408 = vshrl.u32 %v1407, 7
      %v1409 = vsub.s32 %v1406, %v1408
      %v1410 = vrot.slane %v1403, %v1409
      %v1411 = vcombine.low %v1386, %v1394
      %v1412 = vcombine.high %v1386, %v1394
      %v1414 = vunpack.c.l.s4 1934713408
      %v1415 = vunpack.c.0.s8 %v1414
      %v1416 = vlaneseq
      %v1417 = vshrl.u32 %v1416, 7
      %v1418 = vsub.s32 %v1415, %v1417
      %v1419 = vrot.slane %v1411, %v1418
      %v1421 = vunpack.c.l.s4 1934713408
      %v1422 = vunpack.c.0.s8 %v1421
      %v1423 = vlaneseq
      %v1424 = vshrl.u32 %v1423, 7
      %v1425 = vsub.s32 %v1422, %v1424
      %v1426 = vrot.slane %v1412, %v1425
      %v1427 = vcombine.low %v1402, %v1410
      %v1428 = vcombine.high %v1402, %v1410
      %v1430 = vunpack.c.l.s4 1934713408
      %v1431 = vunpack.c.0.s8 %v1430
      %v1432 = vlaneseq
      %v1433 = vshrl.u32 %v1432, 7
      %v1434 = vsub.s32 %v1431, %v1433
      %v1435 = vrot.slane %v1427, %v1434
      %v1437 = vunpack.c.l.s4 1934713408
      %v1438 = vunpack.c.0.s8 %v1437
      %v1439 = vlaneseq
      %v1440 = vshrl.u32 %v1439, 7
      %v1441 = vsub.s32 %v1438, %v1440
      %v1442 = vrot.slane %v1428, %v1441
      %v1443 = vcombine.low %v1419, %v1435
      %v1444 = vcombine.high %v1419, %v1435
      %v1445 = vcombine.low %v1426, %v1442
      %v1446 = vcombine.high %v1426, %v1442
      %v1447 = vpack.c.bf16 %v1443, %v1375
      %v1448 = vpack.c.bf16 %v1444, %v1376
      %v1449 = vpack.c.bf16 %v1445, %v1377
      %v1450 = vpack.c.bf16 %v1446, %v1378
      %1453 = vrot.lane.b32.xlu0 %v851, 96
      %v1454 = vpop.permute.xlu0 %1453
      %1455 = vrot.lane.b32.xlu0 %v854, 96
      %v1456 = vpop.permute.xlu0 %1455
      %1459 = vrot.lane.b32.xlu0 %v851, 64
      %v1460 = vpop.permute.xlu0 %1459
      %1461 = vrot.lane.b32.xlu0 %v854, 64
      %v1462 = vpop.permute.xlu0 %1461
      %1465 = vrot.lane.b32.xlu0 %v851, 32
      %v1466 = vpop.permute.xlu0 %1465
      %1467 = vrot.lane.b32.xlu0 %v854, 32
      %v1468 = vpop.permute.xlu0 %1467
      %v1471 = vcombine.low %v851, %v1460
      %v1472 = vcombine.high %v851, %v1460
      %v1474 = vunpack.c.l.s4 1983009808
      %v1475 = vunpack.c.0.s8 %v1474
      %v1476 = vlaneseq
      %v1477 = vshrl.u32 %v1476, 7
      %v1478 = vsub.s32 %v1475, %v1477
      %v1479 = vrot.slane %v1471, %v1478
      %v1481 = vunpack.c.l.s4 1983009808
      %v1482 = vunpack.c.0.s8 %v1481
      %v1483 = vlaneseq
      %v1484 = vshrl.u32 %v1483, 7
      %v1485 = vsub.s32 %v1482, %v1484
      %v1486 = vrot.slane %v1472, %v1485
      %v1487 = vcombine.low %v1454, %v1466
      %v1488 = vcombine.high %v1454, %v1466
      %v1490 = vunpack.c.l.s4 1983009808
      %v1491 = vunpack.c.0.s8 %v1490
      %v1492 = vlaneseq
      %v1493 = vshrl.u32 %v1492, 7
      %v1494 = vsub.s32 %v1491, %v1493
      %v1495 = vrot.slane %v1487, %v1494
      %v1497 = vunpack.c.l.s4 1983009808
      %v1498 = vunpack.c.0.s8 %v1497
      %v1499 = vlaneseq
      %v1500 = vshrl.u32 %v1499, 7
      %v1501 = vsub.s32 %v1498, %v1500
      %v1502 = vrot.slane %v1488, %v1501
      %v1503 = vcombine.low %v1479, %v1495
      %v1504 = vcombine.high %v1479, %v1495
      %v1506 = vunpack.c.l.s4 1934713408
      %v1507 = vunpack.c.0.s8 %v1506
      %v1508 = vlaneseq
      %v1509 = vshrl.u32 %v1508, 7
      %v1510 = vsub.s32 %v1507, %v1509
      %v1511 = vrot.slane %v1503, %v1510
      %v1513 = vunpack.c.l.s4 1934713408
      %v1514 = vunpack.c.0.s8 %v1513
      %v1515 = vlaneseq
      %v1516 = vshrl.u32 %v1515, 7
      %v1517 = vsub.s32 %v1514, %v1516
      %v1518 = vrot.slane %v1504, %v1517
      %v1519 = vcombine.low %v1486, %v1502
      %v1520 = vcombine.high %v1486, %v1502
      %v1522 = vunpack.c.l.s4 1934713408
      %v1523 = vunpack.c.0.s8 %v1522
      %v1524 = vlaneseq
      %v1525 = vshrl.u32 %v1524, 7
      %v1526 = vsub.s32 %v1523, %v1525
      %v1527 = vrot.slane %v1519, %v1526
      %v1529 = vunpack.c.l.s4 1934713408
      %v1530 = vunpack.c.0.s8 %v1529
      %v1531 = vlaneseq
      %v1532 = vshrl.u32 %v1531, 7
      %v1533 = vsub.s32 %v1530, %v1532
      %v1534 = vrot.slane %v1520, %v1533
      %v1535 = vcombine.high %v1511, 0.0
      %v1536 = vcombine.high %v1518, 0.0
      %v1537 = vcombine.high %v1527, 0.0
      %v1538 = vcombine.high %v1534, 0.0
      %v1539 = vcombine.low %v854, %v1462
      %v1540 = vcombine.high %v854, %v1462
      %v1542 = vunpack.c.l.s4 1983009808
      %v1543 = vunpack.c.0.s8 %v1542
      %v1544 = vlaneseq
      %v1545 = vshrl.u32 %v1544, 7
      %v1546 = vsub.s32 %v1543, %v1545
      %v1547 = vrot.slane %v1539, %v1546
      %v1549 = vunpack.c.l.s4 1983009808
      %v1550 = vunpack.c.0.s8 %v1549
      %v1551 = vlaneseq
      %v1552 = vshrl.u32 %v1551, 7
      %v1553 = vsub.s32 %v1550, %v1552
      %v1554 = vrot.slane %v1540, %v1553
      %v1555 = vcombine.low %v1456, %v1468
      %v1556 = vcombine.high %v1456, %v1468
      %v1558 = vunpack.c.l.s4 1983009808
      %v1559 = vunpack.c.0.s8 %v1558
      %v1560 = vlaneseq
      %v1561 = vshrl.u32 %v1560, 7
      %v1562 = vsub.s32 %v1559, %v1561
      %v1563 = vrot.slane %v1555, %v1562
      %v1565 = vunpack.c.l.s4 1983009808
      %v1566 = vunpack.c.0.s8 %v1565
      %v1567 = vlaneseq
      %v1568 = vshrl.u32 %v1567, 7
      %v1569 = vsub.s32 %v1566, %v1568
      %v1570 = vrot.slane %v1556, %v1569
      %v1571 = vcombine.low %v1547, %v1563
      %v1572 = vcombine.high %v1547, %v1563
      %v1574 = vunpack.c.l.s4 1934713408
      %v1575 = vunpack.c.0.s8 %v1574
      %v1576 = vlaneseq
      %v1577 = vshrl.u32 %v1576, 7
      %v1578 = vsub.s32 %v1575, %v1577
      %v1579 = vrot.slane %v1571, %v1578
      %v1581 = vunpack.c.l.s4 1934713408
      %v1582 = vunpack.c.0.s8 %v1581
      %v1583 = vlaneseq
      %v1584 = vshrl.u32 %v1583, 7
      %v1585 = vsub.s32 %v1582, %v1584
      %v1586 = vrot.slane %v1572, %v1585
      %v1587 = vcombine.low %v1554, %v1570
      %v1588 = vcombine.high %v1554, %v1570
      %v1590 = vunpack.c.l.s4 1934713408
      %v1591 = vunpack.c.0.s8 %v1590
      %v1592 = vlaneseq
      %v1593 = vshrl.u32 %v1592, 7
      %v1594 = vsub.s32 %v1591, %v1593
      %v1595 = vrot.slane %v1587, %v1594
      %v1597 = vunpack.c.l.s4 1934713408
      %v1598 = vunpack.c.0.s8 %v1597
      %v1599 = vlaneseq
      %v1600 = vshrl.u32 %v1599, 7
      %v1601 = vsub.s32 %v1598, %v1600
      %v1602 = vrot.slane %v1588, %v1601
      %v1603 = vcombine.high %v1579, 0.0
      %v1604 = vcombine.high %v1586, 0.0
      %v1605 = vcombine.high %v1595, 0.0
      %v1606 = vcombine.high %v1602, 0.0
      %v1607 = vcombine.low %v1511, %v1518
      %v1609 = vunpack.c.l.s4 1983009808
      %v1610 = vunpack.c.0.s8 %v1609
      %v1611 = vlaneseq
      %v1612 = vshrl.u32 %v1611, 7
      %v1613 = vsub.s32 %v1610, %v1612
      %v1614 = vrot.slane %v1607, %v1613
      %v1615 = vcombine.low %v1535, %v1536
      %v1617 = vunpack.c.l.s4 1983009808
      %v1618 = vunpack.c.0.s8 %v1617
      %v1619 = vlaneseq
      %v1620 = vshrl.u32 %v1619, 7
      %v1621 = vsub.s32 %v1618, %v1620
      %v1622 = vrot.slane %v1615, %v1621
      %v1623 = vcombine.low %v1527, %v1534
      %v1625 = vunpack.c.l.s4 1983009808
      %v1626 = vunpack.c.0.s8 %v1625
      %v1627 = vlaneseq
      %v1628 = vshrl.u32 %v1627, 7
      %v1629 = vsub.s32 %v1626, %v1628
      %v1630 = vrot.slane %v1623, %v1629
      %v1631 = vcombine.low %v1537, %v1538
      %v1633 = vunpack.c.l.s4 1983009808
      %v1634 = vunpack.c.0.s8 %v1633
      %v1635 = vlaneseq
      %v1636 = vshrl.u32 %v1635, 7
      %v1637 = vsub.s32 %v1634, %v1636
      %v1638 = vrot.slane %v1631, %v1637
      %v1639 = vcombine.low %v1614, %v1622
      %v1640 = vcombine.high %v1614, %v1622
      %v1642 = vunpack.c.l.s4 1934713408
      %v1643 = vunpack.c.0.s8 %v1642
      %v1644 = vlaneseq
      %v1645 = vshrl.u32 %v1644, 7
      %v1646 = vsub.s32 %v1643, %v1645
      %v1647 = vrot.slane %v1639, %v1646
      %v1649 = vunpack.c.l.s4 1934713408
      %v1650 = vunpack.c.0.s8 %v1649
      %v1651 = vlaneseq
      %v1652 = vshrl.u32 %v1651, 7
      %v1653 = vsub.s32 %v1650, %v1652
      %v1654 = vrot.slane %v1640, %v1653
      %v1655 = vcombine.low %v1630, %v1638
      %v1656 = vcombine.high %v1630, %v1638
      %v1658 = vunpack.c.l.s4 1934713408
      %v1659 = vunpack.c.0.s8 %v1658
      %v1660 = vlaneseq
      %v1661 = vshrl.u32 %v1660, 7
      %v1662 = vsub.s32 %v1659, %v1661
      %v1663 = vrot.slane %v1655, %v1662
      %v1665 = vunpack.c.l.s4 1934713408
      %v1666 = vunpack.c.0.s8 %v1665
      %v1667 = vlaneseq
      %v1668 = vshrl.u32 %v1667, 7
      %v1669 = vsub.s32 %v1666, %v1668
      %v1670 = vrot.slane %v1656, %v1669
      %v1671 = vcombine.low %v1647, %v1663
      %v1672 = vcombine.high %v1647, %v1663
      %v1673 = vcombine.low %v1654, %v1670
      %v1674 = vcombine.high %v1654, %v1670
      %v1675 = vcombine.low %v1579, %v1586
      %v1677 = vunpack.c.l.s4 1983009808
      %v1678 = vunpack.c.0.s8 %v1677
      %v1679 = vlaneseq
      %v1680 = vshrl.u32 %v1679, 7
      %v1681 = vsub.s32 %v1678, %v1680
      %v1682 = vrot.slane %v1675, %v1681
      %v1683 = vcombine.low %v1603, %v1604
      %v1685 = vunpack.c.l.s4 1983009808
      %v1686 = vunpack.c.0.s8 %v1685
      %v1687 = vlaneseq
      %v1688 = vshrl.u32 %v1687, 7
      %v1689 = vsub.s32 %v1686, %v1688
      %v1690 = vrot.slane %v1683, %v1689
      %v1691 = vcombine.low %v1595, %v1602
      %v1693 = vunpack.c.l.s4 1983009808
      %v1694 = vunpack.c.0.s8 %v1693
      %v1695 = vlaneseq
      %v1696 = vshrl.u32 %v1695, 7
      %v1697 = vsub.s32 %v1694, %v1696
      %v1698 = vrot.slane %v1691, %v1697
      %v1699 = vcombine.low %v1605, %v1606
      %v1701 = vunpack.c.l.s4 1983009808
      %v1702 = vunpack.c.0.s8 %v1701
      %v1703 = vlaneseq
      %v1704 = vshrl.u32 %v1703, 7
      %v1705 = vsub.s32 %v1702, %v1704
      %v1706 = vrot.slane %v1699, %v1705
      %v1707 = vcombine.low %v1682, %v1690
      %v1708 = vcombine.high %v1682, %v1690
      %v1710 = vunpack.c.l.s4 1934713408
      %v1711 = vunpack.c.0.s8 %v1710
      %v1712 = vlaneseq
      %v1713 = vshrl.u32 %v1712, 7
      %v1714 = vsub.s32 %v1711, %v1713
      %v1715 = vrot.slane %v1707, %v1714
      %v1717 = vunpack.c.l.s4 1934713408
      %v1718 = vunpack.c.0.s8 %v1717
      %v1719 = vlaneseq
      %v1720 = vshrl.u32 %v1719, 7
      %v1721 = vsub.s32 %v1718, %v1720
      %v1722 = vrot.slane %v1708, %v1721
      %v1723 = vcombine.low %v1698, %v1706
      %v1724 = vcombine.high %v1698, %v1706
      %v1726 = vunpack.c.l.s4 1934713408
      %v1727 = vunpack.c.0.s8 %v1726
      %v1728 = vlaneseq
      %v1729 = vshrl.u32 %v1728, 7
      %v1730 = vsub.s32 %v1727, %v1729
      %v1731 = vrot.slane %v1723, %v1730
      %v1733 = vunpack.c.l.s4 1934713408
      %v1734 = vunpack.c.0.s8 %v1733
      %v1735 = vlaneseq
      %v1736 = vshrl.u32 %v1735, 7
      %v1737 = vsub.s32 %v1734, %v1736
      %v1738 = vrot.slane %v1724, %v1737
      %v1739 = vcombine.low %v1715, %v1731
      %v1740 = vcombine.high %v1715, %v1731
      %v1741 = vcombine.low %v1722, %v1738
      %v1742 = vcombine.high %v1722, %v1738
      %v1743 = vpack.c.bf16 %v1739, %v1671
      %v1744 = vpack.c.bf16 %v1740, %v1672
      %v1745 = vpack.c.bf16 %v1741, %v1673
      %v1746 = vpack.c.bf16 %v1742, %v1674
      %v1747 = vld [vmem:[%s2] sm:$0xff]
      %v1748 = vld [vmem:[%s2 + $0x8] sm:$0xff]
      %vm1749 = vcmask 261120
      %v1751 = vsel %vm1749, %v1151, 0
      %v1754 = vsel %vm1749, %v1447, 0
      %1756 = vmatprep.subr.bf16.mxu0 0
      %1757 = vmatpush1.bf16.xpose.msra.mxu0 %v1754
      %1758 = vmatprep.subr.bf16.mxu0 0
      %1759 = vmatpush1.bf16.xpose.msra.mxu0 0
      %1760 = vmatprep.subr.bf16.mxu0 0
      %1761 = vmatpush1.bf16.xpose.msra.mxu0 0
      %1762 = vmatprep.subr.bf16.mxu0 0
      %1763 = vmatpush1.bf16.xpose.msra.mxu0 0
      %1764 = vmatprep.subr.bf16.mxu0 0
      %1765 = vmatpush1.bf16.xpose.msra.mxu0 0
      %1766 = vmatprep.subr.bf16.mxu0 0
      %1767 = vmatpush1.bf16.xpose.msra.mxu0 0
      %1768 = vmatprep.subr.bf16.mxu0 0
      %1769 = vmatpush1.bf16.xpose.msra.mxu0 0
      %1770 = vmatprep.subr.bf16.mxu0 0
      %1771 = vmatpush1.bf16.xpose.msra.mxu0 0
      %1772 = vmatprep.subr.bf16.mxu0 0
      %1773 = vmatpush1.bf16.xpose.msra.mxu0 0
      %1774 = vmatprep.subr.bf16.mxu0 0
      %1775 = vmatpush1.bf16.xpose.msra.mxu0 0
      %1776 = vmatprep.subr.bf16.mxu0 0
      %1777 = vmatpush1.bf16.xpose.msra.mxu0 0
      %1778 = vmatprep.subr.bf16.mxu0 0
      %1779 = vmatpush1.bf16.xpose.msra.mxu0 0
      %1780 = vmatprep.subr.bf16.mxu0 0
      %1781 = vmatpush1.bf16.xpose.msra.mxu0 0
      %1782 = vmatprep.subr.bf16.mxu0 0
      %1783 = vmatpush1.bf16.xpose.msra.mxu0 0
      %1784 = vmatprep.subr.bf16.mxu0 0
      %1785 = vmatpush1.bf16.xpose.msra.mxu0 0
      %1786 = vmatprep.subr.bf16.mxu0 0
      %1787 = vmatpush1.bf16.xpose.msra.mxu0 0
      %1788 = vmatprep.mubr.bf16.mxu0 0
      %1789 = vmatmul.mubr.bf16.gmra.mrb[0].mxu0 %v1751
      %v1790 = vpop.f32.mrb[0].mxu0
      %v1791 = vadd.f32 %v1747, %v1790
      %v1792 = vpop.f32.mrb[0].mxu0
      %v1793 = vpop.f32.mrb[0].mxu0
      %v1794 = vadd.f32 %v1748, %v1793
      %v1795 = vpop.f32.mrb[0].mxu0
      %1796 = vdwg.mxu0
      %v1798 = vsel %vm1749, %v1152, 0
      %v1801 = vsel %vm1749, %v1448, 0
      %1803 = vmatprep.subr.bf16.mxu0 0
      %1804 = vmatpush1.bf16.xpose.msra.mxu0 %v1801
      %1805 = vmatprep.subr.bf16.mxu0 0
      %1806 = vmatpush1.bf16.xpose.msra.mxu0 0
      %1807 = vmatprep.subr.bf16.mxu0 0
      %1808 = vmatpush1.bf16.xpose.msra.mxu0 0
      %1809 = vmatprep.subr.bf16.mxu0 0
      %1810 = vmatpush1.bf16.xpose.msra.mxu0 0
      %1811 = vmatprep.subr.bf16.mxu0 0
      %1812 = vmatpush1.bf16.xpose.msra.mxu0 0
      %1813 = vmatprep.subr.bf16.mxu0 0
      %1814 = vmatpush1.bf16.xpose.msra.mxu0 0
      %1815 = vmatprep.subr.bf16.mxu0 0
      %1816 = vmatpush1.bf16.xpose.msra.mxu0 0
      %1817 = vmatprep.subr.bf16.mxu0 0
      %1818 = vmatpush1.bf16.xpose.msra.mxu0 0
      %1819 = vmatprep.subr.bf16.mxu0 0
      %1820 = vmatpush1.bf16.xpose.msra.mxu0 0
      %1821 = vmatprep.subr.bf16.mxu0 0
      %1822 = vmatpush1.bf16.xpose.msra.mxu0 0
      %1823 = vmatprep.subr.bf16.mxu0 0
      %1824 = vmatpush1.bf16.xpose.msra.mxu0 0
      %1825 = vmatprep.subr.bf16.mxu0 0
      %1826 = vmatpush1.bf16.xpose.msra.mxu0 0
      %1827 = vmatprep.subr.bf16.mxu0 0
      %1828 = vmatpush1.bf16.xpose.msra.mxu0 0
      %1829 = vmatprep.subr.bf16.mxu0 0
      %1830 = vmatpush1.bf16.xpose.msra.mxu0 0
      %1831 = vmatprep.subr.bf16.mxu0 0
      %1832 = vmatpush1.bf16.xpose.msra.mxu0 0
      %1833 = vmatprep.subr.bf16.mxu0 0
      %1834 = vmatpush1.bf16.xpose.msra.mxu0 0
      %1835 = vmatprep.mubr.bf16.mxu0 0
      %1836 = vmatmul.mubr.bf16.gmra.mrb[0].mxu0 %v1798
      %v1837 = vpop.f32.mrb[0].mxu0
      %v1838 = vadd.f32 %v1747, %v1837
      %v1839 = vpop.f32.mrb[0].mxu0
      %v1840 = vpop.f32.mrb[0].mxu0
      %v1841 = vadd.f32 %v1748, %v1840
      %v1842 = vpop.f32.mrb[0].mxu0
      %1843 = vdwg.mxu0
      %v1845 = vsel %vm1749, %v1153, 0
      %v1848 = vsel %vm1749, %v1449, 0
      %1850 = vmatprep.subr.bf16.mxu0 0
      %1851 = vmatpush1.bf16.xpose.msra.mxu0 %v1848
      %1852 = vmatprep.subr.bf16.mxu0 0
      %1853 = vmatpush1.bf16.xpose.msra.mxu0 0
      %1854 = vmatprep.subr.bf16.mxu0 0
      %1855 = vmatpush1.bf16.xpose.msra.mxu0 0
      %1856 = vmatprep.subr.bf16.mxu0 0
      %1857 = vmatpush1.bf16.xpose.msra.mxu0 0
      %1858 = vmatprep.subr.bf16.mxu0 0
      %1859 = vmatpush1.bf16.xpose.msra.mxu0 0
      %1860 = vmatprep.subr.bf16.mxu0 0
      %1861 = vmatpush1.bf16.xpose.msra.mxu0 0
      %1862 = vmatprep.subr.bf16.mxu0 0
      %1863 = vmatpush1.bf16.xpose.msra.mxu0 0
      %1864 = vmatprep.subr.bf16.mxu0 0
      %1865 = vmatpush1.bf16.xpose.msra.mxu0 0
      %1866 = vmatprep.subr.bf16.mxu0 0
      %1867 = vmatpush1.bf16.xpose.msra.mxu0 0
      %1868 = vmatprep.subr.bf16.mxu0 0
      %1869 = vmatpush1.bf16.xpose.msra.mxu0 0
      %1870 = vmatprep.subr.bf16.mxu0 0
      %1871 = vmatpush1.bf16.xpose.msra.mxu0 0
      %1872 = vmatprep.subr.bf16.mxu0 0
      %1873 = vmatpush1.bf16.xpose.msra.mxu0 0
      %1874 = vmatprep.subr.bf16.mxu0 0
      %1875 = vmatpush1.bf16.xpose.msra.mxu0 0
      %1876 = vmatprep.subr.bf16.mxu0 0
      %1877 = vmatpush1.bf16.xpose.msra.mxu0 0
      %1878 = vmatprep.subr.bf16.mxu0 0
      %1879 = vmatpush1.bf16.xpose.msra.mxu0 0
      %1880 = vmatprep.subr.bf16.mxu0 0
      %1881 = vmatpush1.bf16.xpose.msra.mxu0 0
      %1882 = vmatprep.mubr.bf16.mxu0 0
      %1883 = vmatmul.mubr.bf16.gmra.mrb[0].mxu0 %v1845
      %v1884 = vpop.f32.mrb[0].mxu0
      %v1885 = vadd.f32 %v1747, %v1884
      %v1886 = vpop.f32.mrb[0].mxu0
      %v1887 = vpop.f32.mrb[0].mxu0
      %v1888 = vadd.f32 %v1748, %v1887
      %v1889 = vpop.f32.mrb[0].mxu0
      %1890 = vdwg.mxu0
      %v1892 = vsel %vm1749, %v1154, 0
      %v1895 = vsel %vm1749, %v1450, 0
      %1897 = vmatprep.subr.bf16.mxu0 0
      %1898 = vmatpush1.bf16.xpose.msra.mxu0 %v1895
      %1899 = vmatprep.subr.bf16.mxu0 0
      %1900 = vmatpush1.bf16.xpose.msra.mxu0 0
      %1901 = vmatprep.subr.bf16.mxu0 0
      %1902 = vmatpush1.bf16.xpose.msra.mxu0 0
      %1903 = vmatprep.subr.bf16.mxu0 0
      %1904 = vmatpush1.bf16.xpose.msra.mxu0 0
      %1905 = vmatprep.subr.bf16.mxu0 0
      %1906 = vmatpush1.bf16.xpose.msra.mxu0 0
      %1907 = vmatprep.subr.bf16.mxu0 0
      %1908 = vmatpush1.bf16.xpose.msra.mxu0 0
      %1909 = vmatprep.subr.bf16.mxu0 0
      %1910 = vmatpush1.bf16.xpose.msra.mxu0 0
      %1911 = vmatprep.subr.bf16.mxu0 0
      %1912 = vmatpush1.bf16.xpose.msra.mxu0 0
      %1913 = vmatprep.subr.bf16.mxu0 0
      %1914 = vmatpush1.bf16.xpose.msra.mxu0 0
      %1915 = vmatprep.subr.bf16.mxu0 0
      %1916 = vmatpush1.bf16.xpose.msra.mxu0 0
      %1917 = vmatprep.subr.bf16.mxu0 0
      %1918 = vmatpush1.bf16.xpose.msra.mxu0 0
      %1919 = vmatprep.subr.bf16.mxu0 0
      %1920 = vmatpush1.bf16.xpose.msra.mxu0 0
      %1921 = vmatprep.subr.bf16.mxu0 0
      %1922 = vmatpush1.bf16.xpose.msra.mxu0 0
      %1923 = vmatprep.subr.bf16.mxu0 0
      %1924 = vmatpush1.bf16.xpose.msra.mxu0 0
      %1925 = vmatprep.subr.bf16.mxu0 0
      %1926 = vmatpush1.bf16.xpose.msra.mxu0 0
      %1927 = vmatprep.subr.bf16.mxu0 0
      %1928 = vmatpush1.bf16.xpose.msra.mxu0 0
      %1929 = vmatprep.mubr.bf16.mxu0 0
      %1930 = vmatmul.mubr.bf16.gmra.mrb[0].mxu0 %v1892
      %v1931 = vpop.f32.mrb[0].mxu0
      %v1932 = vadd.f32 %v1747, %v1931
      %v1933 = vpop.f32.mrb[0].mxu0
      %v1934 = vpop.f32.mrb[0].mxu0
      %v1935 = vadd.f32 %v1748, %v1934
      %v1936 = vpop.f32.mrb[0].mxu0
      %1937 = vdwg.mxu0
      %vm1938 = vcmask 130048
      %v1939 = vsel %vm1938, %v1791, -inf
      %1940 = vmax.xlane.f32.xlu0 %v1939
      %v1941 = vpop.xlane.xlu0 %1940
      %v1942 = vsel %vm1938, %v1794, -inf
      %1943 = vmax.xlane.f32.xlu0 %v1942
      %v1944 = vpop.xlane.xlu0 %1943
      %v1945 = vsel %vm1938, %v1838, -inf
      %1946 = vmax.xlane.f32.xlu0 %v1945
      %v1947 = vpop.xlane.xlu0 %1946
      %v1948 = vsel %vm1938, %v1841, -inf
      %1949 = vmax.xlane.f32.xlu0 %v1948
      %v1950 = vpop.xlane.xlu0 %1949
      %v1951 = vsel %vm1938, %v1885, -inf
      %1952 = vmax.xlane.f32.xlu0 %v1951
      %v1953 = vpop.xlane.xlu0 %1952
      %v1954 = vsel %vm1938, %v1888, -inf
      %1955 = vmax.xlane.f32.xlu0 %v1954
      %v1956 = vpop.xlane.xlu0 %1955
      %v1957 = vsel %vm1938, %v1932, -inf
      %1958 = vmax.xlane.f32.xlu0 %v1957
      %v1959 = vpop.xlane.xlu0 %1958
      %v1960 = vsel %vm1938, %v1935, -inf
      %1961 = vmax.xlane.f32.xlu0 %v1960
      %v1962 = vpop.xlane.xlu0 %1961
      %v1963 = vsub.f32 %v1791, %v1941
      %v1964 = vsub.f32 %v1794, %v1944
      %v1965 = vsub.f32 %v1838, %v1947
      %v1966 = vsub.f32 %v1841, %v1950
      %v1967 = vsub.f32 %v1885, %v1953
      %v1968 = vsub.f32 %v1888, %v1956
      %v1969 = vsub.f32 %v1932, %v1959
      %v1970 = vsub.f32 %v1935, %v1962
      %v1971 = vmul.f32 %v1963, 1.442695
      %v1972 = vpow.pop %v1971
      %v1973 = vmul.f32 %v1964, 1.442695
      %v1974 = vpow.pop %v1973
      %v1975 = vmul.f32 %v1965, 1.442695
      %v1976 = vpow.pop %v1975
      %v1977 = vmul.f32 %v1966, 1.442695
      %v1978 = vpow.pop %v1977
      %v1979 = vmul.f32 %v1967, 1.442695
      %v1980 = vpow.pop %v1979
      %v1981 = vmul.f32 %v1968, 1.442695
      %v1982 = vpow.pop %v1981
      %v1983 = vmul.f32 %v1969, 1.442695
      %v1984 = vpow.pop %v1983
      %v1985 = vmul.f32 %v1970, 1.442695
      %v1986 = vpow.pop %v1985
      %v1987 = vsel %vm1938, %v1972, 0.0
      %1988 = vadd.xlane.f32.xlu0 %v1987
      %v1989 = vpop.xlane.xlu0 %1988
      %v1990 = vsel %vm1938, %v1974, 0.0
      %1991 = vadd.xlane.f32.xlu0 %v1990
      %v1992 = vpop.xlane.xlu0 %1991
      %v1993 = vsel %vm1938, %v1976, 0.0
      %1994 = vadd.xlane.f32.xlu0 %v1993
      %v1995 = vpop.xlane.xlu0 %1994
      %v1996 = vsel %vm1938, %v1978, 0.0
      %1997 = vadd.xlane.f32.xlu0 %v1996
      %v1998 = vpop.xlane.xlu0 %1997
      %v1999 = vsel %vm1938, %v1980, 0.0
      %2000 = vadd.xlane.f32.xlu0 %v1999
      %v2001 = vpop.xlane.xlu0 %2000
      %v2002 = vsel %vm1938, %v1982, 0.0
      %2003 = vadd.xlane.f32.xlu0 %v2002
      %v2004 = vpop.xlane.xlu0 %2003
      %v2005 = vsel %vm1938, %v1984, 0.0
      %2006 = vadd.xlane.f32.xlu0 %v2005
      %v2007 = vpop.xlane.xlu0 %2006
      %v2008 = vsel %vm1938, %v1986, 0.0
      %2009 = vadd.xlane.f32.xlu0 %v2008
      %v2010 = vpop.xlane.xlu0 %2009
      %v2011 = vrcp.pop %v1989
      %v2012 = vrcp.pop %v1992
      %v2013 = vrcp.pop %v1995
      %v2014 = vrcp.pop %v1998
      %v2015 = vrcp.pop %v2001
      %v2016 = vrcp.pop %v2004
      %v2017 = vrcp.pop %v2007
      %v2018 = vrcp.pop %v2010
      %v2019 = vmul.f32 %v1972, %v2011
      %v2020 = vmul.f32 %v1974, %v2012
      %v2021 = vmul.f32 %v1976, %v2013
      %v2022 = vmul.f32 %v1978, %v2014
      %v2023 = vmul.f32 %v1980, %v2015
      %v2024 = vmul.f32 %v1982, %v2016
      %v2025 = vmul.f32 %v1984, %v2017
      %v2026 = vmul.f32 %v1986, %v2018
      %v2027 = vpack.c.bf16 %v2020, %v2019
      %v2028 = vpack.c.bf16 %v2022, %v2021
      %v2029 = vpack.c.bf16 %v2024, %v2023
      %v2030 = vpack.c.bf16 %v2026, %v2025
      %v2032 = vsel %vm1938, %v2027, 0
      %2034 = vmatprep.subr.bf16.mxu0 0
      %2035 = vmatpush1.bf16.msra.mxu0 %v1743
      %2036 = vmatprep.subr.bf16.mxu0 0
      %2037 = vmatpush1.bf16.msra.mxu0 0
      %2038 = vmatprep.subr.bf16.mxu0 0
      %2039 = vmatpush1.bf16.msra.mxu0 0
      %2040 = vmatprep.subr.bf16.mxu0 0
      %2041 = vmatpush1.bf16.msra.mxu0 0
      %2042 = vmatprep.subr.bf16.mxu0 0
      %2043 = vmatpush1.bf16.msra.mxu0 0
      %2044 = vmatprep.subr.bf16.mxu0 0
      %2045 = vmatpush1.bf16.msra.mxu0 0
      %2046 = vmatprep.subr.bf16.mxu0 0
      %2047 = vmatpush1.bf16.msra.mxu0 0
      %2048 = vmatprep.subr.bf16.mxu0 0
      %2049 = vmatpush1.bf16.msra.mxu0 0
      %2050 = vmatprep.subr.bf16.mxu0 0
      %2051 = vmatpush1.bf16.msra.mxu0 0
      %2052 = vmatprep.subr.bf16.mxu0 0
      %2053 = vmatpush1.bf16.msra.mxu0 0
      %2054 = vmatprep.subr.bf16.mxu0 0
      %2055 = vmatpush1.bf16.msra.mxu0 0
      %2056 = vmatprep.subr.bf16.mxu0 0
      %2057 = vmatpush1.bf16.msra.mxu0 0
      %2058 = vmatprep.subr.bf16.mxu0 0
      %2059 = vmatpush1.bf16.msra.mxu0 0
      %2060 = vmatprep.subr.bf16.mxu0 0
      %2061 = vmatpush1.bf16.msra.mxu0 0
      %2062 = vmatprep.subr.bf16.mxu0 0
      %2063 = vmatpush1.bf16.msra.mxu0 0
      %2064 = vmatprep.subr.bf16.mxu0 0
      %2065 = vmatpush1.bf16.msra.mxu0 0
      %2066 = vmatprep.mubr.bf16.mxu0 0
      %2067 = vmatmul.mubr.bf16.gmra.mrb[0].mxu0 %v2032
      %v2068 = vpop.f32.mrb[0].mxu0
      %v2069 = vadd.f32 0.0, %v2068
      %v2070 = vpop.f32.mrb[0].mxu0
      %v2071 = vpop.f32.mrb[0].mxu0
      %v2072 = vadd.f32 0.0, %v2071
      %v2073 = vpop.f32.mrb[0].mxu0
      %2074 = vdwg.mxu0
      %v2076 = vsel %vm1938, %v2028, 0
      %2078 = vmatprep.subr.bf16.mxu0 0
      %2079 = vmatpush1.bf16.msra.mxu0 %v1744
      %2080 = vmatprep.subr.bf16.mxu0 0
      %2081 = vmatpush1.bf16.msra.mxu0 0
      %2082 = vmatprep.subr.bf16.mxu0 0
      %2083 = vmatpush1.bf16.msra.mxu0 0
      %2084 = vmatprep.subr.bf16.mxu0 0
      %2085 = vmatpush1.bf16.msra.mxu0 0
      %2086 = vmatprep.subr.bf16.mxu0 0
      %2087 = vmatpush1.bf16.msra.mxu0 0
      %2088 = vmatprep.subr.bf16.mxu0 0
      %2089 = vmatpush1.bf16.msra.mxu0 0
      %2090 = vmatprep.subr.bf16.mxu0 0
      %2091 = vmatpush1.bf16.msra.mxu0 0
      %2092 = vmatprep.subr.bf16.mxu0 0
      %2093 = vmatpush1.bf16.msra.mxu0 0
      %2094 = vmatprep.subr.bf16.mxu0 0
      %2095 = vmatpush1.bf16.msra.mxu0 0
      %2096 = vmatprep.subr.bf16.mxu0 0
      %2097 = vmatpush1.bf16.msra.mxu0 0
      %2098 = vmatprep.subr.bf16.mxu0 0
      %2099 = vmatpush1.bf16.msra.mxu0 0
      %2100 = vmatprep.subr.bf16.mxu0 0
      %2101 = vmatpush1.bf16.msra.mxu0 0
      %2102 = vmatprep.subr.bf16.mxu0 0
      %2103 = vmatpush1.bf16.msra.mxu0 0
      %2104 = vmatprep.subr.bf16.mxu0 0
      %2105 = vmatpush1.bf16.msra.mxu0 0
      %2106 = vmatprep.subr.bf16.mxu0 0
      %2107 = vmatpush1.bf16.msra.mxu0 0
      %2108 = vmatprep.subr.bf16.mxu0 0
      %2109 = vmatpush1.bf16.msra.mxu0 0
      %2110 = vmatprep.mubr.bf16.mxu0 0
      %2111 = vmatmul.mubr.bf16.gmra.mrb[0].mxu0 %v2076
      %v2112 = vpop.f32.mrb[0].mxu0
      %v2113 = vadd.f32 0.0, %v2112
      %v2114 = vpop.f32.mrb[0].mxu0
      %v2115 = vpop.f32.mrb[0].mxu0
      %v2116 = vadd.f32 0.0, %v2115
      %v2117 = vpop.f32.mrb[0].mxu0
      %2118 = vdwg.mxu0
      %v2120 = vsel %vm1938, %v2029, 0
      %2122 = vmatprep.subr.bf16.mxu0 0
      %2123 = vmatpush1.bf16.msra.mxu0 %v1745
      %2124 = vmatprep.subr.bf16.mxu0 0
      %2125 = vmatpush1.bf16.msra.mxu0 0
      %2126 = vmatprep.subr.bf16.mxu0 0
      %2127 = vmatpush1.bf16.msra.mxu0 0
      %2128 = vmatprep.subr.bf16.mxu0 0
      %2129 = vmatpush1.bf16.msra.mxu0 0
      %2130 = vmatprep.subr.bf16.mxu0 0
      %2131 = vmatpush1.bf16.msra.mxu0 0
      %2132 = vmatprep.subr.bf16.mxu0 0
      %2133 = vmatpush1.bf16.msra.mxu0 0
      %2134 = vmatprep.subr.bf16.mxu0 0
      %2135 = vmatpush1.bf16.msra.mxu0 0
      %2136 = vmatprep.subr.bf16.mxu0 0
      %2137 = vmatpush1.bf16.msra.mxu0 0
      %2138 = vmatprep.subr.bf16.mxu0 0
      %2139 = vmatpush1.bf16.msra.mxu0 0
      %2140 = vmatprep.subr.bf16.mxu0 0
      %2141 = vmatpush1.bf16.msra.mxu0 0
      %2142 = vmatprep.subr.bf16.mxu0 0
      %2143 = vmatpush1.bf16.msra.mxu0 0
      %2144 = vmatprep.subr.bf16.mxu0 0
      %2145 = vmatpush1.bf16.msra.mxu0 0
      %2146 = vmatprep.subr.bf16.mxu0 0
      %2147 = vmatpush1.bf16.msra.mxu0 0
      %2148 = vmatprep.subr.bf16.mxu0 0
      %2149 = vmatpush1.bf16.msra.mxu0 0
      %2150 = vmatprep.subr.bf16.mxu0 0
      %2151 = vmatpush1.bf16.msra.mxu0 0
      %2152 = vmatprep.subr.bf16.mxu0 0
      %2153 = vmatpush1.bf16.msra.mxu0 0
      %2154 = vmatprep.mubr.bf16.mxu0 0
      %2155 = vmatmul.mubr.bf16.gmra.mrb[0].mxu0 %v2120
      %v2156 = vpop.f32.mrb[0].mxu0
      %v2157 = vadd.f32 0.0, %v2156
      %v2158 = vpop.f32.mrb[0].mxu0
      %v2159 = vpop.f32.mrb[0].mxu0
      %v2160 = vadd.f32 0.0, %v2159
      %v2161 = vpop.f32.mrb[0].mxu0
      %2162 = vdwg.mxu0
      %v2164 = vsel %vm1938, %v2030, 0
      %2166 = vmatprep.subr.bf16.mxu0 0
      %2167 = vmatpush1.bf16.msra.mxu0 %v1746
      %2168 = vmatprep.subr.bf16.mxu0 0
      %2169 = vmatpush1.bf16.msra.mxu0 0
      %2170 = vmatprep.subr.bf16.mxu0 0
      %2171 = vmatpush1.bf16.msra.mxu0 0
      %2172 = vmatprep.subr.bf16.mxu0 0
      %2173 = vmatpush1.bf16.msra.mxu0 0
      %2174 = vmatprep.subr.bf16.mxu0 0
      %2175 = vmatpush1.bf16.msra.mxu0 0
      %2176 = vmatprep.subr.bf16.mxu0 0
      %2177 = vmatpush1.bf16.msra.mxu0 0
      %2178 = vmatprep.subr.bf16.mxu0 0
      %2179 = vmatpush1.bf16.msra.mxu0 0
      %2180 = vmatprep.subr.bf16.mxu0 0
      %2181 = vmatpush1.bf16.msra.mxu0 0
      %2182 = vmatprep.subr.bf16.mxu0 0
      %2183 = vmatpush1.bf16.msra.mxu0 0
      %2184 = vmatprep.subr.bf16.mxu0 0
      %2185 = vmatpush1.bf16.msra.mxu0 0
      %2186 = vmatprep.subr.bf16.mxu0 0
      %2187 = vmatpush1.bf16.msra.mxu0 0
      %2188 = vmatprep.subr.bf16.mxu0 0
      %2189 = vmatpush1.bf16.msra.mxu0 0
      %2190 = vmatprep.subr.bf16.mxu0 0
      %2191 = vmatpush1.bf16.msra.mxu0 0
      %2192 = vmatprep.subr.bf16.mxu0 0
      %2193 = vmatpush1.bf16.msra.mxu0 0
      %2194 = vmatprep.subr.bf16.mxu0 0
      %2195 = vmatpush1.bf16.msra.mxu0 0
      %2196 = vmatprep.subr.bf16.mxu0 0
      %2197 = vmatpush1.bf16.msra.mxu0 0
      %2198 = vmatprep.mubr.bf16.mxu0 0
      %2199 = vmatmul.mubr.bf16.gmra.mrb[0].mxu0 %v2164
      %v2200 = vpop.f32.mrb[0].mxu0
      %v2201 = vadd.f32 0.0, %v2200
      %v2202 = vpop.f32.mrb[0].mxu0
      %v2203 = vpop.f32.mrb[0].mxu0
      %v2204 = vadd.f32 0.0, %v2203
      %v2205 = vpop.f32.mrb[0].mxu0
      %2206 = vdwg.mxu0
      %v2207 = vcombine.low %v2069, %v2157
      %v2208 = vcombine.high %v2069, %v2157
      %v2210 = vunpack.c.l.s4 1983009808
      %v2211 = vunpack.c.0.s8 %v2210
      %v2212 = vlaneseq
      %v2213 = vshrl.u32 %v2212, 7
      %v2214 = vsub.s32 %v2211, %v2213
      %v2215 = vrot.slane %v2207, %v2214
      %v2217 = vunpack.c.l.s4 1983009808
      %v2218 = vunpack.c.0.s8 %v2217
      %v2219 = vlaneseq
      %v2220 = vshrl.u32 %v2219, 7
      %v2221 = vsub.s32 %v2218, %v2220
      %v2222 = vrot.slane %v2208, %v2221
      %v2223 = vcombine.low %v2113, %v2201
      %v2224 = vcombine.high %v2113, %v2201
      %v2226 = vunpack.c.l.s4 1983009808
      %v2227 = vunpack.c.0.s8 %v2226
      %v2228 = vlaneseq
      %v2229 = vshrl.u32 %v2228, 7
      %v2230 = vsub.s32 %v2227, %v2229
      %v2231 = vrot.slane %v2223, %v2230
      %v2233 = vunpack.c.l.s4 1983009808
      %v2234 = vunpack.c.0.s8 %v2233
      %v2235 = vlaneseq
      %v2236 = vshrl.u32 %v2235, 7
      %v2237 = vsub.s32 %v2234, %v2236
      %v2238 = vrot.slane %v2224, %v2237
      %v2239 = vcombine.low %v2215, %v2231
      %v2240 = vcombine.high %v2215, %v2231
      %v2242 = vunpack.c.l.s4 1934713408
      %v2243 = vunpack.c.0.s8 %v2242
      %v2244 = vlaneseq
      %v2245 = vshrl.u32 %v2244, 7
      %v2246 = vsub.s32 %v2243, %v2245
      %v2247 = vrot.slane %v2239, %v2246
      %v2249 = vunpack.c.l.s4 1934713408
      %v2250 = vunpack.c.0.s8 %v2249
      %v2251 = vlaneseq
      %v2252 = vshrl.u32 %v2251, 7
      %v2253 = vsub.s32 %v2250, %v2252
      %v2254 = vrot.slane %v2240, %v2253
      %v2255 = vcombine.low %v2222, %v2238
      %v2256 = vcombine.high %v2222, %v2238
      %v2258 = vunpack.c.l.s4 1934713408
      %v2259 = vunpack.c.0.s8 %v2258
      %v2260 = vlaneseq
      %v2261 = vshrl.u32 %v2260, 7
      %v2262 = vsub.s32 %v2259, %v2261
      %v2263 = vrot.slane %v2255, %v2262
      %v2265 = vunpack.c.l.s4 1934713408
      %v2266 = vunpack.c.0.s8 %v2265
      %v2267 = vlaneseq
      %v2268 = vshrl.u32 %v2267, 7
      %v2269 = vsub.s32 %v2266, %v2268
      %v2270 = vrot.slane %v2256, %v2269
      %v2271 = vcombine.high %v2247, 0.0
      %v2272 = vcombine.high %v2254, 0.0
      %v2273 = vcombine.high %v2263, 0.0
      %v2274 = vcombine.high %v2270, 0.0
      %v2275 = vcombine.low %v2072, %v2160
      %v2276 = vcombine.high %v2072, %v2160
      %v2278 = vunpack.c.l.s4 1983009808
      %v2279 = vunpack.c.0.s8 %v2278
      %v2280 = vlaneseq
      %v2281 = vshrl.u32 %v2280, 7
      %v2282 = vsub.s32 %v2279, %v2281
      %v2283 = vrot.slane %v2275, %v2282
      %v2285 = vunpack.c.l.s4 1983009808
      %v2286 = vunpack.c.0.s8 %v2285
      %v2287 = vlaneseq
      %v2288 = vshrl.u32 %v2287, 7
      %v2289 = vsub.s32 %v2286, %v2288
      %v2290 = vrot.slane %v2276, %v2289
      %v2291 = vcombine.low %v2116, %v2204
      %v2292 = vcombine.high %v2116, %v2204
      %v2294 = vunpack.c.l.s4 1983009808
      %v2295 = vunpack.c.0.s8 %v2294
      %v2296 = vlaneseq
      %v2297 = vshrl.u32 %v2296, 7
      %v2298 = vsub.s32 %v2295, %v2297
      %v2299 = vrot.slane %v2291, %v2298
      %v2301 = vunpack.c.l.s4 1983009808
      %v2302 = vunpack.c.0.s8 %v2301
      %v2303 = vlaneseq
      %v2304 = vshrl.u32 %v2303, 7
      %v2305 = vsub.s32 %v2302, %v2304
      %v2306 = vrot.slane %v2292, %v2305
      %v2307 = vcombine.low %v2283, %v2299
      %v2308 = vcombine.high %v2283, %v2299
      %v2310 = vunpack.c.l.s4 1934713408
      %v2311 = vunpack.c.0.s8 %v2310
      %v2312 = vlaneseq
      %v2313 = vshrl.u32 %v2312, 7
      %v2314 = vsub.s32 %v2311, %v2313
      %v2315 = vrot.slane %v2307, %v2314
      %v2317 = vunpack.c.l.s4 1934713408
      %v2318 = vunpack.c.0.s8 %v2317
      %v2319 = vlaneseq
      %v2320 = vshrl.u32 %v2319, 7
      %v2321 = vsub.s32 %v2318, %v2320
      %v2322 = vrot.slane %v2308, %v2321
      %v2323 = vcombine.low %v2290, %v2306
      %v2324 = vcombine.high %v2290, %v2306
      %v2326 = vunpack.c.l.s4 1934713408
      %v2327 = vunpack.c.0.s8 %v2326
      %v2328 = vlaneseq
      %v2329 = vshrl.u32 %v2328, 7
      %v2330 = vsub.s32 %v2327, %v2329
      %v2331 = vrot.slane %v2323, %v2330
      %v2333 = vunpack.c.l.s4 1934713408
      %v2334 = vunpack.c.0.s8 %v2333
      %v2335 = vlaneseq
      %v2336 = vshrl.u32 %v2335, 7
      %v2337 = vsub.s32 %v2334, %v2336
      %v2338 = vrot.slane %v2324, %v2337
      %v2339 = vcombine.high %v2315, 0.0
      %v2340 = vcombine.high %v2322, 0.0
      %v2341 = vcombine.high %v2331, 0.0
      %v2342 = vcombine.high %v2338, 0.0
      %v2343 = vcombine.low %v2247, %v2254
      %v2345 = vunpack.c.l.s4 1983009808
      %v2346 = vunpack.c.0.s8 %v2345
      %v2347 = vlaneseq
      %v2348 = vshrl.u32 %v2347, 7
      %v2349 = vsub.s32 %v2346, %v2348
      %v2350 = vrot.slane %v2343, %v2349
      %v2351 = vcombine.low %v2271, %v2272
      %v2353 = vunpack.c.l.s4 1983009808
      %v2354 = vunpack.c.0.s8 %v2353
      %v2355 = vlaneseq
      %v2356 = vshrl.u32 %v2355, 7
      %v2357 = vsub.s32 %v2354, %v2356
      %v2358 = vrot.slane %v2351, %v2357
      %v2359 = vcombine.low %v2263, %v2270
      %v2361 = vunpack.c.l.s4 1983009808
      %v2362 = vunpack.c.0.s8 %v2361
      %v2363 = vlaneseq
      %v2364 = vshrl.u32 %v2363, 7
      %v2365 = vsub.s32 %v2362, %v2364
      %v2366 = vrot.slane %v2359, %v2365
      %v2367 = vcombine.low %v2273, %v2274
      %v2369 = vunpack.c.l.s4 1983009808
      %v2370 = vunpack.c.0.s8 %v2369
      %v2371 = vlaneseq
      %v2372 = vshrl.u32 %v2371, 7
      %v2373 = vsub.s32 %v2370, %v2372
      %v2374 = vrot.slane %v2367, %v2373
      %v2375 = vcombine.low %v2350, %v2358
      %v2376 = vcombine.high %v2350, %v2358
      %v2378 = vunpack.c.l.s4 1934713408
      %v2379 = vunpack.c.0.s8 %v2378
      %v2380 = vlaneseq
      %v2381 = vshrl.u32 %v2380, 7
      %v2382 = vsub.s32 %v2379, %v2381
      %v2383 = vrot.slane %v2375, %v2382
      %v2385 = vunpack.c.l.s4 1934713408
      %v2386 = vunpack.c.0.s8 %v2385
      %v2387 = vlaneseq
      %v2388 = vshrl.u32 %v2387, 7
      %v2389 = vsub.s32 %v2386, %v2388
      %v2390 = vrot.slane %v2376, %v2389
      %v2391 = vcombine.low %v2366, %v2374
      %v2392 = vcombine.high %v2366, %v2374
      %v2394 = vunpack.c.l.s4 1934713408
      %v2395 = vunpack.c.0.s8 %v2394
      %v2396 = vlaneseq
      %v2397 = vshrl.u32 %v2396, 7
      %v2398 = vsub.s32 %v2395, %v2397
      %v2399 = vrot.slane %v2391, %v2398
      %v2401 = vunpack.c.l.s4 1934713408
      %v2402 = vunpack.c.0.s8 %v2401
      %v2403 = vlaneseq
      %v2404 = vshrl.u32 %v2403, 7
      %v2405 = vsub.s32 %v2402, %v2404
      %v2406 = vrot.slane %v2392, %v2405
      %v2407 = vcombine.low %v2383, %v2399
      %v2408 = vcombine.high %v2383, %v2399
      %v2409 = vcombine.low %v2390, %v2406
      %v2410 = vcombine.high %v2390, %v2406
      %v2411 = vcombine.low %v2315, %v2322
      %v2413 = vunpack.c.l.s4 1983009808
      %v2414 = vunpack.c.0.s8 %v2413
      %v2415 = vlaneseq
      %v2416 = vshrl.u32 %v2415, 7
      %v2417 = vsub.s32 %v2414, %v2416
      %v2418 = vrot.slane %v2411, %v2417
      %v2419 = vcombine.low %v2339, %v2340
      %v2421 = vunpack.c.l.s4 1983009808
      %v2422 = vunpack.c.0.s8 %v2421
      %v2423 = vlaneseq
      %v2424 = vshrl.u32 %v2423, 7
      %v2425 = vsub.s32 %v2422, %v2424
      %v2426 = vrot.slane %v2419, %v2425
      %v2427 = vcombine.low %v2331, %v2338
      %v2429 = vunpack.c.l.s4 1983009808
      %v2430 = vunpack.c.0.s8 %v2429
      %v2431 = vlaneseq
      %v2432 = vshrl.u32 %v2431, 7
      %v2433 = vsub.s32 %v2430, %v2432
      %v2434 = vrot.slane %v2427, %v2433
      %v2435 = vcombine.low %v2341, %v2342
      %v2437 = vunpack.c.l.s4 1983009808
      %v2438 = vunpack.c.0.s8 %v2437
      %v2439 = vlaneseq
      %v2440 = vshrl.u32 %v2439, 7
      %v2441 = vsub.s32 %v2438, %v2440
      %v2442 = vrot.slane %v2435, %v2441
      %v2443 = vcombine.low %v2418, %v2426
      %v2444 = vcombine.high %v2418, %v2426
      %v2446 = vunpack.c.l.s4 1934713408
      %v2447 = vunpack.c.0.s8 %v2446
      %v2448 = vlaneseq
      %v2449 = vshrl.u32 %v2448, 7
      %v2450 = vsub.s32 %v2447, %v2449
      %v2451 = vrot.slane %v2443, %v2450
      %v2453 = vunpack.c.l.s4 1934713408
      %v2454 = vunpack.c.0.s8 %v2453
      %v2455 = vlaneseq
      %v2456 = vshrl.u32 %v2455, 7
      %v2457 = vsub.s32 %v2454, %v2456
      %v2458 = vrot.slane %v2444, %v2457
      %v2459 = vcombine.low %v2434, %v2442
      %v2460 = vcombine.high %v2434, %v2442
      %v2462 = vunpack.c.l.s4 1934713408
      %v2463 = vunpack.c.0.s8 %v2462
      %v2464 = vlaneseq
      %v2465 = vshrl.u32 %v2464, 7
      %v2466 = vsub.s32 %v2463, %v2465
      %v2467 = vrot.slane %v2459, %v2466
      %v2469 = vunpack.c.l.s4 1934713408
      %v2470 = vunpack.c.0.s8 %v2469
      %v2471 = vlaneseq
      %v2472 = vshrl.u32 %v2471, 7
      %v2473 = vsub.s32 %v2470, %v2472
      %v2474 = vrot.slane %v2460, %v2473
      %v2475 = vcombine.low %v2451, %v2467
      %v2476 = vcombine.high %v2451, %v2467
      %v2477 = vcombine.low %v2458, %v2474
      %v2478 = vcombine.high %v2458, %v2474
      %2481 = vrot.lane.b32.xlu0 %v2408, 32
      %v2482 = vpop.permute.xlu0 %2481
      %2483 = vrot.lane.b32.xlu0 %v2476, 32
      %v2484 = vpop.permute.xlu0 %2483
      %2489 = vrot.lane.b32.xlu0 %v2409, 64
      %v2490 = vpop.permute.xlu0 %2489
      %2491 = vrot.lane.b32.xlu0 %v2477, 64
      %v2492 = vpop.permute.xlu0 %2491
      %2497 = vrot.lane.b32.xlu0 %v2410, 96
      %v2498 = vpop.permute.xlu0 %2497
      %2499 = vrot.lane.b32.xlu0 %v2478, 96
      %v2500 = vpop.permute.xlu0 %2499
      %v2503 = vsel %vm1749, %v2407, %v2482
      %v2504 = vsel %vm1749, %v2475, %v2484
      %vm2505 = vcmask 523264
      %v2506 = vsel %vm2505, %v2503, %v2490
      %v2507 = vsel %vm2505, %v2504, %v2492
      %vm2508 = vcmask 785408
      %v2509 = vsel %vm2508, %v2506, %v2498
      %v2510 = vsel %vm2508, %v2507, %v2500
      %v2511 = vpack.c.bf16 %v2510, %v2509
      %v2512 = vld [vmem:[%s459] sm:$0xf]
      %v2513 = vld [vmem:[%s459 + $0x4] sm:$0xf]
      %v2514 = vld [vmem:[%s459 + $0x8] sm:$0xf]
      %v2515 = vld [vmem:[%s459 + $0xc] sm:$0xf]
      %v2516 = vld [vmem:[%s459 + $0x10] sm:$0xf]
      %v2517 = vld [vmem:[%s459 + $0x14] sm:$0xf]
      %v2518 = vld [vmem:[%s459 + $0x18] sm:$0xf]
      %v2519 = vld [vmem:[%s459 + $0x1c] sm:$0xf]
      %v2520 = vld [vmem:[%s459 + $0x20] sm:$0xf]
      %v2521 = vld [vmem:[%s459 + $0x24] sm:$0xf]
      %v2522 = vld [vmem:[%s459 + $0x28] sm:$0xf]
      %v2523 = vld [vmem:[%s459 + $0x2c] sm:$0xf]
      %v2524 = vld [vmem:[%s459 + $0x30] sm:$0xf]
      %v2525 = vld [vmem:[%s459 + $0x34] sm:$0xf]
      %v2526 = vld [vmem:[%s459 + $0x38] sm:$0xf]
      %v2527 = vld [vmem:[%s459 + $0x3c] sm:$0xf]
      %v2544 = vunpack.c.l.b16 %v2512
      %v2545 = vunpack.c.l.b16 %v2513
      %v2546 = vunpack.c.l.b16 %v2514
      %v2547 = vunpack.c.l.b16 %v2515
      %v2548 = vunpack.c.l.b16 %v2516
      %v2549 = vunpack.c.l.b16 %v2517
      %v2550 = vunpack.c.l.b16 %v2518
      %v2551 = vunpack.c.l.b16 %v2519
      %v2552 = vunpack.c.l.b16 %v2520
      %v2553 = vunpack.c.l.b16 %v2521
      %v2554 = vunpack.c.l.b16 %v2522
      %v2555 = vunpack.c.l.b16 %v2523
      %v2556 = vunpack.c.l.b16 %v2524
      %v2557 = vunpack.c.l.b16 %v2525
      %v2558 = vunpack.c.l.b16 %v2526
      %v2559 = vunpack.c.l.b16 %v2527
      %v2560 = vpack.c.b16 %v2545, %v2544
      %v2561 = vpack.c.b16 %v2547, %v2546
      %v2562 = vpack.c.b16 %v2549, %v2548
      %v2563 = vpack.c.b16 %v2551, %v2550
      %v2564 = vpack.c.b16 %v2553, %v2552
      %v2565 = vpack.c.b16 %v2555, %v2554
      %v2566 = vpack.c.b16 %v2557, %v2556
      %v2567 = vpack.c.b16 %v2559, %v2558
      %2576 = vmatprep.subr.bf16.mxu0 0
      %2577 = vmatpush1.bf16.msra.mxu0 %v2560
      %2578 = vmatprep.subr.bf16.mxu0 0
      %2579 = vmatpush1.bf16.msra.mxu0 %v2561
      %2580 = vmatprep.subr.bf16.mxu0 0
      %2581 = vmatpush1.bf16.msra.mxu0 %v2562
      %2582 = vmatprep.subr.bf16.mxu0 0
      %2583 = vmatpush1.bf16.msra.mxu0 %v2563
      %2584 = vmatprep.subr.bf16.mxu0 0
      %2585 = vmatpush1.bf16.msra.mxu0 %v2564
      %2586 = vmatprep.subr.bf16.mxu0 0
      %2587 = vmatpush1.bf16.msra.mxu0 %v2565
      %2588 = vmatprep.subr.bf16.mxu0 0
      %2589 = vmatpush1.bf16.msra.mxu0 %v2566
      %2590 = vmatprep.subr.bf16.mxu0 0
      %2591 = vmatpush1.bf16.msra.mxu0 %v2567
      %2592 = vmatprep.subr.bf16.mxu0 0
      %2593 = vmatpush1.bf16.msra.mxu0 0
      %2594 = vmatprep.subr.bf16.mxu0 0
      %2595 = vmatpush1.bf16.msra.mxu0 0
      %2596 = vmatprep.subr.bf16.mxu0 0
      %2597 = vmatpush1.bf16.msra.mxu0 0
      %2598 = vmatprep.subr.bf16.mxu0 0
      %2599 = vmatpush1.bf16.msra.mxu0 0
      %2600 = vmatprep.subr.bf16.mxu0 0
      %2601 = vmatpush1.bf16.msra.mxu0 0
      %2602 = vmatprep.subr.bf16.mxu0 0
      %2603 = vmatpush1.bf16.msra.mxu0 0
      %2604 = vmatprep.subr.bf16.mxu0 0
      %2605 = vmatpush1.bf16.msra.mxu0 0
      %2606 = vmatprep.subr.bf16.mxu0 0
      %2607 = vmatpush1.bf16.msra.mxu0 0
      %2608 = vmatprep.mubr.bf16.mxu0 0
      %2609 = vmatmul.mubr.bf16.gmra.mrb[0].mxu0 %v2511
      %v2610 = vpop.f32.mrb[0].mxu0
      %v2611 = vadd.f32 0.0, %v2610
      %v2612 = vpop.f32.mrb[0].mxu0
      %v2613 = vpop.f32.mrb[0].mxu0
      %v2614 = vadd.f32 0.0, %v2613
      %v2615 = vpop.f32.mrb[0].mxu0
      %2616 = vdwg.mxu0
      %v2617 = vadd.f32 %v488, %v2611
      %v2618 = vadd.f32 %v489, %v2614
      %v2619 = vlaneseq
      %v2620 = vshrl.u32 %v2619, 7
      %v2621 = vsub.s32 7, %v2620
      %v2622 = vrot.slane %v490, %v2621
      %v2623 = vadd.f32 %v2617, %v2622
      %v2624 = vadd.f32 %v2618, %v2622
      %2625 = vadd.xlane.f32.xlu0 %v2623
      %v2626 = vpop.xlane.xlu0 %2625
      %2627 = vadd.xlane.f32.xlu0 %v2624
      %v2628 = vpop.xlane.xlu0 %2627
      %v2629 = vmul.f32 %v2626, %v496
      %v2630 = vmul.f32 %v2628, %v496
      %v2631 = vsub.f32 %v2623, %v2629
      %v2632 = vsub.f32 %v2624, %v2630
      %v2633 = vmul.f32 %v2631, %v2631
      %v2634 = vmul.f32 %v2632, %v2632
      %2635 = vadd.xlane.f32.xlu0 %v2633
      %v2636 = vpop.xlane.xlu0 %2635
      %2637 = vadd.xlane.f32.xlu0 %v2634
      %v2638 = vpop.xlane.xlu0 %2637
      %v2639 = vmul.f32 %v2636, %v496
      %v2640 = vmul.f32 %v2638, %v496
      %v2641 = vadd.f32 %v2639, 1e-05
      %v2642 = vadd.f32 %v2640, 1e-05
      %v2643 = vrsqrt.pop %v2641
      %v2644 = vrsqrt.pop %v2642
      %v2645 = vmul.f32 %v2631, %v2643
      %v2646 = vmul.f32 %v2632, %v2644
      %v2647 = vlaneseq
      %v2648 = vshrl.u32 %v2647, 7
      %v2649 = vsub.s32 2, %v2648
      %v2650 = vrot.slane %v490, %v2649
      %v2651 = vmul.f32 %v2645, %v2650
      %v2652 = vmul.f32 %v2646, %v2650
      %v2653 = vlaneseq
      %v2654 = vshrl.u32 %v2653, 7
      %v2655 = vsub.s32 3, %v2654
      %v2656 = vrot.slane %v490, %v2655
      %v2657 = vadd.f32 %v2651, %v2656
      %v2658 = vadd.f32 %v2652, %v2656
      %v2659 = vpack.c.bf16 %v2658, %v2657
      %v2660 = vld [vmem:[%s464] sm:$0xff]
      %v2661 = vld [vmem:[%s464 + $0x8] sm:$0xff]
      %v2662 = vld [vmem:[%s464 + $0x10] sm:$0xff]
      %v2663 = vld [vmem:[%s464 + $0x18] sm:$0xff]
      %v2664 = vld [vmem:[%s464 + $0x20] sm:$0xff]
      %v2665 = vld [vmem:[%s464 + $0x28] sm:$0xff]
      %v2666 = vld [vmem:[%s464 + $0x30] sm:$0xff]
      %v2667 = vld [vmem:[%s464 + $0x38] sm:$0xff]
      %v2668 = vld [vmem:[%s464 + $0x40] sm:$0xff]
      %v2669 = vld [vmem:[%s464 + $0x48] sm:$0xff]
      %v2670 = vld [vmem:[%s464 + $0x50] sm:$0xff]
      %v2671 = vld [vmem:[%s464 + $0x58] sm:$0xff]
      %v2672 = vld [vmem:[%s464 + $0x60] sm:$0xff]
      %v2673 = vld [vmem:[%s464 + $0x68] sm:$0xff]
      %v2674 = vld [vmem:[%s464 + $0x70] sm:$0xff]
      %v2675 = vld [vmem:[%s464 + $0x78] sm:$0xff]
      %v2676 = vld [vmem:[%s464 + $0x80] sm:$0xff]
      %v2677 = vld [vmem:[%s464 + $0x88] sm:$0xff]
      %v2678 = vld [vmem:[%s464 + $0x90] sm:$0xff]
      %v2679 = vld [vmem:[%s464 + $0x98] sm:$0xff]
      %v2680 = vld [vmem:[%s464 + $0xa0] sm:$0xff]
      %v2681 = vld [vmem:[%s464 + $0xa8] sm:$0xff]
      %v2682 = vld [vmem:[%s464 + $0xb0] sm:$0xff]
      %v2683 = vld [vmem:[%s464 + $0xb8] sm:$0xff]
      %v2684 = vld [vmem:[%s464 + $0xc0] sm:$0xff]
      %v2685 = vld [vmem:[%s464 + $0xc8] sm:$0xff]
      %v2686 = vld [vmem:[%s464 + $0xd0] sm:$0xff]
      %v2687 = vld [vmem:[%s464 + $0xd8] sm:$0xff]
      %v2688 = vld [vmem:[%s464 + $0xe0] sm:$0xff]
      %v2689 = vld [vmem:[%s464 + $0xe8] sm:$0xff]
      %v2690 = vld [vmem:[%s464 + $0xf0] sm:$0xff]
      %v2691 = vld [vmem:[%s464 + $0xf8] sm:$0xff]
      %v2692 = vld [vmem:[%s468] sm:$0xf]
      %v2694 = vlaneseq
      %v2695 = vshrl.u32 %v2694, 7
      %v2696 = vsub.s32 0, %v2695
      %v2697 = vrot.slane %v2692, %v2696
      %v2698 = vlaneseq
      %v2699 = vshrl.u32 %v2698, 7
      %v2700 = vsub.s32 1, %v2699
      %v2701 = vrot.slane %v2692, %v2700
      %v2702 = vlaneseq
      %v2703 = vshrl.u32 %v2702, 7
      %v2704 = vsub.s32 2, %v2703
      %v2705 = vrot.slane %v2692, %v2704
      %v2706 = vlaneseq
      %v2707 = vshrl.u32 %v2706, 7
      %v2708 = vsub.s32 3, %v2707
      %v2709 = vrot.slane %v2692, %v2708
      %v2746 = vunpack.c.l.b16 %v2660
      %v2747 = vunpack.c.h.b16 %v2660
      %v2748 = vunpack.c.l.b16 %v2661
      %v2749 = vunpack.c.h.b16 %v2661
      %v2750 = vunpack.c.l.b16 %v2662
      %v2751 = vunpack.c.h.b16 %v2662
      %v2752 = vunpack.c.l.b16 %v2663
      %v2753 = vunpack.c.h.b16 %v2663
      %v2754 = vunpack.c.l.b16 %v2664
      %v2755 = vunpack.c.h.b16 %v2664
      %v2756 = vunpack.c.l.b16 %v2665
      %v2757 = vunpack.c.h.b16 %v2665
      %v2758 = vunpack.c.l.b16 %v2666
      %v2759 = vunpack.c.h.b16 %v2666
      %v2760 = vunpack.c.l.b16 %v2667
      %v2761 = vunpack.c.h.b16 %v2667
      %v2762 = vunpack.c.l.b16 %v2668
      %v2763 = vunpack.c.h.b16 %v2668
      %v2764 = vunpack.c.l.b16 %v2669
      %v2765 = vunpack.c.h.b16 %v2669
      %v2766 = vunpack.c.l.b16 %v2670
      %v2767 = vunpack.c.h.b16 %v2670
      %v2768 = vunpack.c.l.b16 %v2671
      %v2769 = vunpack.c.h.b16 %v2671
      %v2770 = vunpack.c.l.b16 %v2672
      %v2771 = vunpack.c.h.b16 %v2672
      %v2772 = vunpack.c.l.b16 %v2673
      %v2773 = vunpack.c.h.b16 %v2673
      %v2774 = vunpack.c.l.b16 %v2674
      %v2775 = vunpack.c.h.b16 %v2674
      %v2776 = vunpack.c.l.b16 %v2675
      %v2777 = vunpack.c.h.b16 %v2675
      %v2778 = vunpack.c.l.b16 %v2676
      %v2779 = vunpack.c.h.b16 %v2676
      %v2780 = vunpack.c.l.b16 %v2677
      %v2781 = vunpack.c.h.b16 %v2677
      %v2782 = vunpack.c.l.b16 %v2678
      %v2783 = vunpack.c.h.b16 %v2678
      %v2784 = vunpack.c.l.b16 %v2679
      %v2785 = vunpack.c.h.b16 %v2679
      %v2786 = vunpack.c.l.b16 %v2680
      %v2787 = vunpack.c.h.b16 %v2680
      %v2788 = vunpack.c.l.b16 %v2681
      %v2789 = vunpack.c.h.b16 %v2681
      %v2790 = vunpack.c.l.b16 %v2682
      %v2791 = vunpack.c.h.b16 %v2682
      %v2792 = vunpack.c.l.b16 %v2683
      %v2793 = vunpack.c.h.b16 %v2683
      %v2794 = vunpack.c.l.b16 %v2684
      %v2795 = vunpack.c.h.b16 %v2684
      %v2796 = vunpack.c.l.b16 %v2685
      %v2797 = vunpack.c.h.b16 %v2685
      %v2798 = vunpack.c.l.b16 %v2686
      %v2799 = vunpack.c.h.b16 %v2686
      %v2800 = vunpack.c.l.b16 %v2687
      %v2801 = vunpack.c.h.b16 %v2687
      %v2802 = vunpack.c.l.b16 %v2688
      %v2803 = vunpack.c.h.b16 %v2688
      %v2804 = vunpack.c.l.b16 %v2689
      %v2805 = vunpack.c.h.b16 %v2689
      %v2806 = vunpack.c.l.b16 %v2690
      %v2807 = vunpack.c.h.b16 %v2690
      %v2808 = vunpack.c.l.b16 %v2691
      %v2809 = vunpack.c.h.b16 %v2691
      %v2810 = vpack.c.b16 %v2750, %v2746
      %v2811 = vpack.c.b16 %v2751, %v2747
      %v2812 = vpack.c.b16 %v2752, %v2748
      %v2813 = vpack.c.b16 %v2753, %v2749
      %v2814 = vpack.c.b16 %v2758, %v2754
      %v2815 = vpack.c.b16 %v2759, %v2755
      %v2816 = vpack.c.b16 %v2760, %v2756
      %v2817 = vpack.c.b16 %v2761, %v2757
      %v2818 = vpack.c.b16 %v2766, %v2762
      %v2819 = vpack.c.b16 %v2767, %v2763
      %v2820 = vpack.c.b16 %v2768, %v2764
      %v2821 = vpack.c.b16 %v2769, %v2765
      %v2822 = vpack.c.b16 %v2774, %v2770
      %v2823 = vpack.c.b16 %v2775, %v2771
      %v2824 = vpack.c.b16 %v2776, %v2772
      %v2825 = vpack.c.b16 %v2777, %v2773
      %v2826 = vpack.c.b16 %v2782, %v2778
      %v2827 = vpack.c.b16 %v2783, %v2779
      %v2828 = vpack.c.b16 %v2784, %v2780
      %v2829 = vpack.c.b16 %v2785, %v2781
      %v2830 = vpack.c.b16 %v2790, %v2786
      %v2831 = vpack.c.b16 %v2791, %v2787
      %v2832 = vpack.c.b16 %v2792, %v2788
      %v2833 = vpack.c.b16 %v2793, %v2789
      %v2834 = vpack.c.b16 %v2798, %v2794
      %v2835 = vpack.c.b16 %v2799, %v2795
      %v2836 = vpack.c.b16 %v2800, %v2796
      %v2837 = vpack.c.b16 %v2801, %v2797
      %v2838 = vpack.c.b16 %v2806, %v2802
      %v2839 = vpack.c.b16 %v2807, %v2803
      %v2840 = vpack.c.b16 %v2808, %v2804
      %v2841 = vpack.c.b16 %v2809, %v2805
      %2874 = vmatprep.subr.bf16.mxu0 %v2811
      %2875 = vmatpush1.bf16.msra.mxu0 %v2810
      %2876 = vmatprep.subr.bf16.mxu0 %v2815
      %2877 = vmatpush1.bf16.msra.mxu0 %v2814
      %2878 = vmatprep.subr.bf16.mxu0 %v2819
      %2879 = vmatpush1.bf16.msra.mxu0 %v2818
      %2880 = vmatprep.subr.bf16.mxu0 %v2823
      %2881 = vmatpush1.bf16.msra.mxu0 %v2822
      %2882 = vmatprep.subr.bf16.mxu0 %v2827
      %2883 = vmatpush1.bf16.msra.mxu0 %v2826
      %2884 = vmatprep.subr.bf16.mxu0 %v2831
      %2885 = vmatpush1.bf16.msra.mxu0 %v2830
      %2886 = vmatprep.subr.bf16.mxu0 %v2835
      %2887 = vmatpush1.bf16.msra.mxu0 %v2834
      %2888 = vmatprep.subr.bf16.mxu0 %v2839
      %2889 = vmatpush1.bf16.msra.mxu0 %v2838
      %2890 = vmatprep.subr.bf16.mxu0 0
      %2891 = vmatpush1.bf16.msra.mxu0 0
      %2892 = vmatprep.subr.bf16.mxu0 0
      %2893 = vmatpush1.bf16.msra.mxu0 0
      %2894 = vmatprep.subr.bf16.mxu0 0
      %2895 = vmatpush1.bf16.msra.mxu0 0
      %2896 = vmatprep.subr.bf16.mxu0 0
      %2897 = vmatpush1.bf16.msra.mxu0 0
      %2898 = vmatprep.subr.bf16.mxu0 0
      %2899 = vmatpush1.bf16.msra.mxu0 0
      %2900 = vmatprep.subr.bf16.mxu0 0
      %2901 = vmatpush1.bf16.msra.mxu0 0
      %2902 = vmatprep.subr.bf16.mxu0 0
      %2903 = vmatpush1.bf16.msra.mxu0 0
      %2904 = vmatprep.subr.bf16.mxu0 0
      %2905 = vmatpush1.bf16.msra.mxu0 0
      %2906 = vmatprep.mubr.bf16.mxu0 0
      %2907 = vmatmul.mubr.bf16.gmra.mrb[0].mxu0 %v2659
      %v2908 = vpop.f32.mrb[0].mxu0
      %v2909 = vadd.f32 %v2697, %v2908
      %v2910 = vpop.f32.mrb[0].mxu0
      %v2911 = vadd.f32 %v2701, %v2910
      %v2912 = vpop.f32.mrb[0].mxu0
      %v2913 = vadd.f32 %v2697, %v2912
      %v2914 = vpop.f32.mrb[0].mxu0
      %v2915 = vadd.f32 %v2701, %v2914
      %2916 = vdwg.mxu0
      %2917 = vmatprep.subr.bf16.mxu0 %v2813
      %2918 = vmatpush1.bf16.msra.mxu0 %v2812
      %2919 = vmatprep.subr.bf16.mxu0 %v2817
      %2920 = vmatpush1.bf16.msra.mxu0 %v2816
      %2921 = vmatprep.subr.bf16.mxu0 %v2821
      %2922 = vmatpush1.bf16.msra.mxu0 %v2820
      %2923 = vmatprep.subr.bf16.mxu0 %v2825
      %2924 = vmatpush1.bf16.msra.mxu0 %v2824
      %2925 = vmatprep.subr.bf16.mxu0 %v2829
      %2926 = vmatpush1.bf16.msra.mxu0 %v2828
      %2927 = vmatprep.subr.bf16.mxu0 %v2833
      %2928 = vmatpush1.bf16.msra.mxu0 %v2832
      %2929 = vmatprep.subr.bf16.mxu0 %v2837
      %2930 = vmatpush1.bf16.msra.mxu0 %v2836
      %2931 = vmatprep.subr.bf16.mxu0 %v2841
      %2932 = vmatpush1.bf16.msra.mxu0 %v2840
      %2933 = vmatprep.subr.bf16.mxu0 0
      %2934 = vmatpush1.bf16.msra.mxu0 0
      %2935 = vmatprep.subr.bf16.mxu0 0
      %2936 = vmatpush1.bf16.msra.mxu0 0
      %2937 = vmatprep.subr.bf16.mxu0 0
      %2938 = vmatpush1.bf16.msra.mxu0 0
      %2939 = vmatprep.subr.bf16.mxu0 0
      %2940 = vmatpush1.bf16.msra.mxu0 0
      %2941 = vmatprep.subr.bf16.mxu0 0
      %2942 = vmatpush1.bf16.msra.mxu0 0
      %2943 = vmatprep.subr.bf16.mxu0 0
      %2944 = vmatpush1.bf16.msra.mxu0 0
      %2945 = vmatprep.subr.bf16.mxu0 0
      %2946 = vmatpush1.bf16.msra.mxu0 0
      %2947 = vmatprep.subr.bf16.mxu0 0
      %2948 = vmatpush1.bf16.msra.mxu0 0
      %2949 = vmatprep.mubr.bf16.mxu0 0
      %2950 = vmatmul.mubr.bf16.gmra.mrb[0].mxu0 %v2659
      %v2951 = vpop.f32.mrb[0].mxu0
      %v2952 = vadd.f32 %v2705, %v2951
      %v2953 = vpop.f32.mrb[0].mxu0
      %v2954 = vadd.f32 %v2709, %v2953
      %v2955 = vpop.f32.mrb[0].mxu0
      %v2956 = vadd.f32 %v2705, %v2955
      %v2957 = vpop.f32.mrb[0].mxu0
      %v2958 = vadd.f32 %v2709, %v2957
      %2959 = vdwg.mxu0
      %v2960 = vmul.f32 %v2909, %v2909
      %v2961 = vmul.f32 %v2911, %v2911
      %v2962 = vmul.f32 %v2952, %v2952
      %v2963 = vmul.f32 %v2954, %v2954
      %v2964 = vmul.f32 %v2913, %v2913
      %v2965 = vmul.f32 %v2915, %v2915
      %v2966 = vmul.f32 %v2956, %v2956
      %v2967 = vmul.f32 %v2958, %v2958
      %v2968 = vmul.f32 %v2909, %v2960
      %v2969 = vmul.f32 %v2911, %v2961
      %v2970 = vmul.f32 %v2952, %v2962
      %v2971 = vmul.f32 %v2954, %v2963
      %v2972 = vmul.f32 %v2913, %v2964
      %v2973 = vmul.f32 %v2915, %v2965
      %v2974 = vmul.f32 %v2956, %v2966
      %v2975 = vmul.f32 %v2958, %v2967
      %v2976 = vmul.f32 %v2968, 0.044715
      %v2977 = vmul.f32 %v2969, 0.044715
      %v2978 = vmul.f32 %v2970, 0.044715
      %v2979 = vmul.f32 %v2971, 0.044715
      %v2980 = vmul.f32 %v2972, 0.044715
      %v2981 = vmul.f32 %v2973, 0.044715
      %v2982 = vmul.f32 %v2974, 0.044715
      %v2983 = vmul.f32 %v2975, 0.044715
      %v2984 = vadd.f32 %v2909, %v2976
      %v2985 = vadd.f32 %v2911, %v2977
      %v2986 = vadd.f32 %v2952, %v2978
      %v2987 = vadd.f32 %v2954, %v2979
      %v2988 = vadd.f32 %v2913, %v2980
      %v2989 = vadd.f32 %v2915, %v2981
      %v2990 = vadd.f32 %v2956, %v2982
      %v2991 = vadd.f32 %v2958, %v2983
      %v2992 = vmul.f32 %v2984, 0.7978846
      %v2993 = vmul.f32 %v2985, 0.7978846
      %v2994 = vmul.f32 %v2986, 0.7978846
      %v2995 = vmul.f32 %v2987, 0.7978846
      %v2996 = vmul.f32 %v2988, 0.7978846
      %v2997 = vmul.f32 %v2989, 0.7978846
      %v2998 = vmul.f32 %v2990, 0.7978846
      %v2999 = vmul.f32 %v2991, 0.7978846
      %v3000 = vtanh.pop %v2992
      %v3001 = vtanh.pop %v2993
      %v3002 = vtanh.pop %v2994
      %v3003 = vtanh.pop %v2995
      %v3004 = vtanh.pop %v2996
      %v3005 = vtanh.pop %v2997
      %v3006 = vtanh.pop %v2998
      %v3007 = vtanh.pop %v2999
      %v3008 = vadd.f32 %v3000, 1.0
      %v3009 = vadd.f32 %v3001, 1.0
      %v3010 = vadd.f32 %v3002, 1.0
      %v3011 = vadd.f32 %v3003, 1.0
      %v3012 = vadd.f32 %v3004, 1.0
      %v3013 = vadd.f32 %v3005, 1.0
      %v3014 = vadd.f32 %v3006, 1.0
      %v3015 = vadd.f32 %v3007, 1.0
      %v3016 = vmul.f32 %v3008, 0.5
      %v3017 = vmul.f32 %v3009, 0.5
      %v3018 = vmul.f32 %v3010, 0.5
      %v3019 = vmul.f32 %v3011, 0.5
      %v3020 = vmul.f32 %v3012, 0.5
      %v3021 = vmul.f32 %v3013, 0.5
      %v3022 = vmul.f32 %v3014, 0.5
      %v3023 = vmul.f32 %v3015, 0.5
      %v3024 = vmul.f32 %v2909, %v3016
      %v3025 = vmul.f32 %v2911, %v3017
      %v3026 = vmul.f32 %v2952, %v3018
      %v3027 = vmul.f32 %v2954, %v3019
      %v3028 = vmul.f32 %v2913, %v3020
      %v3029 = vmul.f32 %v2915, %v3021
      %v3030 = vmul.f32 %v2956, %v3022
      %v3031 = vmul.f32 %v2958, %v3023
      %v3032 = vpack.c.bf16 %v3028, %v3024
      %v3033 = vpack.c.bf16 %v3029, %v3025
      %v3034 = vpack.c.bf16 %v3030, %v3026
      %v3035 = vpack.c.bf16 %v3031, %v3027
      %v3036 = vld [vmem:[%s473] sm:$0xf]
      %v3037 = vld [vmem:[%s473 + $0x4] sm:$0xf]
      %v3038 = vld [vmem:[%s473 + $0x8] sm:$0xf]
      %v3039 = vld [vmem:[%s473 + $0xc] sm:$0xf]
      %v3040 = vld [vmem:[%s473 + $0x10] sm:$0xf]
      %v3041 = vld [vmem:[%s473 + $0x14] sm:$0xf]
      %v3042 = vld [vmem:[%s473 + $0x18] sm:$0xf]
      %v3043 = vld [vmem:[%s473 + $0x1c] sm:$0xf]
      %v3044 = vld [vmem:[%s473 + $0x20] sm:$0xf]
      %v3045 = vld [vmem:[%s473 + $0x24] sm:$0xf]
      %v3046 = vld [vmem:[%s473 + $0x28] sm:$0xf]
      %v3047 = vld [vmem:[%s473 + $0x2c] sm:$0xf]
      %v3048 = vld [vmem:[%s473 + $0x30] sm:$0xf]
      %v3049 = vld [vmem:[%s473 + $0x34] sm:$0xf]
      %v3050 = vld [vmem:[%s473 + $0x38] sm:$0xf]
      %v3051 = vld [vmem:[%s473 + $0x3c] sm:$0xf]
      %v3052 = vld [vmem:[%s473 + $0x40] sm:$0xf]
      %v3053 = vld [vmem:[%s473 + $0x44] sm:$0xf]
      %v3054 = vld [vmem:[%s473 + $0x48] sm:$0xf]
      %v3055 = vld [vmem:[%s473 + $0x4c] sm:$0xf]
      %v3056 = vld [vmem:[%s473 + $0x50] sm:$0xf]
      %v3057 = vld [vmem:[%s473 + $0x54] sm:$0xf]
      %v3058 = vld [vmem:[%s473 + $0x58] sm:$0xf]
      %v3059 = vld [vmem:[%s473 + $0x5c] sm:$0xf]
      %v3060 = vld [vmem:[%s473 + $0x60] sm:$0xf]
      %v3061 = vld [vmem:[%s473 + $0x64] sm:$0xf]
      %v3062 = vld [vmem:[%s473 + $0x68] sm:$0xf]
      %v3063 = vld [vmem:[%s473 + $0x6c] sm:$0xf]
      %v3064 = vld [vmem:[%s473 + $0x70] sm:$0xf]
      %v3065 = vld [vmem:[%s473 + $0x74] sm:$0xf]
      %v3066 = vld [vmem:[%s473 + $0x78] sm:$0xf]
      %v3067 = vld [vmem:[%s473 + $0x7c] sm:$0xf]
      %v3068 = vld [vmem:[%s473 + $0x80] sm:$0xf]
      %v3069 = vld [vmem:[%s473 + $0x84] sm:$0xf]
      %v3070 = vld [vmem:[%s473 + $0x88] sm:$0xf]
      %v3071 = vld [vmem:[%s473 + $0x8c] sm:$0xf]
      %v3072 = vld [vmem:[%s473 + $0x90] sm:$0xf]
      %v3073 = vld [vmem:[%s473 + $0x94] sm:$0xf]
      %v3074 = vld [vmem:[%s473 + $0x98] sm:$0xf]
      %v3075 = vld [vmem:[%s473 + $0x9c] sm:$0xf]
      %v3076 = vld [vmem:[%s473 + $0xa0] sm:$0xf]
      %v3077 = vld [vmem:[%s473 + $0xa4] sm:$0xf]
      %v3078 = vld [vmem:[%s473 + $0xa8] sm:$0xf]
      %v3079 = vld [vmem:[%s473 + $0xac] sm:$0xf]
      %v3080 = vld [vmem:[%s473 + $0xb0] sm:$0xf]
      %v3081 = vld [vmem:[%s473 + $0xb4] sm:$0xf]
      %v3082 = vld [vmem:[%s473 + $0xb8] sm:$0xf]
      %v3083 = vld [vmem:[%s473 + $0xbc] sm:$0xf]
      %v3084 = vld [vmem:[%s473 + $0xc0] sm:$0xf]
      %v3085 = vld [vmem:[%s473 + $0xc4] sm:$0xf]
      %v3086 = vld [vmem:[%s473 + $0xc8] sm:$0xf]
      %v3087 = vld [vmem:[%s473 + $0xcc] sm:$0xf]
      %v3088 = vld [vmem:[%s473 + $0xd0] sm:$0xf]
      %v3089 = vld [vmem:[%s473 + $0xd4] sm:$0xf]
      %v3090 = vld [vmem:[%s473 + $0xd8] sm:$0xf]
      %v3091 = vld [vmem:[%s473 + $0xdc] sm:$0xf]
      %v3092 = vld [vmem:[%s473 + $0xe0] sm:$0xf]
      %v3093 = vld [vmem:[%s473 + $0xe4] sm:$0xf]
      %v3094 = vld [vmem:[%s473 + $0xe8] sm:$0xf]
      %v3095 = vld [vmem:[%s473 + $0xec] sm:$0xf]
      %v3096 = vld [vmem:[%s473 + $0xf0] sm:$0xf]
      %v3097 = vld [vmem:[%s473 + $0xf4] sm:$0xf]
      %v3098 = vld [vmem:[%s473 + $0xf8] sm:$0xf]
      %v3099 = vld [vmem:[%s473 + $0xfc] sm:$0xf]
      %v3164 = vunpack.c.l.b16 %v3036
      %v3165 = vunpack.c.l.b16 %v3037
      %v3166 = vunpack.c.l.b16 %v3038
      %v3167 = vunpack.c.l.b16 %v3039
      %v3168 = vunpack.c.l.b16 %v3040
      %v3169 = vunpack.c.l.b16 %v3041
      %v3170 = vunpack.c.l.b16 %v3042
      %v3171 = vunpack.c.l.b16 %v3043
      %v3172 = vunpack.c.l.b16 %v3044
      %v3173 = vunpack.c.l.b16 %v3045
      %v3174 = vunpack.c.l.b16 %v3046
      %v3175 = vunpack.c.l.b16 %v3047
      %v3176 = vunpack.c.l.b16 %v3048
      %v3177 = vunpack.c.l.b16 %v3049
      %v3178 = vunpack.c.l.b16 %v3050
      %v3179 = vunpack.c.l.b16 %v3051
      %v3180 = vunpack.c.l.b16 %v3052
      %v3181 = vunpack.c.l.b16 %v3053
      %v3182 = vunpack.c.l.b16 %v3054
      %v3183 = vunpack.c.l.b16 %v3055
      %v3184 = vunpack.c.l.b16 %v3056
      %v3185 = vunpack.c.l.b16 %v3057
      %v3186 = vunpack.c.l.b16 %v3058
      %v3187 = vunpack.c.l.b16 %v3059
      %v3188 = vunpack.c.l.b16 %v3060
      %v3189 = vunpack.c.l.b16 %v3061
      %v3190 = vunpack.c.l.b16 %v3062
      %v3191 = vunpack.c.l.b16 %v3063
      %v3192 = vunpack.c.l.b16 %v3064
      %v3193 = vunpack.c.l.b16 %v3065
      %v3194 = vunpack.c.l.b16 %v3066
      %v3195 = vunpack.c.l.b16 %v3067
      %v3196 = vunpack.c.l.b16 %v3068
      %v3197 = vunpack.c.l.b16 %v3069
      %v3198 = vunpack.c.l.b16 %v3070
      %v3199 = vunpack.c.l.b16 %v3071
      %v3200 = vunpack.c.l.b16 %v3072
      %v3201 = vunpack.c.l.b16 %v3073
      %v3202 = vunpack.c.l.b16 %v3074
      %v3203 = vunpack.c.l.b16 %v3075
      %v3204 = vunpack.c.l.b16 %v3076
      %v3205 = vunpack.c.l.b16 %v3077
      %v3206 = vunpack.c.l.b16 %v3078
      %v3207 = vunpack.c.l.b16 %v3079
      %v3208 = vunpack.c.l.b16 %v3080
      %v3209 = vunpack.c.l.b16 %v3081
      %v3210 = vunpack.c.l.b16 %v3082
      %v3211 = vunpack.c.l.b16 %v3083
      %v3212 = vunpack.c.l.b16 %v3084
      %v3213 = vunpack.c.l.b16 %v3085
      %v3214 = vunpack.c.l.b16 %v3086
      %v3215 = vunpack.c.l.b16 %v3087
      %v3216 = vunpack.c.l.b16 %v3088
      %v3217 = vunpack.c.l.b16 %v3089
      %v3218 = vunpack.c.l.b16 %v3090
      %v3219 = vunpack.c.l.b16 %v3091
      %v3220 = vunpack.c.l.b16 %v3092
      %v3221 = vunpack.c.l.b16 %v3093
      %v3222 = vunpack.c.l.b16 %v3094
      %v3223 = vunpack.c.l.b16 %v3095
      %v3224 = vunpack.c.l.b16 %v3096
      %v3225 = vunpack.c.l.b16 %v3097
      %v3226 = vunpack.c.l.b16 %v3098
      %v3227 = vunpack.c.l.b16 %v3099
      %v3228 = vpack.c.b16 %v3165, %v3164
      %v3229 = vpack.c.b16 %v3167, %v3166
      %v3230 = vpack.c.b16 %v3169, %v3168
      %v3231 = vpack.c.b16 %v3171, %v3170
      %v3232 = vpack.c.b16 %v3173, %v3172
      %v3233 = vpack.c.b16 %v3175, %v3174
      %v3234 = vpack.c.b16 %v3177, %v3176
      %v3235 = vpack.c.b16 %v3179, %v3178
      %v3236 = vpack.c.b16 %v3181, %v3180
      %v3237 = vpack.c.b16 %v3183, %v3182
      %v3238 = vpack.c.b16 %v3185, %v3184
      %v3239 = vpack.c.b16 %v3187, %v3186
      %v3240 = vpack.c.b16 %v3189, %v3188
      %v3241 = vpack.c.b16 %v3191, %v3190
      %v3242 = vpack.c.b16 %v3193, %v3192
      %v3243 = vpack.c.b16 %v3195, %v3194
      %v3244 = vpack.c.b16 %v3197, %v3196
      %v3245 = vpack.c.b16 %v3199, %v3198
      %v3246 = vpack.c.b16 %v3201, %v3200
      %v3247 = vpack.c.b16 %v3203, %v3202
      %v3248 = vpack.c.b16 %v3205, %v3204
      %v3249 = vpack.c.b16 %v3207, %v3206
      %v3250 = vpack.c.b16 %v3209, %v3208
      %v3251 = vpack.c.b16 %v3211, %v3210
      %v3252 = vpack.c.b16 %v3213, %v3212
      %v3253 = vpack.c.b16 %v3215, %v3214
      %v3254 = vpack.c.b16 %v3217, %v3216
      %v3255 = vpack.c.b16 %v3219, %v3218
      %v3256 = vpack.c.b16 %v3221, %v3220
      %v3257 = vpack.c.b16 %v3223, %v3222
      %v3258 = vpack.c.b16 %v3225, %v3224
      %v3259 = vpack.c.b16 %v3227, %v3226
      %3292 = vmatprep.subr.bf16.mxu0 0
      %3293 = vmatpush1.bf16.msra.mxu0 %v3228
      %3294 = vmatprep.subr.bf16.mxu0 0
      %3295 = vmatpush1.bf16.msra.mxu0 %v3229
      %3296 = vmatprep.subr.bf16.mxu0 0
      %3297 = vmatpush1.bf16.msra.mxu0 %v3230
      %3298 = vmatprep.subr.bf16.mxu0 0
      %3299 = vmatpush1.bf16.msra.mxu0 %v3231
      %3300 = vmatprep.subr.bf16.mxu0 0
      %3301 = vmatpush1.bf16.msra.mxu0 %v3232
      %3302 = vmatprep.subr.bf16.mxu0 0
      %3303 = vmatpush1.bf16.msra.mxu0 %v3233
      %3304 = vmatprep.subr.bf16.mxu0 0
      %3305 = vmatpush1.bf16.msra.mxu0 %v3234
      %3306 = vmatprep.subr.bf16.mxu0 0
      %3307 = vmatpush1.bf16.msra.mxu0 %v3235
      %3308 = vmatprep.subr.bf16.mxu0 0
      %3309 = vmatpush1.bf16.msra.mxu0 %v3236
      %3310 = vmatprep.subr.bf16.mxu0 0
      %3311 = vmatpush1.bf16.msra.mxu0 %v3237
      %3312 = vmatprep.subr.bf16.mxu0 0
      %3313 = vmatpush1.bf16.msra.mxu0 %v3238
      %3314 = vmatprep.subr.bf16.mxu0 0
      %3315 = vmatpush1.bf16.msra.mxu0 %v3239
      %3316 = vmatprep.subr.bf16.mxu0 0
      %3317 = vmatpush1.bf16.msra.mxu0 %v3240
      %3318 = vmatprep.subr.bf16.mxu0 0
      %3319 = vmatpush1.bf16.msra.mxu0 %v3241
      %3320 = vmatprep.subr.bf16.mxu0 0
      %3321 = vmatpush1.bf16.msra.mxu0 %v3242
      %3322 = vmatprep.subr.bf16.mxu0 0
      %3323 = vmatpush1.bf16.msra.mxu0 %v3243
      %3324 = vmatprep.mubr.bf16.mxu0 %v3033
      %3325 = vmatmul.mubr.bf16.gmra.mrb[0].mxu0 %v3032
      %v3326 = vpop.f32.mrb[0].mxu0
      %v3327 = vadd.f32 0.0, %v3326
      %v3328 = vpop.f32.mrb[0].mxu0
      %v3329 = vpop.f32.mrb[0].mxu0
      %v3330 = vadd.f32 0.0, %v3329
      %v3331 = vpop.f32.mrb[0].mxu0
      %3332 = vdwg.mxu0
      %3333 = vmatprep.subr.bf16.mxu0 0
      %3334 = vmatpush1.bf16.msra.mxu0 %v3244
      %3335 = vmatprep.subr.bf16.mxu0 0
      %3336 = vmatpush1.bf16.msra.mxu0 %v3245
      %3337 = vmatprep.subr.bf16.mxu0 0
      %3338 = vmatpush1.bf16.msra.mxu0 %v3246
      %3339 = vmatprep.subr.bf16.mxu0 0
      %3340 = vmatpush1.bf16.msra.mxu0 %v3247
      %3341 = vmatprep.subr.bf16.mxu0 0
      %3342 = vmatpush1.bf16.msra.mxu0 %v3248
      %3343 = vmatprep.subr.bf16.mxu0 0
      %3344 = vmatpush1.bf16.msra.mxu0 %v3249
      %3345 = vmatprep.subr.bf16.mxu0 0
      %3346 = vmatpush1.bf16.msra.mxu0 %v3250
      %3347 = vmatprep.subr.bf16.mxu0 0
      %3348 = vmatpush1.bf16.msra.mxu0 %v3251
      %3349 = vmatprep.subr.bf16.mxu0 0
      %3350 = vmatpush1.bf16.msra.mxu0 %v3252
      %3351 = vmatprep.subr.bf16.mxu0 0
      %3352 = vmatpush1.bf16.msra.mxu0 %v3253
      %3353 = vmatprep.subr.bf16.mxu0 0
      %3354 = vmatpush1.bf16.msra.mxu0 %v3254
      %3355 = vmatprep.subr.bf16.mxu0 0
      %3356 = vmatpush1.bf16.msra.mxu0 %v3255
      %3357 = vmatprep.subr.bf16.mxu0 0
      %3358 = vmatpush1.bf16.msra.mxu0 %v3256
      %3359 = vmatprep.subr.bf16.mxu0 0
      %3360 = vmatpush1.bf16.msra.mxu0 %v3257
      %3361 = vmatprep.subr.bf16.mxu0 0
      %3362 = vmatpush1.bf16.msra.mxu0 %v3258
      %3363 = vmatprep.subr.bf16.mxu0 0
      %3364 = vmatpush1.bf16.msra.mxu0 %v3259
      %3365 = vmatprep.mubr.bf16.mxu0 %v3035
      %3366 = vmatmul.mubr.bf16.gmra.mrb[0].mxu0 %v3034
      %v3367 = vpop.f32.mrb[0].mxu0
      %v3368 = vadd.f32 %v3327, %v3367
      %v3369 = vpop.f32.mrb[0].mxu0
      %v3370 = vpop.f32.mrb[0].mxu0
      %v3371 = vadd.f32 %v3330, %v3370
      %v3372 = vpop.f32.mrb[0].mxu0
      %3373 = vdwg.mxu0
      %v3374 = vadd.f32 %v2623, %v3368
      %v3375 = vadd.f32 %v2624, %v3371
      %v3376 = vlaneseq
      %v3377 = vshrl.u32 %v3376, 7
      %v3378 = vsub.s32 0, %v3377
      %v3379 = vrot.slane %v491, %v3378
      %v3380 = vadd.f32 %v3374, %v3379
      %v3381 = vadd.f32 %v3375, %v3379
      %3382 = vst [vmem:[%s478] sm:$0xff] %v3380
      %3383 = vst [vmem:[%s478 + $0x8] sm:$0xff] %v3381
      %v3384 = vld [vmem:[%s444] sm:$0xff]
      %3385 = vst [vmem:[%s478] sm:$0xff] %v3384
      %p3386 = scmp.lt.s32.totalorder %s24, 1
      %s3387 = scalar_select %p3386, %s24, 1
      %s3388 = smul.addr %s3387, 2
      %s3389 = smul.addr %s3388, 8
      %s3390 = scalar_lea.vmem %s9, %s3389
      // Predicated region
      $region61: #{cap_bench_train_forward.4} parent=55 // pred_check
        %p3391 = pneg %p279
      $region62: #{cap_bench_train_forward.4} parent=55 // pred_check_branch
        %3393 = sbr.rel (%p3391) target = $region64
      $region63: #{cap_bench_train_forward.4} parent=55 // pred_region
        _
      $region64: #{cap_bench_train_forward.4} parent=55 // pred_fallthru
        _
    $region56: #{cap_bench_train_forward.4} parent=5 // pred_fallthru
      _
    %p3394 = scmp.le.s32.totalorder 2, %s15
    // Predicated region
    $region65: #{cap_bench_train_forward.4} parent=5 // pred_check
      %p3395 = pneg %p3394
    $region66: #{cap_bench_train_forward.4} parent=5 // pred_check_branch
      %3397 = sbr.rel (%p3395) target = $region68
    $region67: #{cap_bench_train_forward.4} parent=5 // pred_region
      %s3398 = ssub.s32 %s15, 2
      // Predicated region
      $region69: #{cap_bench_train_forward.4} parent=67 // pred_check
        %p3399 = pneg %p285
      $region70: #{cap_bench_train_forward.4} parent=67 // pred_check_branch
        %3401 = sbr.rel (%p3399) target = $region72
      $region71: #{cap_bench_train_forward.4} parent=67 // pred_region
        %p3402 = scmp.lt.s32.totalorder %s26, 1
        %s3403 = scalar_select %p3402, %s26, 1
        %s3404 = smul.addr %s3403, 2
        %s3405 = smul.addr %s3404, 8
        %s3406 = scalar_lea.vmem %s9, %s3405
      $region72: #{cap_bench_train_forward.4} parent=67 // pred_fallthru
        _
    $region68: #{cap_bench_train_forward.4} parent=5 // pred_fallthru
      _
  $region6: #{cap_bench_train_forward.4} parent=0 // loop_footer
    %s19 = sadd.s32 1, %s15
  $region7: #{cap_bench_train_forward.4} parent=0 // loop_footer_branch
    %14 = sbr.rel target = $region3
  $region8: #{cap_bench_train_forward.4} parent=0 // loop_exit
    _

</llo_original>
